<compile_context>
chip_gen: v7x
topology: tpu7x:2x2x1
jax: 0.10.0
libtpu: 0.0.40
codegen_flags: <defaults>
</compile_context>

<pallas_src>
import functools

import jax
import jax.numpy as jnp
import numpy as np
from jax.experimental import pallas as pl
from jax.experimental.pallas import tpu as pltpu

NEG_SLOPE = 0.2


def _leaky(v):
    return jnp.where(v > 0, v, NEG_SLOPE * v)


def _zero_halo(ref, H, W, C):
    """Zero the 1-pixel border ring of an (H+2, W+2, C) VMEM scratch."""
    zrow = jnp.zeros((1, W + 2, C), dtype=ref.dtype)
    zcol = jnp.zeros((H + 2, 1, C), dtype=ref.dtype)
    ref[0:1, :, :] = zrow
    ref[H + 1:H + 2, :, :] = zrow
    ref[:, 0:1, :] = zcol
    ref[:, W + 1:W + 2, :] = zcol


def _im2col_3x3(xpad, H, W, C):
    """(H+2, W+2, C) zero-haloed image -> (H*W, 9*C) patch matrix.

    Column ordering is tap-major / in-channel-minor, matching
    w_hwio.reshape(9*C, C)."""
    patches = jnp.concatenate(
        [xpad[ky:ky + H, kx:kx + W, :] for ky in range(3) for kx in range(3)],
        axis=-1)
    return patches.reshape(H * W, 9 * C)


def recursive_block_kernel(x_ref, w0_ref, b0_ref, w1_ref, b1_ref, w2_ref,
                           b2_ref, o_ref, xpad_ref, mid_ref, *, H, W):
    # x_ref:  (1, C, H*W)   one batch element (NCHW with H,W flattened)
    # w0/w2:  (9*C, C) im2col-flattened HWIO weights, w1: (C, C), biases: (1, C)
    # o_ref:  (1, C, H*W)   lane-dense output slab
    # xpad_ref / mid_ref: (H+2, W+2, C) f32 VMEM scratch (zero-halo images)
    C = x_ref.shape[1]

    # ---- load + in-VMEM layout change: (C, H*W) -> (H, W, C) ----
    x_hwc = jnp.transpose(x_ref[0]).reshape(H, W, C)

    # ---- conv0 (3x3, SAME): zero-halo scratch + one im2col contraction ----
    _zero_halo(xpad_ref, H, W, C)
    xpad_ref[1:H + 1, 1:W + 1, :] = x_hwc.astype(xpad_ref.dtype)
    p0 = _im2col_3x3(xpad_ref[...], H, W, C)
    out0 = _leaky(jnp.dot(p0, w0_ref[...],
                          preferred_element_type=jnp.float32) + b0_ref[...])

    # ---- conv1 (1x1) ----
    out1 = _leaky(jnp.dot(out0, w1_ref[...],
                          preferred_element_type=jnp.float32) + b1_ref[...])

    # ---- conv2 (3x3, SAME) ----
    _zero_halo(mid_ref, H, W, C)
    mid_ref[1:H + 1, 1:W + 1, :] = out1.reshape(H, W, C)
    p2 = _im2col_3x3(mid_ref[...], H, W, C)
    out2 = _leaky(jnp.dot(p2, w2_ref[...],
                          preferred_element_type=jnp.float32) + b2_ref[...])

    # ---- lane-dense store: (H*W, C) -> (C, H*W) so lanes are fully used ----
    o_ref[0] = jnp.transpose(out2).astype(o_ref.dtype)


@jax.jit
def recursive_block(x_nchw, w0, b0, w1, b1, w2, b2):
    """x_nchw: (N, C, H, W). Conv weights in HWIO: w0/w2 (3,3,C,C), w1 (C,C),
    biases (1, C).

    NOTE: to load a real PyTorch RecursiveBlock checkpoint, convert upstream:
      w_hwio = w_oihw.transpose(2, 3, 1, 0); w1 = w1_oi11[:, :, 0, 0].T; b = b.reshape(1, C)
    """
    N, C, H, W = x_nchw.shape
    x_flat = x_nchw.reshape(N, C, H * W)      # free relabel, no HBM pass
    w0f = w0.reshape(9 * C, C)                # tap-major, in-channel-minor
    w2f = w2.reshape(9 * C, C)

    kernel = functools.partial(recursive_block_kernel, H=H, W=W)

    # TODO(synk): for production-size H/W/C add an H-tile grid axis with a 2-row
    # halo (manual DMA or pl.Element index_map), sized per generation (roughly
    # half the v6e tile height on v7x's 64 MiB VMEM, with vmem_limit_bytes
    # headroom), plus pl.Buffered(3) on the input spec and bf16 matmul operands
    # once C is large enough for the MXU to matter.
    out_flat = pl.pallas_call(
        kernel,
        out_shape=jax.ShapeDtypeStruct((N, C, H * W), x_nchw.dtype),
        grid_spec=pltpu.PrefetchScalarGridSpec(
            num_scalar_prefetch=0,
            grid=(N,),
            in_specs=[
                pl.BlockSpec((1, C, H * W), lambda n: (n, 0, 0)),
                pl.BlockSpec((9 * C, C), lambda n: (0, 0)),
                pl.BlockSpec((1, C), lambda n: (0, 0)),
                pl.BlockSpec((C, C), lambda n: (0, 0)),
                pl.BlockSpec((1, C), lambda n: (0, 0)),
                pl.BlockSpec((9 * C, C), lambda n: (0, 0)),
                pl.BlockSpec((1, C), lambda n: (0, 0)),
            ],
            out_specs=pl.BlockSpec((1, C, H * W), lambda n: (n, 0, 0)),
            scratch_shapes=[
                pltpu.VMEM((H + 2, W + 2, C), jnp.float32),
                pltpu.VMEM((H + 2, W + 2, C), jnp.float32),
            ],
        ),
        compiler_params=pltpu.CompilerParams(
            dimension_semantics=("parallel",)),
    )(x_flat, w0f, b0, w1, b1, w2f, b2)

    return out_flat.reshape(N, C, H, W)       # free relabel back to NCHW


def reference_forward(x_nchw, w0, b0, w1, b1, w2, b2):
    """Pure-JAX reference using lax.conv (matches PyTorch cross-correlation)."""
    C = x_nchw.shape[1]
    dn = ('NHWC', 'HWIO', 'NHWC')
    x = jnp.transpose(x_nchw, (0, 2, 3, 1))
    o = _leaky(jax.lax.conv_general_dilated(x, w0, (1, 1), 'SAME',
                                            dimension_numbers=dn) + b0.reshape(1, 1, 1, C))
    o = _leaky(jax.lax.conv_general_dilated(o, w1.reshape(1, 1, C, C), (1, 1), 'SAME',
                                            dimension_numbers=dn) + b1.reshape(1, 1, 1, C))
    o = _leaky(jax.lax.conv_general_dilated(o, w2, (1, 1), 'SAME',
                                            dimension_numbers=dn) + b2.reshape(1, 1, 1, C))
    return jnp.transpose(o, (0, 3, 1, 2))


if __name__ == "__main__":
    N, C, H, W = 2, 4, 16, 16

    key = jax.random.PRNGKey(0)
    kx, k0, k1, k2, kb0, kb1, kb2 = jax.random.split(key, 7)

    x = jax.random.normal(kx, (N, C, H, W), dtype=jnp.float32)

    # Deterministic synthetic parameters (conv weights in HWIO).
    w0 = 0.1 * jax.random.normal(k0, (3, 3, C, C), dtype=jnp.float32)
    w1 = 0.1 * jax.random.normal(k1, (C, C), dtype=jnp.float32)
    w2 = 0.1 * jax.random.normal(k2, (3, 3, C, C), dtype=jnp.float32)
    b0 = 0.1 * jax.random.normal(kb0, (1, C), dtype=jnp.float32)
    b1 = 0.1 * jax.random.normal(kb1, (1, C), dtype=jnp.float32)
    b2 = 0.1 * jax.random.normal(kb2, (1, C), dtype=jnp.float32)

    out = recursive_block(x, w0, b0, w1, b1, w2, b2)
    out = jax.block_until_ready(out)

    ref = reference_forward(x, w0, b0, w1, b1, w2, b2)
    np.testing.assert_allclose(np.asarray(out), np.asarray(ref), rtol=1e-4, atol=1e-4)

    print("KERNEL_OK")
</pallas_src>

<mosaic_0001>
module attributes {stable_mosaic.version = 11 : i64} {
  func.func @recursive_block_kernel(%arg0: i32, %arg1: memref<1x4x256xf32, #tpu.memory_space<vmem>>, %arg2: memref<36x4xf32, #tpu.memory_space<vmem>>, %arg3: memref<1x4xf32, #tpu.memory_space<vmem>>, %arg4: memref<4x4xf32, #tpu.memory_space<vmem>>, %arg5: memref<1x4xf32, #tpu.memory_space<vmem>>, %arg6: memref<36x4xf32, #tpu.memory_space<vmem>>, %arg7: memref<1x4xf32, #tpu.memory_space<vmem>>, %arg8: memref<1x4x256xf32, #tpu.memory_space<vmem>>, %arg9: memref<18x18x4xf32, #tpu.memory_space<vmem>>, %arg10: memref<18x18x4xf32, #tpu.memory_space<vmem>>) attributes {dimension_semantics = [#tpu.dimension_semantics<parallel>], iteration_bounds = array<i64: 2>, scalar_prefetch = 0 : i64, scratch_operands = 2 : i64, tpu.core_type = #tpu.core_type<tc>, window_params = [{transform_indices = @transform_0, window_bounds = array<i64: 1, 4, 256>}, {pipeline_mode = #tpu.pipeline_mode<synchronous>, transform_indices = @transform_1, window_bounds = array<i64: 36, 4>}, {pipeline_mode = #tpu.pipeline_mode<synchronous>, transform_indices = @transform_2, window_bounds = array<i64: 1, 4>}, {pipeline_mode = #tpu.pipeline_mode<synchronous>, transform_indices = @transform_3, window_bounds = array<i64: 4, 4>}, {pipeline_mode = #tpu.pipeline_mode<synchronous>, transform_indices = @transform_4, window_bounds = array<i64: 1, 4>}, {pipeline_mode = #tpu.pipeline_mode<synchronous>, transform_indices = @transform_5, window_bounds = array<i64: 36, 4>}, {pipeline_mode = #tpu.pipeline_mode<synchronous>, transform_indices = @transform_6, window_bounds = array<i64: 1, 4>}, {transform_indices = @transform_7, window_bounds = array<i64: 1, 4, 256>}]} {
    %c0 = arith.constant 0 : index
    %c0_0 = arith.constant 0 : index
    %c0_1 = arith.constant 0 : index
    %0 = vector.load %arg1[%c0, %c0_0, %c0_1] : memref<1x4x256xf32, #tpu.memory_space<vmem>>, vector<1x4x256xf32>
    %1 = vector.shape_cast %0 : vector<1x4x256xf32> to vector<4x256xf32>
    %2 = tpu.transpose %1, [1, 0] : vector<4x256xf32> -> vector<256x4xf32>
    %3 = vector.shape_cast %2 : vector<256x4xf32> to vector<16x16x4xf32>
    %cst = arith.constant 0.000000e+00 : f32
    %4 = vector.broadcast %cst : f32 to vector<1x18x4xf32>
    %cst_2 = arith.constant 0.000000e+00 : f32
    %5 = vector.broadcast %cst_2 : f32 to vector<18x1x4xf32>
    %c0_3 = arith.constant 0 : index
    %c0_4 = arith.constant 0 : index
    %c0_5 = arith.constant 0 : index
    %6 = vector.load %arg9[%c0_3, %c0_4, %c0_5] : memref<18x18x4xf32, #tpu.memory_space<vmem>>, vector<1x18x4xf32>
    tpu.vector_store %arg9[%c0_3, %c0_4, %c0_5], %4 {strides = array<i32>} : memref<18x18x4xf32, #tpu.memory_space<vmem>>, vector<1x18x4xf32>,
    %c17 = arith.constant 17 : index
    %c0_6 = arith.constant 0 : index
    %c0_7 = arith.constant 0 : index
    %7 = vector.load %arg9[%c17, %c0_6, %c0_7] : memref<18x18x4xf32, #tpu.memory_space<vmem>>, vector<1x18x4xf32>
    tpu.vector_store %arg9[%c17, %c0_6, %c0_7], %4 {strides = array<i32>} : memref<18x18x4xf32, #tpu.memory_space<vmem>>, vector<1x18x4xf32>,
    %c0_8 = arith.constant 0 : index
    %c0_9 = arith.constant 0 : index
    %c0_10 = arith.constant 0 : index
    %8 = vector.load %arg9[%c0_8, %c0_9, %c0_10] : memref<18x18x4xf32, #tpu.memory_space<vmem>>, vector<18x1x4xf32>
    tpu.vector_store %arg9[%c0_8, %c0_9, %c0_10], %5 {strides = array<i32>} : memref<18x18x4xf32, #tpu.memory_space<vmem>>, vector<18x1x4xf32>,
    %c0_11 = arith.constant 0 : index
    %c17_12 = arith.constant 17 : index
    %c0_13 = arith.constant 0 : index
    %9 = vector.load %arg9[%c0_11, %c17_12, %c0_13] : memref<18x18x4xf32, #tpu.memory_space<vmem>>, vector<18x1x4xf32>
    tpu.vector_store %arg9[%c0_11, %c17_12, %c0_13], %5 {strides = array<i32>} : memref<18x18x4xf32, #tpu.memory_space<vmem>>, vector<18x1x4xf32>,
    %c1 = arith.constant 1 : index
    %c1_14 = arith.constant 1 : index
    %c0_15 = arith.constant 0 : index
    %10 = vector.load %arg9[%c1, %c1_14, %c0_15] : memref<18x18x4xf32, #tpu.memory_space<vmem>>, vector<16x16x4xf32>
    tpu.vector_store %arg9[%c1, %c1_14, %c0_15], %3 {strides = array<i32>} : memref<18x18x4xf32, #tpu.memory_space<vmem>>, vector<16x16x4xf32>,
    %c0_16 = arith.constant 0 : index
    %c0_17 = arith.constant 0 : index
    %c0_18 = arith.constant 0 : index
    %11 = vector.load %arg9[%c0_16, %c0_17, %c0_18] : memref<18x18x4xf32, #tpu.memory_space<vmem>>, vector<18x18x4xf32>
    %12 = vector.extract_strided_slice %11 {offsets = [0, 0, 0], sizes = [16, 16, 4], strides = [1, 1, 1]} : vector<18x18x4xf32> to vector<16x16x4xf32>
    %13 = vector.extract_strided_slice %11 {offsets = [0, 1, 0], sizes = [16, 16, 4], strides = [1, 1, 1]} : vector<18x18x4xf32> to vector<16x16x4xf32>
    %14 = vector.extract_strided_slice %11 {offsets = [0, 2, 0], sizes = [16, 16, 4], strides = [1, 1, 1]} : vector<18x18x4xf32> to vector<16x16x4xf32>
    %15 = vector.extract_strided_slice %11 {offsets = [1, 0, 0], sizes = [16, 16, 4], strides = [1, 1, 1]} : vector<18x18x4xf32> to vector<16x16x4xf32>
    %16 = vector.extract_strided_slice %11 {offsets = [1, 1, 0], sizes = [16, 16, 4], strides = [1, 1, 1]} : vector<18x18x4xf32> to vector<16x16x4xf32>
    %17 = vector.extract_strided_slice %11 {offsets = [1, 2, 0], sizes = [16, 16, 4], strides = [1, 1, 1]} : vector<18x18x4xf32> to vector<16x16x4xf32>
    %18 = vector.extract_strided_slice %11 {offsets = [2, 0, 0], sizes = [16, 16, 4], strides = [1, 1, 1]} : vector<18x18x4xf32> to vector<16x16x4xf32>
    %19 = vector.extract_strided_slice %11 {offsets = [2, 1, 0], sizes = [16, 16, 4], strides = [1, 1, 1]} : vector<18x18x4xf32> to vector<16x16x4xf32>
    %20 = vector.extract_strided_slice %11 {offsets = [2, 2, 0], sizes = [16, 16, 4], strides = [1, 1, 1]} : vector<18x18x4xf32> to vector<16x16x4xf32>
    %21 = tpu.concatenate %12, %13, %14, %15, %16, %17, %18, %19, %20 in 2 : vector<16x16x4xf32>, vector<16x16x4xf32>, vector<16x16x4xf32>, vector<16x16x4xf32>, vector<16x16x4xf32>, vector<16x16x4xf32>, vector<16x16x4xf32>, vector<16x16x4xf32>, vector<16x16x4xf32> -> vector<16x16x36xf32>
    %22 = vector.shape_cast %21 : vector<16x16x36xf32> to vector<256x36xf32>
    %c0_19 = arith.constant 0 : index
    %c0_20 = arith.constant 0 : index
    %23 = vector.load %arg2[%c0_19, %c0_20] : memref<36x4xf32, #tpu.memory_space<vmem>>, vector<36x4xf32>
    %cst_21 = arith.constant dense<0.000000e+00> : vector<256x4xf32>
    %24 = tpu.matmul %22, %23, %cst_21 {dimension_numbers = #tpu.dot_dimension_numbers<[1], [0], [0], [1], [0, 0, 1, 1], [], []>} : vector<256x36xf32>, vector<36x4xf32>, vector<256x4xf32> -> vector<256x4xf32>
    %c0_22 = arith.constant 0 : index
    %c0_23 = arith.constant 0 : index
    %25 = vector.load %arg3[%c0_22, %c0_23] : memref<1x4xf32, #tpu.memory_space<vmem>>, vector<1x4xf32>
    %26 = vector.broadcast %25 : vector<1x4xf32> to vector<256x4xf32>
    %27 = arith.addf %24, %26 : vector<256x4xf32>
    %cst_24 = arith.constant 0.000000e+00 : f32
    %28 = vector.broadcast %cst_24 : f32 to vector<256x4xf32>
    %29 = arith.cmpf ogt, %27, %28 : vector<256x4xf32>
    %cst_25 = arith.constant 2.000000e-01 : f32
    %30 = vector.broadcast %cst_25 : f32 to vector<256x4xf32>
    %31 = arith.mulf %30, %27 : vector<256x4xf32>
    %32 = arith.select %29, %27, %31 : vector<256x4xi1>, vector<256x4xf32>
    %c0_26 = arith.constant 0 : index
    %c0_27 = arith.constant 0 : index
    %33 = vector.load %arg4[%c0_26, %c0_27] : memref<4x4xf32, #tpu.memory_space<vmem>>, vector<4x4xf32>
    %cst_28 = arith.constant dense<0.000000e+00> : vector<256x4xf32>
    %34 = tpu.matmul %32, %33, %cst_28 {dimension_numbers = #tpu.dot_dimension_numbers<[1], [0], [0], [1], [0, 0, 1, 1], [], []>} : vector<256x4xf32>, vector<4x4xf32>, vector<256x4xf32> -> vector<256x4xf32>
    %c0_29 = arith.constant 0 : index
    %c0_30 = arith.constant 0 : index
    %35 = vector.load %arg5[%c0_29, %c0_30] : memref<1x4xf32, #tpu.memory_space<vmem>>, vector<1x4xf32>
    %36 = vector.broadcast %35 : vector<1x4xf32> to vector<256x4xf32>
    %37 = arith.addf %34, %36 : vector<256x4xf32>
    %cst_31 = arith.constant 0.000000e+00 : f32
    %38 = vector.broadcast %cst_31 : f32 to vector<256x4xf32>
    %39 = arith.cmpf ogt, %37, %38 : vector<256x4xf32>
    %cst_32 = arith.constant 2.000000e-01 : f32
    %40 = vector.broadcast %cst_32 : f32 to vector<256x4xf32>
    %41 = arith.mulf %40, %37 : vector<256x4xf32>
    %42 = arith.select %39, %37, %41 : vector<256x4xi1>, vector<256x4xf32>
    %cst_33 = arith.constant 0.000000e+00 : f32
    %43 = vector.broadcast %cst_33 : f32 to vector<1x18x4xf32>
    %cst_34 = arith.constant 0.000000e+00 : f32
    %44 = vector.broadcast %cst_34 : f32 to vector<18x1x4xf32>
    %c0_35 = arith.constant 0 : index
    %c0_36 = arith.constant 0 : index
    %c0_37 = arith.constant 0 : index
    %45 = vector.load %arg10[%c0_35, %c0_36, %c0_37] : memref<18x18x4xf32, #tpu.memory_space<vmem>>, vector<1x18x4xf32>
    tpu.vector_store %arg10[%c0_35, %c0_36, %c0_37], %43 {strides = array<i32>} : memref<18x18x4xf32, #tpu.memory_space<vmem>>, vector<1x18x4xf32>,
    %c17_38 = arith.constant 17 : index
    %c0_39 = arith.constant 0 : index
    %c0_40 = arith.constant 0 : index
    %46 = vector.load %arg10[%c17_38, %c0_39, %c0_40] : memref<18x18x4xf32, #tpu.memory_space<vmem>>, vector<1x18x4xf32>
    tpu.vector_store %arg10[%c17_38, %c0_39, %c0_40], %43 {strides = array<i32>} : memref<18x18x4xf32, #tpu.memory_space<vmem>>, vector<1x18x4xf32>,
    %c0_41 = arith.constant 0 : index
    %c0_42 = arith.constant 0 : index
    %c0_43 = arith.constant 0 : index
    %47 = vector.load %arg10[%c0_41, %c0_42, %c0_43] : memref<18x18x4xf32, #tpu.memory_space<vmem>>, vector<18x1x4xf32>
    tpu.vector_store %arg10[%c0_41, %c0_42, %c0_43], %44 {strides = array<i32>} : memref<18x18x4xf32, #tpu.memory_space<vmem>>, vector<18x1x4xf32>,
    %c0_44 = arith.constant 0 : index
    %c17_45 = arith.constant 17 : index
    %c0_46 = arith.constant 0 : index
    %48 = vector.load %arg10[%c0_44, %c17_45, %c0_46] : memref<18x18x4xf32, #tpu.memory_space<vmem>>, vector<18x1x4xf32>
    tpu.vector_store %arg10[%c0_44, %c17_45, %c0_46], %44 {strides = array<i32>} : memref<18x18x4xf32, #tpu.memory_space<vmem>>, vector<18x1x4xf32>,
    %49 = vector.shape_cast %42 : vector<256x4xf32> to vector<16x16x4xf32>
    %c1_47 = arith.constant 1 : index
    %c1_48 = arith.constant 1 : index
    %c0_49 = arith.constant 0 : index
    %50 = vector.load %arg10[%c1_47, %c1_48, %c0_49] : memref<18x18x4xf32, #tpu.memory_space<vmem>>, vector<16x16x4xf32>
    tpu.vector_store %arg10[%c1_47, %c1_48, %c0_49], %49 {strides = array<i32>} : memref<18x18x4xf32, #tpu.memory_space<vmem>>, vector<16x16x4xf32>,
    %c0_50 = arith.constant 0 : index
    %c0_51 = arith.constant 0 : index
    %c0_52 = arith.constant 0 : index
    %51 = vector.load %arg10[%c0_50, %c0_51, %c0_52] : memref<18x18x4xf32, #tpu.memory_space<vmem>>, vector<18x18x4xf32>
    %52 = vector.extract_strided_slice %51 {offsets = [0, 0, 0], sizes = [16, 16, 4], strides = [1, 1, 1]} : vector<18x18x4xf32> to vector<16x16x4xf32>
    %53 = vector.extract_strided_slice %51 {offsets = [0, 1, 0], sizes = [16, 16, 4], strides = [1, 1, 1]} : vector<18x18x4xf32> to vector<16x16x4xf32>
    %54 = vector.extract_strided_slice %51 {offsets = [0, 2, 0], sizes = [16, 16, 4], strides = [1, 1, 1]} : vector<18x18x4xf32> to vector<16x16x4xf32>
    %55 = vector.extract_strided_slice %51 {offsets = [1, 0, 0], sizes = [16, 16, 4], strides = [1, 1, 1]} : vector<18x18x4xf32> to vector<16x16x4xf32>
    %56 = vector.extract_strided_slice %51 {offsets = [1, 1, 0], sizes = [16, 16, 4], strides = [1, 1, 1]} : vector<18x18x4xf32> to vector<16x16x4xf32>
    %57 = vector.extract_strided_slice %51 {offsets = [1, 2, 0], sizes = [16, 16, 4], strides = [1, 1, 1]} : vector<18x18x4xf32> to vector<16x16x4xf32>
    %58 = vector.extract_strided_slice %51 {offsets = [2, 0, 0], sizes = [16, 16, 4], strides = [1, 1, 1]} : vector<18x18x4xf32> to vector<16x16x4xf32>
    %59 = vector.extract_strided_slice %51 {offsets = [2, 1, 0], sizes = [16, 16, 4], strides = [1, 1, 1]} : vector<18x18x4xf32> to vector<16x16x4xf32>
    %60 = vector.extract_strided_slice %51 {offsets = [2, 2, 0], sizes = [16, 16, 4], strides = [1, 1, 1]} : vector<18x18x4xf32> to vector<16x16x4xf32>
    %61 = tpu.concatenate %52, %53, %54, %55, %56, %57, %58, %59, %60 in 2 : vector<16x16x4xf32>, vector<16x16x4xf32>, vector<16x16x4xf32>, vector<16x16x4xf32>, vector<16x16x4xf32>, vector<16x16x4xf32>, vector<16x16x4xf32>, vector<16x16x4xf32>, vector<16x16x4xf32> -> vector<16x16x36xf32>
    %62 = vector.shape_cast %61 : vector<16x16x36xf32> to vector<256x36xf32>
    %c0_53 = arith.constant 0 : index
    %c0_54 = arith.constant 0 : index
    %63 = vector.load %arg6[%c0_53, %c0_54] : memref<36x4xf32, #tpu.memory_space<vmem>>, vector<36x4xf32>
    %cst_55 = arith.constant dense<0.000000e+00> : vector<256x4xf32>
    %64 = tpu.matmul %62, %63, %cst_55 {dimension_numbers = #tpu.dot_dimension_numbers<[1], [0], [0], [1], [0, 0, 1, 1], [], []>} : vector<256x36xf32>, vector<36x4xf32>, vector<256x4xf32> -> vector<256x4xf32>
    %c0_56 = arith.constant 0 : index
    %c0_57 = arith.constant 0 : index
    %65 = vector.load %arg7[%c0_56, %c0_57] : memref<1x4xf32, #tpu.memory_space<vmem>>, vector<1x4xf32>
    %66 = vector.broadcast %65 : vector<1x4xf32> to vector<256x4xf32>
    %67 = arith.addf %64, %66 : vector<256x4xf32>
    %cst_58 = arith.constant 0.000000e+00 : f32
    %68 = vector.broadcast %cst_58 : f32 to vector<256x4xf32>
    %69 = arith.cmpf ogt, %67, %68 : vector<256x4xf32>
    %cst_59 = arith.constant 2.000000e-01 : f32
    %70 = vector.broadcast %cst_59 : f32 to vector<256x4xf32>
    %71 = arith.mulf %70, %67 : vector<256x4xf32>
    %72 = arith.select %69, %67, %71 : vector<256x4xi1>, vector<256x4xf32>
    %73 = tpu.transpose %72, [1, 0] : vector<256x4xf32> -> vector<4x256xf32>
    %c0_60 = arith.constant 0 : index
    %c0_61 = arith.constant 0 : index
    %c0_62 = arith.constant 0 : index
    %74 = vector.load %arg8[%c0_60, %c0_61, %c0_62] : memref<1x4x256xf32, #tpu.memory_space<vmem>>, vector<1x4x256xf32>
    %75 = vector.shape_cast %74 : vector<1x4x256xf32> to vector<4x256xf32>
    %76 = vector.shape_cast %73 : vector<4x256xf32> to vector<1x4x256xf32>
    tpu.vector_store %arg8[%c0_60, %c0_61, %c0_62], %76 {strides = array<i32>} : memref<1x4x256xf32, #tpu.memory_space<vmem>>, vector<1x4x256xf32>,
    return
  }
  func.func @transform_0(%arg0: i32) -> (i32, i32, i32) {
    %c0_i32 = arith.constant 0 : i32
    %c0_i32_0 = arith.constant 0 : i32
    %c0_i32_1 = arith.constant 0 : i32
    return %arg0, %c0_i32, %c0_i32_0 : i32, i32, i32
  }
  func.func @transform_1(%arg0: i32) -> (i32, i32) {
    %c0_i32 = arith.constant 0 : i32
    %c0_i32_0 = arith.constant 0 : i32
    %c0_i32_1 = arith.constant 0 : i32
    return %c0_i32, %c0_i32_0 : i32, i32
  }
  func.func @transform_2(%arg0: i32) -> (i32, i32) {
    %c0_i32 = arith.constant 0 : i32
    %c0_i32_0 = arith.constant 0 : i32
    %c0_i32_1 = arith.constant 0 : i32
    return %c0_i32, %c0_i32_0 : i32, i32
  }
  func.func @transform_3(%arg0: i32) -> (i32, i32) {
    %c0_i32 = arith.constant 0 : i32
    %c0_i32_0 = arith.constant 0 : i32
    %c0_i32_1 = arith.constant 0 : i32
    return %c0_i32, %c0_i32_0 : i32, i32
  }
  func.func @transform_4(%arg0: i32) -> (i32, i32) {
    %c0_i32 = arith.constant 0 : i32
    %c0_i32_0 = arith.constant 0 : i32
    %c0_i32_1 = arith.constant 0 : i32
    return %c0_i32, %c0_i32_0 : i32, i32
  }
  func.func @transform_5(%arg0: i32) -> (i32, i32) {
    %c0_i32 = arith.constant 0 : i32
    %c0_i32_0 = arith.constant 0 : i32
    %c0_i32_1 = arith.constant 0 : i32
    return %c0_i32, %c0_i32_0 : i32, i32
  }
  func.func @transform_6(%arg0: i32) -> (i32, i32) {
    %c0_i32 = arith.constant 0 : i32
    %c0_i32_0 = arith.constant 0 : i32
    %c0_i32_1 = arith.constant 0 : i32
    return %c0_i32, %c0_i32_0 : i32, i32
  }
  func.func @transform_7(%arg0: i32) -> (i32, i32, i32) {
    %c0_i32 = arith.constant 0 : i32
    %c0_i32_0 = arith.constant 0 : i32
    %c0_i32_1 = arith.constant 0 : i32
    return %arg0, %c0_i32, %c0_i32_0 : i32, i32, i32
  }
}

</mosaic_0001>

<llo_original>
// kernel: recursive_block.1
$region0: #{recursive_block.1}
  #allocation0 [shape = 'u32[]', space=smem, size = 0x4, offset = 0x4, fixed_abs, tag = 'smem constant byte address 0x4 - core index']
  #allocation1 [shape = 'u32[144,128]{1,0:T(1,128)}', space=vmem, size = 0x12000, scoped, tag = 'internal scratch']
  #allocation2 [shape = 'f32[18,18,4]{2,1,0:T(8,128)}', space=vmem, size = 0x36000, scoped, tag = 'scratch operand']
  #allocation3 [shape = 'f32[18,18,4]{2,1,0:T(8,128)}', space=vmem, size = 0x36000, scoped, tag = 'scratch operand']
  %s0 = inlined_call_operand.vmem [shape: f32[2,4,256], index: 0, kind: input, shape index: {}]
  %s1 = inlined_call_operand.vmem [shape: f32[36,4], index: 1, kind: input, shape index: {}]
  %s2 = inlined_call_operand.vmem [shape: f32[1,4], index: 2, kind: input, shape index: {}]
  %s3 = inlined_call_operand.vmem [shape: f32[4,4], index: 3, kind: input, shape index: {}]
  %s4 = inlined_call_operand.vmem [shape: f32[1,4], index: 4, kind: input, shape index: {}]
  %s5 = inlined_call_operand.vmem [shape: f32[36,4], index: 5, kind: input, shape index: {}]
  %s6 = inlined_call_operand.vmem [shape: f32[1,4], index: 6, kind: input, shape index: {}]
  %s7 = inlined_call_operand.vmem [shape: f32[2,4,256], index: 7, kind: output, shape index: {}]
  %s8 = sld [smem:[#allocation0]]
  $region61: #{recursive_block.1} parent=0
    _
  %s10 = ssub.s32 1, %s8
  %s11 = scalar_select 0, %s10, %s8
  loop: start=0, step=1, limit=4
  $region2: #{recursive_block.1} parent=0 // loop_pre_header
    _
  $region3: #{recursive_block.1} parent=0 // loop_header
    %s13 = sphi 0, %s17
    %p14 = scmp.ge.s32.totalorder %s13, 4
    %s23 = sphi 0, %s25
    %s26 = sphi 0, %s23
    %s27 = sphi 0, %s26
    %s43 = sphi 0, %s27
    %s47 = sphi 0, %s47
    %s49 = sphi 0, %s47
    %s50 = sphi 0, %s49
    %s64 = sphi 0, %s50
    %s68 = sphi 0, %s68
    %s70 = sphi 0, %s68
    %s71 = sphi 0, %s70
    %s85 = sphi 0, %s71
    %s89 = sphi 0, %s89
    %s91 = sphi 0, %s89
    %s92 = sphi 0, %s91
    %s106 = sphi 0, %s92
    %s110 = sphi 0, %s110
    %s112 = sphi 0, %s110
    %s113 = sphi 0, %s112
    %s127 = sphi 0, %s113
    %s131 = sphi 0, %s131
    %s133 = sphi 0, %s131
    %s134 = sphi 0, %s133
    %s148 = sphi 0, %s134
    %s152 = sphi 0, %s152
    %s154 = sphi 0, %s152
    %s155 = sphi 0, %s154
    %s169 = sphi 0, %s155
    %s175 = sphi 0, %s177
    %s178 = sphi 0, %s175
    %s179 = sphi 0, %s178
    %s195 = sphi 0, %s179
  $region4: #{recursive_block.1} parent=0 // loop_header_branch
    %16 = sbr.rel (%p14) target = $region8
  $region5: #{recursive_block.1} parent=0 // loop_body
    %s18 = ssub.s32 %s13, 1
    %s19 = ssub.s32 %s13, 2
    %s20 = sadd.s32 %s13, 1
    %s21 = ssub.s32 %s13, %s20
    %p22 = scmp.eq.s32.totalorder %s21, 0
    %s24 = sadd.s32 %s23, 1
    %s25 = scalar_select %p22, %s23, %s24
    %p28 = pneg %p22
    %p29 = scmp.eq.s32.totalorder %s13, 1
    %p30 = por %p28, %p29
    %p31 = scmp.ne.s32.totalorder %s23, %s26
    %p32 = scmp.eq.s32.totalorder %s13, 0
    %p33 = por %p31, %p32
    %p34 = scmp.ne.s32.totalorder %s23, %s26
    %p35 = scmp.eq.s32.totalorder %s18, 1
    %p36 = por %p34, %p35
    %p37 = scmp.ne.s32.totalorder %s26, %s27
    %p38 = scmp.eq.s32.totalorder %s18, 0
    %p39 = por %p37, %p38
    %p40 = scmp.ne.s32.totalorder %s26, %s27
    %p41 = scmp.eq.s32.totalorder %s19, 1
    %p42 = por %p40, %p41
    %p44 = scmp.ne.s32.totalorder %s27, %s43
    %p45 = scmp.eq.s32.totalorder %s19, 0
    %p46 = por %p44, %p45
    %s48 = sadd.s32 %s47, 1
    %p51 = scmp.eq.s32.totalorder %s13, 1
    %p52 = scmp.ne.s32.totalorder %s47, %s49
    %p53 = scmp.eq.s32.totalorder %s13, 0
    %p54 = por %p52, %p53
    %p55 = scmp.ne.s32.totalorder %s47, %s49
    %p56 = scmp.eq.s32.totalorder %s18, 1
    %p57 = por %p55, %p56
    %p58 = scmp.ne.s32.totalorder %s49, %s50
    %p59 = scmp.eq.s32.totalorder %s18, 0
    %p60 = por %p58, %p59
    %p61 = scmp.ne.s32.totalorder %s49, %s50
    %p62 = scmp.eq.s32.totalorder %s19, 1
    %p63 = por %p61, %p62
    %p65 = scmp.ne.s32.totalorder %s50, %s64
    %p66 = scmp.eq.s32.totalorder %s19, 0
    %p67 = por %p65, %p66
    %s69 = sadd.s32 %s68, 1
    %p72 = scmp.eq.s32.totalorder %s13, 1
    %p73 = scmp.ne.s32.totalorder %s68, %s70
    %p74 = scmp.eq.s32.totalorder %s13, 0
    %p75 = por %p73, %p74
    %p76 = scmp.ne.s32.totalorder %s68, %s70
    %p77 = scmp.eq.s32.totalorder %s18, 1
    %p78 = por %p76, %p77
    %p79 = scmp.ne.s32.totalorder %s70, %s71
    %p80 = scmp.eq.s32.totalorder %s18, 0
    %p81 = por %p79, %p80
    %p82 = scmp.ne.s32.totalorder %s70, %s71
    %p83 = scmp.eq.s32.totalorder %s19, 1
    %p84 = por %p82, %p83
    %p86 = scmp.ne.s32.totalorder %s71, %s85
    %p87 = scmp.eq.s32.totalorder %s19, 0
    %p88 = por %p86, %p87
    %s90 = sadd.s32 %s89, 1
    %p93 = scmp.eq.s32.totalorder %s13, 1
    %p94 = scmp.ne.s32.totalorder %s89, %s91
    %p95 = scmp.eq.s32.totalorder %s13, 0
    %p96 = por %p94, %p95
    %p97 = scmp.ne.s32.totalorder %s89, %s91
    %p98 = scmp.eq.s32.totalorder %s18, 1
    %p99 = por %p97, %p98
    %p100 = scmp.ne.s32.totalorder %s91, %s92
    %p101 = scmp.eq.s32.totalorder %s18, 0
    %p102 = por %p100, %p101
    %p103 = scmp.ne.s32.totalorder %s91, %s92
    %p104 = scmp.eq.s32.totalorder %s19, 1
    %p105 = por %p103, %p104
    %p107 = scmp.ne.s32.totalorder %s92, %s106
    %p108 = scmp.eq.s32.totalorder %s19, 0
    %p109 = por %p107, %p108
    %s111 = sadd.s32 %s110, 1
    %p114 = scmp.eq.s32.totalorder %s13, 1
    %p115 = scmp.ne.s32.totalorder %s110, %s112
    %p116 = scmp.eq.s32.totalorder %s13, 0
    %p117 = por %p115, %p116
    %p118 = scmp.ne.s32.totalorder %s110, %s112
    %p119 = scmp.eq.s32.totalorder %s18, 1
    %p120 = por %p118, %p119
    %p121 = scmp.ne.s32.totalorder %s112, %s113
    %p122 = scmp.eq.s32.totalorder %s18, 0
    %p123 = por %p121, %p122
    %p124 = scmp.ne.s32.totalorder %s112, %s113
    %p125 = scmp.eq.s32.totalorder %s19, 1
    %p126 = por %p124, %p125
    %p128 = scmp.ne.s32.totalorder %s113, %s127
    %p129 = scmp.eq.s32.totalorder %s19, 0
    %p130 = por %p128, %p129
    %s132 = sadd.s32 %s131, 1
    %p135 = scmp.eq.s32.totalorder %s13, 1
    %p136 = scmp.ne.s32.totalorder %s131, %s133
    %p137 = scmp.eq.s32.totalorder %s13, 0
    %p138 = por %p136, %p137
    %p139 = scmp.ne.s32.totalorder %s131, %s133
    %p140 = scmp.eq.s32.totalorder %s18, 1
    %p141 = por %p139, %p140
    %p142 = scmp.ne.s32.totalorder %s133, %s134
    %p143 = scmp.eq.s32.totalorder %s18, 0
    %p144 = por %p142, %p143
    %p145 = scmp.ne.s32.totalorder %s133, %s134
    %p146 = scmp.eq.s32.totalorder %s19, 1
    %p147 = por %p145, %p146
    %p149 = scmp.ne.s32.totalorder %s134, %s148
    %p150 = scmp.eq.s32.totalorder %s19, 0
    %p151 = por %p149, %p150
    %s153 = sadd.s32 %s152, 1
    %p156 = scmp.eq.s32.totalorder %s13, 1
    %p157 = scmp.ne.s32.totalorder %s152, %s154
    %p158 = scmp.eq.s32.totalorder %s13, 0
    %p159 = por %p157, %p158
    %p160 = scmp.ne.s32.totalorder %s152, %s154
    %p161 = scmp.eq.s32.totalorder %s18, 1
    %p162 = por %p160, %p161
    %p163 = scmp.ne.s32.totalorder %s154, %s155
    %p164 = scmp.eq.s32.totalorder %s18, 0
    %p165 = por %p163, %p164
    %p166 = scmp.ne.s32.totalorder %s154, %s155
    %p167 = scmp.eq.s32.totalorder %s19, 1
    %p168 = por %p166, %p167
    %p170 = scmp.ne.s32.totalorder %s155, %s169
    %p171 = scmp.eq.s32.totalorder %s19, 0
    %p172 = por %p170, %p171
    %s173 = ssub.s32 %s13, %s20
    %p174 = scmp.eq.s32.totalorder %s173, 0
    %s176 = sadd.s32 %s175, 1
    %s177 = scalar_select %p174, %s175, %s176
    %p180 = pneg %p174
    %p181 = scmp.eq.s32.totalorder %s13, 1
    %p182 = por %p180, %p181
    %p183 = scmp.ne.s32.totalorder %s175, %s178
    %p184 = scmp.eq.s32.totalorder %s13, 0
    %p185 = por %p183, %p184
    %p186 = scmp.ne.s32.totalorder %s175, %s178
    %p187 = scmp.eq.s32.totalorder %s18, 1
    %p188 = por %p186, %p187
    %p189 = scmp.ne.s32.totalorder %s178, %s179
    %p190 = scmp.eq.s32.totalorder %s18, 0
    %p191 = por %p189, %p190
    %p192 = scmp.ne.s32.totalorder %s178, %s179
    %p193 = scmp.eq.s32.totalorder %s19, 1
    %p194 = por %p192, %p193
    %p196 = scmp.ne.s32.totalorder %s179, %s195
    %p197 = scmp.eq.s32.totalorder %s19, 0
    %p198 = por %p196, %p197
    %p199 = scmp.le.s32.totalorder 1, %s13
    %p200 = scmp.lt.s32.totalorder %s13, 3
    %p201 = pnand %p199, %p200
    %p202 = pneg %p201
    // Predicated region
    $region9: #{recursive_block.1} parent=5 // pred_check
      _
    $region10: #{recursive_block.1} parent=5 // pred_check_branch
      %204 = sbr.rel (%p201) target = $region12
    $region11: #{recursive_block.1} parent=5 // pred_region
      %s205 = ssub.s32 %s13, 1
      // Predicated region
      $region13: #{recursive_block.1} parent=11 // pred_check
        %p206 = pneg %p60
      $region14: #{recursive_block.1} parent=11 // pred_check_branch
        %208 = sbr.rel (%p206) target = $region16
      $region15: #{recursive_block.1} parent=11 // pred_region
        _
      $region16: #{recursive_block.1} parent=11 // pred_fallthru
        _
      // Predicated region
      $region17: #{recursive_block.1} parent=11 // pred_check
        %p209 = pneg %p81
      $region18: #{recursive_block.1} parent=11 // pred_check_branch
        %211 = sbr.rel (%p209) target = $region20
      $region19: #{recursive_block.1} parent=11 // pred_region
        _
      $region20: #{recursive_block.1} parent=11 // pred_fallthru
        _
      // Predicated region
      $region21: #{recursive_block.1} parent=11 // pred_check
        %p212 = pneg %p102
      $region22: #{recursive_block.1} parent=11 // pred_check_branch
        %214 = sbr.rel (%p212) target = $region24
      $region23: #{recursive_block.1} parent=11 // pred_region
        _
      $region24: #{recursive_block.1} parent=11 // pred_fallthru
        _
      // Predicated region
      $region25: #{recursive_block.1} parent=11 // pred_check
        %p215 = pneg %p123
      $region26: #{recursive_block.1} parent=11 // pred_check_branch
        %217 = sbr.rel (%p215) target = $region28
      $region27: #{recursive_block.1} parent=11 // pred_region
        _
      $region28: #{recursive_block.1} parent=11 // pred_fallthru
        _
      // Predicated region
      $region29: #{recursive_block.1} parent=11 // pred_check
        %p218 = pneg %p144
      $region30: #{recursive_block.1} parent=11 // pred_check_branch
        %220 = sbr.rel (%p218) target = $region32
      $region31: #{recursive_block.1} parent=11 // pred_region
        _
      $region32: #{recursive_block.1} parent=11 // pred_fallthru
        _
      // Predicated region
      $region33: #{recursive_block.1} parent=11 // pred_check
        %p221 = pneg %p165
      $region34: #{recursive_block.1} parent=11 // pred_check_branch
        %223 = sbr.rel (%p221) target = $region36
      $region35: #{recursive_block.1} parent=11 // pred_region
        _
      $region36: #{recursive_block.1} parent=11 // pred_fallthru
        _
    $region12: #{recursive_block.1} parent=5 // pred_fallthru
      _
    %p224 = scmp.lt.s32.totalorder %s13, 2
    // Predicated region
    $region37: #{recursive_block.1} parent=5 // pred_check
      %p225 = pneg %p224
    $region38: #{recursive_block.1} parent=5 // pred_check_branch
      %227 = sbr.rel (%p225) target = $region40
    $region39: #{recursive_block.1} parent=5 // pred_region
      // Predicated region
      $region41: #{recursive_block.1} parent=39 // pred_check
        %p228 = pneg %p33
      $region42: #{recursive_block.1} parent=39 // pred_check_branch
        %230 = sbr.rel (%p228) target = $region44
      $region43: #{recursive_block.1} parent=39 // pred_region
        %p231 = scmp.lt.s32.totalorder %s13, 1
        %s232 = scalar_select %p231, %s13, 1
        %s233 = smul.addr %s232, 2
        %s234 = smul.addr %s233, 4
        %s235 = scalar_lea.vmem %s0, %s234
      $region44: #{recursive_block.1} parent=39 // pred_fallthru
        _
    $region40: #{recursive_block.1} parent=5 // pred_fallthru
      _
    %p236 = scmp.le.s32.totalorder 1, %s13
    %p237 = scmp.lt.s32.totalorder %s13, 3
    %p238 = pnand %p236, %p237
    %p239 = pneg %p238
    // Predicated region
    $region45: #{recursive_block.1} parent=5 // pred_check
      _
    $region46: #{recursive_block.1} parent=5 // pred_check_branch
      %241 = sbr.rel (%p238) target = $region48
    $region47: #{recursive_block.1} parent=5 // pred_region
      %s242 = ssub.s32 %s13, 1
      %p243 = scmp.lt.s32.totalorder %s18, 1
      %s244 = scalar_select %p243, %s18, 1
      %s245 = smul.addr %s244, 2
      %s246 = smul.addr %s245, 4
      %s247 = scalar_lea.vmem %s0, %s246
      %p248 = pneg %p39
      %p249 = pneg %p36
      %p250 = pneg %p60
      %p251 = pneg %p57
      %p252 = pneg %p81
      %p253 = pneg %p78
      %p254 = pneg %p102
      %p255 = pneg %p99
      %p256 = pneg %p123
      %p257 = pneg %p120
      %p258 = pneg %p144
      %p259 = pneg %p141
      %p260 = pneg %p165
      %p261 = pneg %p162
      %p262 = pneg %p191
      %p263 = pneg %p188
      %p264 = scmp.lt.s32.totalorder %s18, 1
      %s265 = scalar_select %p264, %s18, 1
      %s266 = smul.addr %s265, 2
      %s267 = smul.addr %s266, 4
      %s268 = scalar_lea.vmem %s7, %s267
      %p269 = scmp.lt.s32.totalorder %s18, 1
      %s270 = scalar_select %p269, %s18, 1
      %s271 = smul.addr %s270, 2
      %s272 = smul.addr %s271, 4
      %s273 = scalar_lea.vmem %s0, %s272
      %p274 = scmp.lt.s32.totalorder %s18, 1
      %s275 = scalar_select %p274, %s18, 1
      %s276 = smul.addr %s275, 2
      %s277 = smul.addr %s276, 4
      %s278 = scalar_lea.vmem %s7, %s277
      %v279 = vld [vmem:[%s273] sm:$0xff]
      %v281 = vcombine.high %v279, %v279
      %283 = vxpose.xlu0.b32.start [1/16] %v279, 128
      %284 = vxpose.xlu0.b32.cont [2/16] 0.0, 128
      %285 = vxpose.xlu0.b32.cont [3/16] 0.0, 128
      %286 = vxpose.xlu0.b32.cont [4/16] 0.0, 128
      %287 = vxpose.xlu0.b32.cont [5/16] 0.0, 128
      %288 = vxpose.xlu0.b32.cont [6/16] 0.0, 128
      %289 = vxpose.xlu0.b32.cont [7/16] 0.0, 128
      %290 = vxpose.xlu0.b32.cont [8/16] 0.0, 128
      %291 = vxpose.xlu0.b32.cont [9/16] 0.0, 128
      %292 = vxpose.xlu0.b32.cont [10/16] 0.0, 128
      %293 = vxpose.xlu0.b32.cont [11/16] 0.0, 128
      %294 = vxpose.xlu0.b32.cont [12/16] 0.0, 128
      %295 = vxpose.xlu0.b32.cont [13/16] 0.0, 128
      %296 = vxpose.xlu0.b32.cont [14/16] 0.0, 128
      %297 = vxpose.xlu0.b32.cont [15/16] 0.0, 128
      %298 = vxpose.xlu0.b32.end [16/16] 0.0, 128
      %v299 = vpop.trf.xlu0
      %v300 = vpop.trf.xlu0
      %v301 = vpop.trf.xlu0
      %v302 = vpop.trf.xlu0
      %v303 = vpop.trf.xlu0
      %v304 = vpop.trf.xlu0
      %v305 = vpop.trf.xlu0
      %v306 = vpop.trf.xlu0
      %v307 = vpop.trf.xlu0
      %v308 = vpop.trf.xlu0
      %v309 = vpop.trf.xlu0
      %v310 = vpop.trf.xlu0
      %v311 = vpop.trf.xlu0
      %v312 = vpop.trf.xlu0
      %v313 = vpop.trf.xlu0
      %v314 = vpop.trf.xlu0
      %315 = vxpose.xlu0.b32.start [1/16] %v281, 128
      %316 = vxpose.xlu0.b32.cont [2/16] 0.0, 128
      %317 = vxpose.xlu0.b32.cont [3/16] 0.0, 128
      %318 = vxpose.xlu0.b32.cont [4/16] 0.0, 128
      %319 = vxpose.xlu0.b32.cont [5/16] 0.0, 128
      %320 = vxpose.xlu0.b32.cont [6/16] 0.0, 128
      %321 = vxpose.xlu0.b32.cont [7/16] 0.0, 128
      %322 = vxpose.xlu0.b32.cont [8/16] 0.0, 128
      %323 = vxpose.xlu0.b32.cont [9/16] 0.0, 128
      %324 = vxpose.xlu0.b32.cont [10/16] 0.0, 128
      %325 = vxpose.xlu0.b32.cont [11/16] 0.0, 128
      %326 = vxpose.xlu0.b32.cont [12/16] 0.0, 128
      %327 = vxpose.xlu0.b32.cont [13/16] 0.0, 128
      %328 = vxpose.xlu0.b32.cont [14/16] 0.0, 128
      %329 = vxpose.xlu0.b32.cont [15/16] 0.0, 128
      %330 = vxpose.xlu0.b32.end [16/16] 0.0, 128
      %v331 = vpop.trf.xlu0
      %v332 = vpop.trf.xlu0
      %v333 = vpop.trf.xlu0
      %v334 = vpop.trf.xlu0
      %v335 = vpop.trf.xlu0
      %v336 = vpop.trf.xlu0
      %v337 = vpop.trf.xlu0
      %v338 = vpop.trf.xlu0
      %v339 = vpop.trf.xlu0
      %v340 = vpop.trf.xlu0
      %v341 = vpop.trf.xlu0
      %v342 = vpop.trf.xlu0
      %v343 = vpop.trf.xlu0
      %v344 = vpop.trf.xlu0
      %v345 = vpop.trf.xlu0
      %v346 = vpop.trf.xlu0
      %vm347 = vcmask 31744
      %348 = vst.msk [vmem:[#allocation2] sm:$0xff] %vm347, 0.0
      %349 = vst.msk [vmem:[#allocation2 + $0x8] sm:$0xff] %vm347, 0.0
      %vm350 = vcmask 25600
      %351 = vst.msk [vmem:[#allocation2 + $0x10] sm:$0x3] %vm350, 0.0
      %s352 = scalar_lea.vmem [#allocation2], 408
      %353 = vst.msk [vmem:[%s352] sm:$0xff] %vm347, 0.0
      %354 = vst.msk [vmem:[%s352 + $0x8] sm:$0xff] %vm347, 0.0
      %355 = vst.msk [vmem:[%s352 + $0x10] sm:$0x3] %vm350, 0.0
      %vm356 = vcmask 24576
      %357 = vst.msk [vmem:[#allocation2] sm:$0x1] %vm356, 0.0
      %358 = vst.msk [vmem:[#allocation2 + $0x18] sm:$0x1] %vm356, 0.0
      %359 = vst.msk [vmem:[#allocation2 + $0x30] sm:$0x1] %vm356, 0.0
      %360 = vst.msk [vmem:[#allocation2 + $0x48] sm:$0x1] %vm356, 0.0
      %361 = vst.msk [vmem:[#allocation2 + $0x60] sm:$0x1] %vm356, 0.0
      %362 = vst.msk [vmem:[#allocation2 + $0x78] sm:$0x1] %vm356, 0.0
      %363 = vst.msk [vmem:[#allocation2 + $0x90] sm:$0x1] %vm356, 0.0
      %364 = vst.msk [vmem:[#allocation2 + $0xa8] sm:$0x1] %vm356, 0.0
      %365 = vst.msk [vmem:[#allocation2 + $0xc0] sm:$0x1] %vm356, 0.0
      %366 = vst.msk [vmem:[#allocation2 + $0xd8] sm:$0x1] %vm356, 0.0
      %367 = vst.msk [vmem:[#allocation2 + $0xf0] sm:$0x1] %vm356, 0.0
      %368 = vst.msk [vmem:[#allocation2 + $0x108] sm:$0x1] %vm356, 0.0
      %369 = vst.msk [vmem:[#allocation2 + $0x120] sm:$0x1] %vm356, 0.0
      %370 = vst.msk [vmem:[#allocation2 + $0x138] sm:$0x1] %vm356, 0.0
      %371 = vst.msk [vmem:[#allocation2 + $0x150] sm:$0x1] %vm356, 0.0
      %372 = vst.msk [vmem:[#allocation2 + $0x168] sm:$0x1] %vm356, 0.0
      %373 = vst.msk [vmem:[#allocation2 + $0x180] sm:$0x1] %vm356, 0.0
      %374 = vst.msk [vmem:[#allocation2 + $0x198] sm:$0x1] %vm356, 0.0
      %375 = vst.msk [vmem:[#allocation2 + $0x11] sm:$0x1] %vm356, 0.0
      %376 = vst.msk [vmem:[#allocation2 + $0x29] sm:$0x1] %vm356, 0.0
      %377 = vst.msk [vmem:[#allocation2 + $0x41] sm:$0x1] %vm356, 0.0
      %378 = vst.msk [vmem:[#allocation2 + $0x59] sm:$0x1] %vm356, 0.0
      %379 = vst.msk [vmem:[#allocation2 + $0x71] sm:$0x1] %vm356, 0.0
      %380 = vst.msk [vmem:[#allocation2 + $0x89] sm:$0x1] %vm356, 0.0
      %381 = vst.msk [vmem:[#allocation2 + $0xa1] sm:$0x1] %vm356, 0.0
      %382 = vst.msk [vmem:[#allocation2 + $0xb9] sm:$0x1] %vm356, 0.0
      %383 = vst.msk [vmem:[#allocation2 + $0xd1] sm:$0x1] %vm356, 0.0
      %384 = vst.msk [vmem:[#allocation2 + $0xe9] sm:$0x1] %vm356, 0.0
      %385 = vst.msk [vmem:[#allocation2 + $0x101] sm:$0x1] %vm356, 0.0
      %386 = vst.msk [vmem:[#allocation2 + $0x119] sm:$0x1] %vm356, 0.0
      %387 = vst.msk [vmem:[#allocation2 + $0x131] sm:$0x1] %vm356, 0.0
      %388 = vst.msk [vmem:[#allocation2 + $0x149] sm:$0x1] %vm356, 0.0
      %389 = vst.msk [vmem:[#allocation2 + $0x161] sm:$0x1] %vm356, 0.0
      %390 = vst.msk [vmem:[#allocation2 + $0x179] sm:$0x1] %vm356, 0.0
      %391 = vst.msk [vmem:[#allocation2 + $0x191] sm:$0x1] %vm356, 0.0
      %392 = vst.msk [vmem:[#allocation2 + $0x1a9] sm:$0x1] %vm356, 0.0
      %s393 = scalar_lea.vmem [#allocation2], 24
      %394 = vst.msk [vmem:[%s393 + $0x1] sm:$0xff] %vm347, %v299
      %395 = vst.msk [vmem:[%s393 + $0x9] sm:$0xff] %vm347, %v300
      %396 = vst.msk [vmem:[%s393 + $0x19] sm:$0xff] %vm347, %v301
      %397 = vst.msk [vmem:[%s393 + $0x21] sm:$0xff] %vm347, %v302
      %398 = vst.msk [vmem:[%s393 + $0x31] sm:$0xff] %vm347, %v303
      %399 = vst.msk [vmem:[%s393 + $0x39] sm:$0xff] %vm347, %v304
      %400 = vst.msk [vmem:[%s393 + $0x49] sm:$0xff] %vm347, %v305
      %401 = vst.msk [vmem:[%s393 + $0x51] sm:$0xff] %vm347, %v306
      %402 = vst.msk [vmem:[%s393 + $0x61] sm:$0xff] %vm347, %v307
      %403 = vst.msk [vmem:[%s393 + $0x69] sm:$0xff] %vm347, %v308
      %404 = vst.msk [vmem:[%s393 + $0x79] sm:$0xff] %vm347, %v309
      %405 = vst.msk [vmem:[%s393 + $0x81] sm:$0xff] %vm347, %v310
      %406 = vst.msk [vmem:[%s393 + $0x91] sm:$0xff] %vm347, %v311
      %407 = vst.msk [vmem:[%s393 + $0x99] sm:$0xff] %vm347, %v312
      %408 = vst.msk [vmem:[%s393 + $0xa9] sm:$0xff] %vm347, %v313
      %409 = vst.msk [vmem:[%s393 + $0xb1] sm:$0xff] %vm347, %v314
      %410 = vst.msk [vmem:[%s393 + $0xc1] sm:$0xff] %vm347, %v331
      %411 = vst.msk [vmem:[%s393 + $0xc9] sm:$0xff] %vm347, %v332
      %412 = vst.msk [vmem:[%s393 + $0xd9] sm:$0xff] %vm347, %v333
      %413 = vst.msk [vmem:[%s393 + $0xe1] sm:$0xff] %vm347, %v334
      %414 = vst.msk [vmem:[%s393 + $0xf1] sm:$0xff] %vm347, %v335
      %415 = vst.msk [vmem:[%s393 + $0xf9] sm:$0xff] %vm347, %v336
      %416 = vst.msk [vmem:[%s393 + $0x109] sm:$0xff] %vm347, %v337
      %417 = vst.msk [vmem:[%s393 + $0x111] sm:$0xff] %vm347, %v338
      %418 = vst.msk [vmem:[%s393 + $0x121] sm:$0xff] %vm347, %v339
      %419 = vst.msk [vmem:[%s393 + $0x129] sm:$0xff] %vm347, %v340
      %420 = vst.msk [vmem:[%s393 + $0x139] sm:$0xff] %vm347, %v341
      %421 = vst.msk [vmem:[%s393 + $0x141] sm:$0xff] %vm347, %v342
      %422 = vst.msk [vmem:[%s393 + $0x151] sm:$0xff] %vm347, %v343
      %423 = vst.msk [vmem:[%s393 + $0x159] sm:$0xff] %vm347, %v344
      %424 = vst.msk [vmem:[%s393 + $0x169] sm:$0xff] %vm347, %v345
      %425 = vst.msk [vmem:[%s393 + $0x171] sm:$0xff] %vm347, %v346
      %v426 = vld [vmem:[#allocation2] sm:$0xff]
      %v427 = vld [vmem:[#allocation2 + $0x8] sm:$0xff]
      %v428 = vld [vmem:[#allocation2 + $0x10] sm:$0x3]
      %v429 = vld [vmem:[#allocation2 + $0x18] sm:$0xff]
      %v430 = vld [vmem:[#allocation2 + $0x20] sm:$0xff]
      %v431 = vld [vmem:[#allocation2 + $0x28] sm:$0x3]
      %v432 = vld [vmem:[#allocation2 + $0x30] sm:$0xff]
      %v433 = vld [vmem:[#allocation2 + $0x38] sm:$0xff]
      %v434 = vld [vmem:[#allocation2 + $0x40] sm:$0x3]
      %v435 = vld [vmem:[#allocation2 + $0x48] sm:$0xff]
      %v436 = vld [vmem:[#allocation2 + $0x50] sm:$0xff]
      %v437 = vld [vmem:[#allocation2 + $0x58] sm:$0x3]
      %v438 = vld [vmem:[#allocation2 + $0x60] sm:$0xff]
      %v439 = vld [vmem:[#allocation2 + $0x68] sm:$0xff]
      %v440 = vld [vmem:[#allocation2 + $0x70] sm:$0x3]
      %v441 = vld [vmem:[#allocation2 + $0x78] sm:$0xff]
      %v442 = vld [vmem:[#allocation2 + $0x80] sm:$0xff]
      %v443 = vld [vmem:[#allocation2 + $0x88] sm:$0x3]
      %v444 = vld [vmem:[#allocation2 + $0x90] sm:$0xff]
      %v445 = vld [vmem:[#allocation2 + $0x98] sm:$0xff]
      %v446 = vld [vmem:[#allocation2 + $0xa0] sm:$0x3]
      %v447 = vld [vmem:[#allocation2 + $0xa8] sm:$0xff]
      %v448 = vld [vmem:[#allocation2 + $0xb0] sm:$0xff]
      %v449 = vld [vmem:[#allocation2 + $0xb8] sm:$0x3]
      %v450 = vld [vmem:[#allocation2 + $0xc0] sm:$0xff]
      %v451 = vld [vmem:[#allocation2 + $0xc8] sm:$0xff]
      %v452 = vld [vmem:[#allocation2 + $0xd0] sm:$0x3]
      %v453 = vld [vmem:[#allocation2 + $0xd8] sm:$0xff]
      %v454 = vld [vmem:[#allocation2 + $0xe0] sm:$0xff]
      %v455 = vld [vmem:[#allocation2 + $0xe8] sm:$0x3]
      %v456 = vld [vmem:[#allocation2 + $0xf0] sm:$0xff]
      %v457 = vld [vmem:[#allocation2 + $0xf8] sm:$0xff]
      %v458 = vld [vmem:[#allocation2 + $0x100] sm:$0x3]
      %v459 = vld [vmem:[#allocation2 + $0x108] sm:$0xff]
      %v460 = vld [vmem:[#allocation2 + $0x110] sm:$0xff]
      %v461 = vld [vmem:[#allocation2 + $0x118] sm:$0x3]
      %v462 = vld [vmem:[#allocation2 + $0x120] sm:$0xff]
      %v463 = vld [vmem:[#allocation2 + $0x128] sm:$0xff]
      %v464 = vld [vmem:[#allocation2 + $0x130] sm:$0x3]
      %v465 = vld [vmem:[#allocation2 + $0x138] sm:$0xff]
      %v466 = vld [vmem:[#allocation2 + $0x140] sm:$0xff]
      %v467 = vld [vmem:[#allocation2 + $0x148] sm:$0x3]
      %v468 = vld [vmem:[#allocation2 + $0x150] sm:$0xff]
      %v469 = vld [vmem:[#allocation2 + $0x158] sm:$0xff]
      %v470 = vld [vmem:[#allocation2 + $0x160] sm:$0x3]
      %v471 = vld [vmem:[#allocation2 + $0x168] sm:$0xff]
      %v472 = vld [vmem:[#allocation2 + $0x170] sm:$0xff]
      %v473 = vld [vmem:[#allocation2 + $0x178] sm:$0x3]
      %v474 = vld [vmem:[#allocation2 + $0x180] sm:$0xff]
      %v475 = vld [vmem:[#allocation2 + $0x188] sm:$0xff]
      %v476 = vld [vmem:[#allocation2 + $0x190] sm:$0x3]
      %v477 = vld [vmem:[#allocation2 + $0x198] sm:$0xff]
      %v478 = vld [vmem:[#allocation2 + $0x1a0] sm:$0xff]
      %v479 = vld [vmem:[#allocation2 + $0x1a8] sm:$0x3]
      %vm528 = vcmask 1046528
      %v529 = vrot.slane %v426, 1
      %v530 = vrot.slane %v427, 1
      %v531 = vsel %vm528, %v529, %v530
      %v532 = vrot.slane %v428, 1
      %v533 = vsel %vm528, %v530, %v532
      %v534 = vrot.slane %v429, 1
      %v535 = vrot.slane %v430, 1
      %v536 = vsel %vm528, %v534, %v535
      %v537 = vrot.slane %v431, 1
      %v538 = vsel %vm528, %v535, %v537
      %v539 = vrot.slane %v432, 1
      %v540 = vrot.slane %v433, 1
      %v541 = vsel %vm528, %v539, %v540
      %v542 = vrot.slane %v434, 1
      %v543 = vsel %vm528, %v540, %v542
      %v544 = vrot.slane %v435, 1
      %v545 = vrot.slane %v436, 1
      %v546 = vsel %vm528, %v544, %v545
      %v547 = vrot.slane %v437, 1
      %v548 = vsel %vm528, %v545, %v547
      %v549 = vrot.slane %v438, 1
      %v550 = vrot.slane %v439, 1
      %v551 = vsel %vm528, %v549, %v550
      %v552 = vrot.slane %v440, 1
      %v553 = vsel %vm528, %v550, %v552
      %v554 = vrot.slane %v441, 1
      %v555 = vrot.slane %v442, 1
      %v556 = vsel %vm528, %v554, %v555
      %v557 = vrot.slane %v443, 1
      %v558 = vsel %vm528, %v555, %v557
      %v559 = vrot.slane %v444, 1
      %v560 = vrot.slane %v445, 1
      %v561 = vsel %vm528, %v559, %v560
      %v562 = vrot.slane %v446, 1
      %v563 = vsel %vm528, %v560, %v562
      %v564 = vrot.slane %v447, 1
      %v565 = vrot.slane %v448, 1
      %v566 = vsel %vm528, %v564, %v565
      %v567 = vrot.slane %v449, 1
      %v568 = vsel %vm528, %v565, %v567
      %v569 = vrot.slane %v450, 1
      %v570 = vrot.slane %v451, 1
      %v571 = vsel %vm528, %v569, %v570
      %v572 = vrot.slane %v452, 1
      %v573 = vsel %vm528, %v570, %v572
      %v574 = vrot.slane %v453, 1
      %v575 = vrot.slane %v454, 1
      %v576 = vsel %vm528, %v574, %v575
      %v577 = vrot.slane %v455, 1
      %v578 = vsel %vm528, %v575, %v577
      %v579 = vrot.slane %v456, 1
      %v580 = vrot.slane %v457, 1
      %v581 = vsel %vm528, %v579, %v580
      %v582 = vrot.slane %v458, 1
      %v583 = vsel %vm528, %v580, %v582
      %v584 = vrot.slane %v459, 1
      %v585 = vrot.slane %v460, 1
      %v586 = vsel %vm528, %v584, %v585
      %v587 = vrot.slane %v461, 1
      %v588 = vsel %vm528, %v585, %v587
      %v589 = vrot.slane %v462, 1
      %v590 = vrot.slane %v463, 1
      %v591 = vsel %vm528, %v589, %v590
      %v592 = vrot.slane %v464, 1
      %v593 = vsel %vm528, %v590, %v592
      %v594 = vrot.slane %v465, 1
      %v595 = vrot.slane %v466, 1
      %v596 = vsel %vm528, %v594, %v595
      %v597 = vrot.slane %v467, 1
      %v598 = vsel %vm528, %v595, %v597
      %v599 = vrot.slane %v468, 1
      %v600 = vrot.slane %v469, 1
      %v601 = vsel %vm528, %v599, %v600
      %v602 = vrot.slane %v470, 1
      %v603 = vsel %vm528, %v600, %v602
      %v604 = vrot.slane %v471, 1
      %v605 = vrot.slane %v472, 1
      %v606 = vsel %vm528, %v604, %v605
      %v607 = vrot.slane %v473, 1
      %v608 = vsel %vm528, %v605, %v607
      %609 = vrot.lane.b32.xlu0 %v531, 4
      %v610 = vpop.permute.xlu0 %609
      %611 = vrot.lane.b32.xlu0 %v533, 4
      %v612 = vpop.permute.xlu0 %611
      %613 = vrot.lane.b32.xlu0 %v536, 4
      %v614 = vpop.permute.xlu0 %613
      %615 = vrot.lane.b32.xlu0 %v538, 4
      %v616 = vpop.permute.xlu0 %615
      %617 = vrot.lane.b32.xlu0 %v541, 4
      %v618 = vpop.permute.xlu0 %617
      %619 = vrot.lane.b32.xlu0 %v543, 4
      %v620 = vpop.permute.xlu0 %619
      %621 = vrot.lane.b32.xlu0 %v546, 4
      %v622 = vpop.permute.xlu0 %621
      %623 = vrot.lane.b32.xlu0 %v548, 4
      %v624 = vpop.permute.xlu0 %623
      %625 = vrot.lane.b32.xlu0 %v551, 4
      %v626 = vpop.permute.xlu0 %625
      %627 = vrot.lane.b32.xlu0 %v553, 4
      %v628 = vpop.permute.xlu0 %627
      %629 = vrot.lane.b32.xlu0 %v556, 4
      %v630 = vpop.permute.xlu0 %629
      %631 = vrot.lane.b32.xlu0 %v558, 4
      %v632 = vpop.permute.xlu0 %631
      %633 = vrot.lane.b32.xlu0 %v561, 4
      %v634 = vpop.permute.xlu0 %633
      %635 = vrot.lane.b32.xlu0 %v563, 4
      %v636 = vpop.permute.xlu0 %635
      %637 = vrot.lane.b32.xlu0 %v566, 4
      %v638 = vpop.permute.xlu0 %637
      %639 = vrot.lane.b32.xlu0 %v568, 4
      %v640 = vpop.permute.xlu0 %639
      %641 = vrot.lane.b32.xlu0 %v571, 4
      %v642 = vpop.permute.xlu0 %641
      %643 = vrot.lane.b32.xlu0 %v573, 4
      %v644 = vpop.permute.xlu0 %643
      %645 = vrot.lane.b32.xlu0 %v576, 4
      %v646 = vpop.permute.xlu0 %645
      %647 = vrot.lane.b32.xlu0 %v578, 4
      %v648 = vpop.permute.xlu0 %647
      %649 = vrot.lane.b32.xlu0 %v581, 4
      %v650 = vpop.permute.xlu0 %649
      %651 = vrot.lane.b32.xlu0 %v583, 4
      %v652 = vpop.permute.xlu0 %651
      %653 = vrot.lane.b32.xlu0 %v586, 4
      %v654 = vpop.permute.xlu0 %653
      %655 = vrot.lane.b32.xlu0 %v588, 4
      %v656 = vpop.permute.xlu0 %655
      %657 = vrot.lane.b32.xlu0 %v591, 4
      %v658 = vpop.permute.xlu0 %657
      %659 = vrot.lane.b32.xlu0 %v593, 4
      %v660 = vpop.permute.xlu0 %659
      %661 = vrot.lane.b32.xlu0 %v596, 4
      %v662 = vpop.permute.xlu0 %661
      %663 = vrot.lane.b32.xlu0 %v598, 4
      %v664 = vpop.permute.xlu0 %663
      %665 = vrot.lane.b32.xlu0 %v601, 4
      %v666 = vpop.permute.xlu0 %665
      %667 = vrot.lane.b32.xlu0 %v603, 4
      %v668 = vpop.permute.xlu0 %667
      %669 = vrot.lane.b32.xlu0 %v606, 4
      %v670 = vpop.permute.xlu0 %669
      %671 = vrot.lane.b32.xlu0 %v608, 4
      %v672 = vpop.permute.xlu0 %671
      %vm705 = vcmask 1045504
      %v706 = vrot.slane %v426, 2
      %v707 = vrot.slane %v427, 2
      %v708 = vsel %vm705, %v706, %v707
      %v709 = vrot.slane %v428, 2
      %v710 = vsel %vm705, %v707, %v709
      %v711 = vrot.slane %v429, 2
      %v712 = vrot.slane %v430, 2
      %v713 = vsel %vm705, %v711, %v712
      %v714 = vrot.slane %v431, 2
      %v715 = vsel %vm705, %v712, %v714
      %v716 = vrot.slane %v432, 2
      %v717 = vrot.slane %v433, 2
      %v718 = vsel %vm705, %v716, %v717
      %v719 = vrot.slane %v434, 2
      %v720 = vsel %vm705, %v717, %v719
      %v721 = vrot.slane %v435, 2
      %v722 = vrot.slane %v436, 2
      %v723 = vsel %vm705, %v721, %v722
      %v724 = vrot.slane %v437, 2
      %v725 = vsel %vm705, %v722, %v724
      %v726 = vrot.slane %v438, 2
      %v727 = vrot.slane %v439, 2
      %v728 = vsel %vm705, %v726, %v727
      %v729 = vrot.slane %v440, 2
      %v730 = vsel %vm705, %v727, %v729
      %v731 = vrot.slane %v441, 2
      %v732 = vrot.slane %v442, 2
      %v733 = vsel %vm705, %v731, %v732
      %v734 = vrot.slane %v443, 2
      %v735 = vsel %vm705, %v732, %v734
      %v736 = vrot.slane %v444, 2
      %v737 = vrot.slane %v445, 2
      %v738 = vsel %vm705, %v736, %v737
      %v739 = vrot.slane %v446, 2
      %v740 = vsel %vm705, %v737, %v739
      %v741 = vrot.slane %v447, 2
      %v742 = vrot.slane %v448, 2
      %v743 = vsel %vm705, %v741, %v742
      %v744 = vrot.slane %v449, 2
      %v745 = vsel %vm705, %v742, %v744
      %v746 = vrot.slane %v450, 2
      %v747 = vrot.slane %v451, 2
      %v748 = vsel %vm705, %v746, %v747
      %v749 = vrot.slane %v452, 2
      %v750 = vsel %vm705, %v747, %v749
      %v751 = vrot.slane %v453, 2
      %v752 = vrot.slane %v454, 2
      %v753 = vsel %vm705, %v751, %v752
      %v754 = vrot.slane %v455, 2
      %v755 = vsel %vm705, %v752, %v754
      %v756 = vrot.slane %v456, 2
      %v757 = vrot.slane %v457, 2
      %v758 = vsel %vm705, %v756, %v757
      %v759 = vrot.slane %v458, 2
      %v760 = vsel %vm705, %v757, %v759
      %v761 = vrot.slane %v459, 2
      %v762 = vrot.slane %v460, 2
      %v763 = vsel %vm705, %v761, %v762
      %v764 = vrot.slane %v461, 2
      %v765 = vsel %vm705, %v762, %v764
      %v766 = vrot.slane %v462, 2
      %v767 = vrot.slane %v463, 2
      %v768 = vsel %vm705, %v766, %v767
      %v769 = vrot.slane %v464, 2
      %v770 = vsel %vm705, %v767, %v769
      %v771 = vrot.slane %v465, 2
      %v772 = vrot.slane %v466, 2
      %v773 = vsel %vm705, %v771, %v772
      %v774 = vrot.slane %v467, 2
      %v775 = vsel %vm705, %v772, %v774
      %v776 = vrot.slane %v468, 2
      %v777 = vrot.slane %v469, 2
      %v778 = vsel %vm705, %v776, %v777
      %v779 = vrot.slane %v470, 2
      %v780 = vsel %vm705, %v777, %v779
      %v781 = vrot.slane %v471, 2
      %v782 = vrot.slane %v472, 2
      %v783 = vsel %vm705, %v781, %v782
      %v784 = vrot.slane %v473, 2
      %v785 = vsel %vm705, %v782, %v784
      %786 = vrot.lane.b32.xlu0 %v708, 8
      %v787 = vpop.permute.xlu0 %786
      %788 = vrot.lane.b32.xlu0 %v710, 8
      %v789 = vpop.permute.xlu0 %788
      %790 = vrot.lane.b32.xlu0 %v713, 8
      %v791 = vpop.permute.xlu0 %790
      %792 = vrot.lane.b32.xlu0 %v715, 8
      %v793 = vpop.permute.xlu0 %792
      %794 = vrot.lane.b32.xlu0 %v718, 8
      %v795 = vpop.permute.xlu0 %794
      %796 = vrot.lane.b32.xlu0 %v720, 8
      %v797 = vpop.permute.xlu0 %796
      %798 = vrot.lane.b32.xlu0 %v723, 8
      %v799 = vpop.permute.xlu0 %798
      %800 = vrot.lane.b32.xlu0 %v725, 8
      %v801 = vpop.permute.xlu0 %800
      %802 = vrot.lane.b32.xlu0 %v728, 8
      %v803 = vpop.permute.xlu0 %802
      %804 = vrot.lane.b32.xlu0 %v730, 8
      %v805 = vpop.permute.xlu0 %804
      %806 = vrot.lane.b32.xlu0 %v733, 8
      %v807 = vpop.permute.xlu0 %806
      %808 = vrot.lane.b32.xlu0 %v735, 8
      %v809 = vpop.permute.xlu0 %808
      %810 = vrot.lane.b32.xlu0 %v738, 8
      %v811 = vpop.permute.xlu0 %810
      %812 = vrot.lane.b32.xlu0 %v740, 8
      %v813 = vpop.permute.xlu0 %812
      %814 = vrot.lane.b32.xlu0 %v743, 8
      %v815 = vpop.permute.xlu0 %814
      %816 = vrot.lane.b32.xlu0 %v745, 8
      %v817 = vpop.permute.xlu0 %816
      %818 = vrot.lane.b32.xlu0 %v748, 8
      %v819 = vpop.permute.xlu0 %818
      %820 = vrot.lane.b32.xlu0 %v750, 8
      %v821 = vpop.permute.xlu0 %820
      %822 = vrot.lane.b32.xlu0 %v753, 8
      %v823 = vpop.permute.xlu0 %822
      %824 = vrot.lane.b32.xlu0 %v755, 8
      %v825 = vpop.permute.xlu0 %824
      %826 = vrot.lane.b32.xlu0 %v758, 8
      %v827 = vpop.permute.xlu0 %826
      %828 = vrot.lane.b32.xlu0 %v760, 8
      %v829 = vpop.permute.xlu0 %828
      %830 = vrot.lane.b32.xlu0 %v763, 8
      %v831 = vpop.permute.xlu0 %830
      %832 = vrot.lane.b32.xlu0 %v765, 8
      %v833 = vpop.permute.xlu0 %832
      %834 = vrot.lane.b32.xlu0 %v768, 8
      %v835 = vpop.permute.xlu0 %834
      %836 = vrot.lane.b32.xlu0 %v770, 8
      %v837 = vpop.permute.xlu0 %836
      %838 = vrot.lane.b32.xlu0 %v773, 8
      %v839 = vpop.permute.xlu0 %838
      %840 = vrot.lane.b32.xlu0 %v775, 8
      %v841 = vpop.permute.xlu0 %840
      %842 = vrot.lane.b32.xlu0 %v778, 8
      %v843 = vpop.permute.xlu0 %842
      %844 = vrot.lane.b32.xlu0 %v780, 8
      %v845 = vpop.permute.xlu0 %844
      %846 = vrot.lane.b32.xlu0 %v783, 8
      %v847 = vpop.permute.xlu0 %846
      %848 = vrot.lane.b32.xlu0 %v785, 8
      %v849 = vpop.permute.xlu0 %848
      %884 = vrot.lane.b32.xlu0 %v429, 12
      %v885 = vpop.permute.xlu0 %884
      %886 = vrot.lane.b32.xlu0 %v430, 12
      %v887 = vpop.permute.xlu0 %886
      %888 = vrot.lane.b32.xlu0 %v432, 12
      %v889 = vpop.permute.xlu0 %888
      %890 = vrot.lane.b32.xlu0 %v433, 12
      %v891 = vpop.permute.xlu0 %890
      %892 = vrot.lane.b32.xlu0 %v435, 12
      %v893 = vpop.permute.xlu0 %892
      %894 = vrot.lane.b32.xlu0 %v436, 12
      %v895 = vpop.permute.xlu0 %894
      %896 = vrot.lane.b32.xlu0 %v438, 12
      %v897 = vpop.permute.xlu0 %896
      %898 = vrot.lane.b32.xlu0 %v439, 12
      %v899 = vpop.permute.xlu0 %898
      %900 = vrot.lane.b32.xlu0 %v441, 12
      %v901 = vpop.permute.xlu0 %900
      %902 = vrot.lane.b32.xlu0 %v442, 12
      %v903 = vpop.permute.xlu0 %902
      %904 = vrot.lane.b32.xlu0 %v444, 12
      %v905 = vpop.permute.xlu0 %904
      %906 = vrot.lane.b32.xlu0 %v445, 12
      %v907 = vpop.permute.xlu0 %906
      %908 = vrot.lane.b32.xlu0 %v447, 12
      %v909 = vpop.permute.xlu0 %908
      %910 = vrot.lane.b32.xlu0 %v448, 12
      %v911 = vpop.permute.xlu0 %910
      %912 = vrot.lane.b32.xlu0 %v450, 12
      %v913 = vpop.permute.xlu0 %912
      %914 = vrot.lane.b32.xlu0 %v451, 12
      %v915 = vpop.permute.xlu0 %914
      %916 = vrot.lane.b32.xlu0 %v453, 12
      %v917 = vpop.permute.xlu0 %916
      %918 = vrot.lane.b32.xlu0 %v454, 12
      %v919 = vpop.permute.xlu0 %918
      %920 = vrot.lane.b32.xlu0 %v456, 12
      %v921 = vpop.permute.xlu0 %920
      %922 = vrot.lane.b32.xlu0 %v457, 12
      %v923 = vpop.permute.xlu0 %922
      %924 = vrot.lane.b32.xlu0 %v459, 12
      %v925 = vpop.permute.xlu0 %924
      %926 = vrot.lane.b32.xlu0 %v460, 12
      %v927 = vpop.permute.xlu0 %926
      %928 = vrot.lane.b32.xlu0 %v462, 12
      %v929 = vpop.permute.xlu0 %928
      %930 = vrot.lane.b32.xlu0 %v463, 12
      %v931 = vpop.permute.xlu0 %930
      %932 = vrot.lane.b32.xlu0 %v465, 12
      %v933 = vpop.permute.xlu0 %932
      %934 = vrot.lane.b32.xlu0 %v466, 12
      %v935 = vpop.permute.xlu0 %934
      %936 = vrot.lane.b32.xlu0 %v468, 12
      %v937 = vpop.permute.xlu0 %936
      %938 = vrot.lane.b32.xlu0 %v469, 12
      %v939 = vpop.permute.xlu0 %938
      %940 = vrot.lane.b32.xlu0 %v471, 12
      %v941 = vpop.permute.xlu0 %940
      %942 = vrot.lane.b32.xlu0 %v472, 12
      %v943 = vpop.permute.xlu0 %942
      %944 = vrot.lane.b32.xlu0 %v474, 12
      %v945 = vpop.permute.xlu0 %944
      %946 = vrot.lane.b32.xlu0 %v475, 12
      %v947 = vpop.permute.xlu0 %946
      %v981 = vrot.slane %v474, 1
      %v982 = vrot.slane %v475, 1
      %v983 = vsel %vm528, %v981, %v982
      %v984 = vrot.slane %v476, 1
      %v985 = vsel %vm528, %v982, %v984
      %986 = vrot.lane.b32.xlu0 %v536, 16
      %v987 = vpop.permute.xlu0 %986
      %988 = vrot.lane.b32.xlu0 %v538, 16
      %v989 = vpop.permute.xlu0 %988
      %990 = vrot.lane.b32.xlu0 %v541, 16
      %v991 = vpop.permute.xlu0 %990
      %992 = vrot.lane.b32.xlu0 %v543, 16
      %v993 = vpop.permute.xlu0 %992
      %994 = vrot.lane.b32.xlu0 %v546, 16
      %v995 = vpop.permute.xlu0 %994
      %996 = vrot.lane.b32.xlu0 %v548, 16
      %v997 = vpop.permute.xlu0 %996
      %998 = vrot.lane.b32.xlu0 %v551, 16
      %v999 = vpop.permute.xlu0 %998
      %1000 = vrot.lane.b32.xlu0 %v553, 16
      %v1001 = vpop.permute.xlu0 %1000
      %1002 = vrot.lane.b32.xlu0 %v556, 16
      %v1003 = vpop.permute.xlu0 %1002
      %1004 = vrot.lane.b32.xlu0 %v558, 16
      %v1005 = vpop.permute.xlu0 %1004
      %1006 = vrot.lane.b32.xlu0 %v561, 16
      %v1007 = vpop.permute.xlu0 %1006
      %1008 = vrot.lane.b32.xlu0 %v563, 16
      %v1009 = vpop.permute.xlu0 %1008
      %1010 = vrot.lane.b32.xlu0 %v566, 16
      %v1011 = vpop.permute.xlu0 %1010
      %1012 = vrot.lane.b32.xlu0 %v568, 16
      %v1013 = vpop.permute.xlu0 %1012
      %1014 = vrot.lane.b32.xlu0 %v571, 16
      %v1015 = vpop.permute.xlu0 %1014
      %1016 = vrot.lane.b32.xlu0 %v573, 16
      %v1017 = vpop.permute.xlu0 %1016
      %1018 = vrot.lane.b32.xlu0 %v576, 16
      %v1019 = vpop.permute.xlu0 %1018
      %1020 = vrot.lane.b32.xlu0 %v578, 16
      %v1021 = vpop.permute.xlu0 %1020
      %1022 = vrot.lane.b32.xlu0 %v581, 16
      %v1023 = vpop.permute.xlu0 %1022
      %1024 = vrot.lane.b32.xlu0 %v583, 16
      %v1025 = vpop.permute.xlu0 %1024
      %1026 = vrot.lane.b32.xlu0 %v586, 16
      %v1027 = vpop.permute.xlu0 %1026
      %1028 = vrot.lane.b32.xlu0 %v588, 16
      %v1029 = vpop.permute.xlu0 %1028
      %1030 = vrot.lane.b32.xlu0 %v591, 16
      %v1031 = vpop.permute.xlu0 %1030
      %1032 = vrot.lane.b32.xlu0 %v593, 16
      %v1033 = vpop.permute.xlu0 %1032
      %1034 = vrot.lane.b32.xlu0 %v596, 16
      %v1035 = vpop.permute.xlu0 %1034
      %1036 = vrot.lane.b32.xlu0 %v598, 16
      %v1037 = vpop.permute.xlu0 %1036
      %1038 = vrot.lane.b32.xlu0 %v601, 16
      %v1039 = vpop.permute.xlu0 %1038
      %1040 = vrot.lane.b32.xlu0 %v603, 16
      %v1041 = vpop.permute.xlu0 %1040
      %1042 = vrot.lane.b32.xlu0 %v606, 16
      %v1043 = vpop.permute.xlu0 %1042
      %1044 = vrot.lane.b32.xlu0 %v608, 16
      %v1045 = vpop.permute.xlu0 %1044
      %1046 = vrot.lane.b32.xlu0 %v983, 16
      %v1047 = vpop.permute.xlu0 %1046
      %1048 = vrot.lane.b32.xlu0 %v985, 16
      %v1049 = vpop.permute.xlu0 %1048
      %v1082 = vrot.slane %v474, 2
      %v1083 = vrot.slane %v475, 2
      %v1084 = vsel %vm705, %v1082, %v1083
      %v1085 = vrot.slane %v476, 2
      %v1086 = vsel %vm705, %v1083, %v1085
      %1087 = vrot.lane.b32.xlu0 %v713, 20
      %v1088 = vpop.permute.xlu0 %1087
      %1089 = vrot.lane.b32.xlu0 %v715, 20
      %v1090 = vpop.permute.xlu0 %1089
      %1091 = vrot.lane.b32.xlu0 %v718, 20
      %v1092 = vpop.permute.xlu0 %1091
      %1093 = vrot.lane.b32.xlu0 %v720, 20
      %v1094 = vpop.permute.xlu0 %1093
      %1095 = vrot.lane.b32.xlu0 %v723, 20
      %v1096 = vpop.permute.xlu0 %1095
      %1097 = vrot.lane.b32.xlu0 %v725, 20
      %v1098 = vpop.permute.xlu0 %1097
      %1099 = vrot.lane.b32.xlu0 %v728, 20
      %v1100 = vpop.permute.xlu0 %1099
      %1101 = vrot.lane.b32.xlu0 %v730, 20
      %v1102 = vpop.permute.xlu0 %1101
      %1103 = vrot.lane.b32.xlu0 %v733, 20
      %v1104 = vpop.permute.xlu0 %1103
      %1105 = vrot.lane.b32.xlu0 %v735, 20
      %v1106 = vpop.permute.xlu0 %1105
      %1107 = vrot.lane.b32.xlu0 %v738, 20
      %v1108 = vpop.permute.xlu0 %1107
      %1109 = vrot.lane.b32.xlu0 %v740, 20
      %v1110 = vpop.permute.xlu0 %1109
      %1111 = vrot.lane.b32.xlu0 %v743, 20
      %v1112 = vpop.permute.xlu0 %1111
      %1113 = vrot.lane.b32.xlu0 %v745, 20
      %v1114 = vpop.permute.xlu0 %1113
      %1115 = vrot.lane.b32.xlu0 %v748, 20
      %v1116 = vpop.permute.xlu0 %1115
      %1117 = vrot.lane.b32.xlu0 %v750, 20
      %v1118 = vpop.permute.xlu0 %1117
      %1119 = vrot.lane.b32.xlu0 %v753, 20
      %v1120 = vpop.permute.xlu0 %1119
      %1121 = vrot.lane.b32.xlu0 %v755, 20
      %v1122 = vpop.permute.xlu0 %1121
      %1123 = vrot.lane.b32.xlu0 %v758, 20
      %v1124 = vpop.permute.xlu0 %1123
      %1125 = vrot.lane.b32.xlu0 %v760, 20
      %v1126 = vpop.permute.xlu0 %1125
      %1127 = vrot.lane.b32.xlu0 %v763, 20
      %v1128 = vpop.permute.xlu0 %1127
      %1129 = vrot.lane.b32.xlu0 %v765, 20
      %v1130 = vpop.permute.xlu0 %1129
      %1131 = vrot.lane.b32.xlu0 %v768, 20
      %v1132 = vpop.permute.xlu0 %1131
      %1133 = vrot.lane.b32.xlu0 %v770, 20
      %v1134 = vpop.permute.xlu0 %1133
      %1135 = vrot.lane.b32.xlu0 %v773, 20
      %v1136 = vpop.permute.xlu0 %1135
      %1137 = vrot.lane.b32.xlu0 %v775, 20
      %v1138 = vpop.permute.xlu0 %1137
      %1139 = vrot.lane.b32.xlu0 %v778, 20
      %v1140 = vpop.permute.xlu0 %1139
      %1141 = vrot.lane.b32.xlu0 %v780, 20
      %v1142 = vpop.permute.xlu0 %1141
      %1143 = vrot.lane.b32.xlu0 %v783, 20
      %v1144 = vpop.permute.xlu0 %1143
      %1145 = vrot.lane.b32.xlu0 %v785, 20
      %v1146 = vpop.permute.xlu0 %1145
      %1147 = vrot.lane.b32.xlu0 %v1084, 20
      %v1148 = vpop.permute.xlu0 %1147
      %1149 = vrot.lane.b32.xlu0 %v1086, 20
      %v1150 = vpop.permute.xlu0 %1149
      %1185 = vrot.lane.b32.xlu0 %v432, 24
      %v1186 = vpop.permute.xlu0 %1185
      %1187 = vrot.lane.b32.xlu0 %v433, 24
      %v1188 = vpop.permute.xlu0 %1187
      %1189 = vrot.lane.b32.xlu0 %v435, 24
      %v1190 = vpop.permute.xlu0 %1189
      %1191 = vrot.lane.b32.xlu0 %v436, 24
      %v1192 = vpop.permute.xlu0 %1191
      %1193 = vrot.lane.b32.xlu0 %v438, 24
      %v1194 = vpop.permute.xlu0 %1193
      %1195 = vrot.lane.b32.xlu0 %v439, 24
      %v1196 = vpop.permute.xlu0 %1195
      %1197 = vrot.lane.b32.xlu0 %v441, 24
      %v1198 = vpop.permute.xlu0 %1197
      %1199 = vrot.lane.b32.xlu0 %v442, 24
      %v1200 = vpop.permute.xlu0 %1199
      %1201 = vrot.lane.b32.xlu0 %v444, 24
      %v1202 = vpop.permute.xlu0 %1201
      %1203 = vrot.lane.b32.xlu0 %v445, 24
      %v1204 = vpop.permute.xlu0 %1203
      %1205 = vrot.lane.b32.xlu0 %v447, 24
      %v1206 = vpop.permute.xlu0 %1205
      %1207 = vrot.lane.b32.xlu0 %v448, 24
      %v1208 = vpop.permute.xlu0 %1207
      %1209 = vrot.lane.b32.xlu0 %v450, 24
      %v1210 = vpop.permute.xlu0 %1209
      %1211 = vrot.lane.b32.xlu0 %v451, 24
      %v1212 = vpop.permute.xlu0 %1211
      %1213 = vrot.lane.b32.xlu0 %v453, 24
      %v1214 = vpop.permute.xlu0 %1213
      %1215 = vrot.lane.b32.xlu0 %v454, 24
      %v1216 = vpop.permute.xlu0 %1215
      %1217 = vrot.lane.b32.xlu0 %v456, 24
      %v1218 = vpop.permute.xlu0 %1217
      %1219 = vrot.lane.b32.xlu0 %v457, 24
      %v1220 = vpop.permute.xlu0 %1219
      %1221 = vrot.lane.b32.xlu0 %v459, 24
      %v1222 = vpop.permute.xlu0 %1221
      %1223 = vrot.lane.b32.xlu0 %v460, 24
      %v1224 = vpop.permute.xlu0 %1223
      %1225 = vrot.lane.b32.xlu0 %v462, 24
      %v1226 = vpop.permute.xlu0 %1225
      %1227 = vrot.lane.b32.xlu0 %v463, 24
      %v1228 = vpop.permute.xlu0 %1227
      %1229 = vrot.lane.b32.xlu0 %v465, 24
      %v1230 = vpop.permute.xlu0 %1229
      %1231 = vrot.lane.b32.xlu0 %v466, 24
      %v1232 = vpop.permute.xlu0 %1231
      %1233 = vrot.lane.b32.xlu0 %v468, 24
      %v1234 = vpop.permute.xlu0 %1233
      %1235 = vrot.lane.b32.xlu0 %v469, 24
      %v1236 = vpop.permute.xlu0 %1235
      %1237 = vrot.lane.b32.xlu0 %v471, 24
      %v1238 = vpop.permute.xlu0 %1237
      %1239 = vrot.lane.b32.xlu0 %v472, 24
      %v1240 = vpop.permute.xlu0 %1239
      %1241 = vrot.lane.b32.xlu0 %v474, 24
      %v1242 = vpop.permute.xlu0 %1241
      %1243 = vrot.lane.b32.xlu0 %v475, 24
      %v1244 = vpop.permute.xlu0 %1243
      %1245 = vrot.lane.b32.xlu0 %v477, 24
      %v1246 = vpop.permute.xlu0 %1245
      %1247 = vrot.lane.b32.xlu0 %v478, 24
      %v1248 = vpop.permute.xlu0 %1247
      %v1282 = vrot.slane %v477, 1
      %v1283 = vrot.slane %v478, 1
      %v1284 = vsel %vm528, %v1282, %v1283
      %v1285 = vrot.slane %v479, 1
      %v1286 = vsel %vm528, %v1283, %v1285
      %1287 = vrot.lane.b32.xlu0 %v541, 28
      %v1288 = vpop.permute.xlu0 %1287
      %1289 = vrot.lane.b32.xlu0 %v543, 28
      %v1290 = vpop.permute.xlu0 %1289
      %1291 = vrot.lane.b32.xlu0 %v546, 28
      %v1292 = vpop.permute.xlu0 %1291
      %1293 = vrot.lane.b32.xlu0 %v548, 28
      %v1294 = vpop.permute.xlu0 %1293
      %1295 = vrot.lane.b32.xlu0 %v551, 28
      %v1296 = vpop.permute.xlu0 %1295
      %1297 = vrot.lane.b32.xlu0 %v553, 28
      %v1298 = vpop.permute.xlu0 %1297
      %1299 = vrot.lane.b32.xlu0 %v556, 28
      %v1300 = vpop.permute.xlu0 %1299
      %1301 = vrot.lane.b32.xlu0 %v558, 28
      %v1302 = vpop.permute.xlu0 %1301
      %1303 = vrot.lane.b32.xlu0 %v561, 28
      %v1304 = vpop.permute.xlu0 %1303
      %1305 = vrot.lane.b32.xlu0 %v563, 28
      %v1306 = vpop.permute.xlu0 %1305
      %1307 = vrot.lane.b32.xlu0 %v566, 28
      %v1308 = vpop.permute.xlu0 %1307
      %1309 = vrot.lane.b32.xlu0 %v568, 28
      %v1310 = vpop.permute.xlu0 %1309
      %1311 = vrot.lane.b32.xlu0 %v571, 28
      %v1312 = vpop.permute.xlu0 %1311
      %1313 = vrot.lane.b32.xlu0 %v573, 28
      %v1314 = vpop.permute.xlu0 %1313
      %1315 = vrot.lane.b32.xlu0 %v576, 28
      %v1316 = vpop.permute.xlu0 %1315
      %1317 = vrot.lane.b32.xlu0 %v578, 28
      %v1318 = vpop.permute.xlu0 %1317
      %1319 = vrot.lane.b32.xlu0 %v581, 28
      %v1320 = vpop.permute.xlu0 %1319
      %1321 = vrot.lane.b32.xlu0 %v583, 28
      %v1322 = vpop.permute.xlu0 %1321
      %1323 = vrot.lane.b32.xlu0 %v586, 28
      %v1324 = vpop.permute.xlu0 %1323
      %1325 = vrot.lane.b32.xlu0 %v588, 28
      %v1326 = vpop.permute.xlu0 %1325
      %1327 = vrot.lane.b32.xlu0 %v591, 28
      %v1328 = vpop.permute.xlu0 %1327
      %1329 = vrot.lane.b32.xlu0 %v593, 28
      %v1330 = vpop.permute.xlu0 %1329
      %1331 = vrot.lane.b32.xlu0 %v596, 28
      %v1332 = vpop.permute.xlu0 %1331
      %1333 = vrot.lane.b32.xlu0 %v598, 28
      %v1334 = vpop.permute.xlu0 %1333
      %1335 = vrot.lane.b32.xlu0 %v601, 28
      %v1336 = vpop.permute.xlu0 %1335
      %1337 = vrot.lane.b32.xlu0 %v603, 28
      %v1338 = vpop.permute.xlu0 %1337
      %1339 = vrot.lane.b32.xlu0 %v606, 28
      %v1340 = vpop.permute.xlu0 %1339
      %1341 = vrot.lane.b32.xlu0 %v608, 28
      %v1342 = vpop.permute.xlu0 %1341
      %1343 = vrot.lane.b32.xlu0 %v983, 28
      %v1344 = vpop.permute.xlu0 %1343
      %1345 = vrot.lane.b32.xlu0 %v985, 28
      %v1346 = vpop.permute.xlu0 %1345
      %1347 = vrot.lane.b32.xlu0 %v1284, 28
      %v1348 = vpop.permute.xlu0 %1347
      %1349 = vrot.lane.b32.xlu0 %v1286, 28
      %v1350 = vpop.permute.xlu0 %1349
      %v1383 = vrot.slane %v477, 2
      %v1384 = vrot.slane %v478, 2
      %v1385 = vsel %vm705, %v1383, %v1384
      %v1386 = vrot.slane %v479, 2
      %v1387 = vsel %vm705, %v1384, %v1386
      %1388 = vrot.lane.b32.xlu0 %v718, 32
      %v1389 = vpop.permute.xlu0 %1388
      %1390 = vrot.lane.b32.xlu0 %v720, 32
      %v1391 = vpop.permute.xlu0 %1390
      %1392 = vrot.lane.b32.xlu0 %v723, 32
      %v1393 = vpop.permute.xlu0 %1392
      %1394 = vrot.lane.b32.xlu0 %v725, 32
      %v1395 = vpop.permute.xlu0 %1394
      %1396 = vrot.lane.b32.xlu0 %v728, 32
      %v1397 = vpop.permute.xlu0 %1396
      %1398 = vrot.lane.b32.xlu0 %v730, 32
      %v1399 = vpop.permute.xlu0 %1398
      %1400 = vrot.lane.b32.xlu0 %v733, 32
      %v1401 = vpop.permute.xlu0 %1400
      %1402 = vrot.lane.b32.xlu0 %v735, 32
      %v1403 = vpop.permute.xlu0 %1402
      %1404 = vrot.lane.b32.xlu0 %v738, 32
      %v1405 = vpop.permute.xlu0 %1404
      %1406 = vrot.lane.b32.xlu0 %v740, 32
      %v1407 = vpop.permute.xlu0 %1406
      %1408 = vrot.lane.b32.xlu0 %v743, 32
      %v1409 = vpop.permute.xlu0 %1408
      %1410 = vrot.lane.b32.xlu0 %v745, 32
      %v1411 = vpop.permute.xlu0 %1410
      %1412 = vrot.lane.b32.xlu0 %v748, 32
      %v1413 = vpop.permute.xlu0 %1412
      %1414 = vrot.lane.b32.xlu0 %v750, 32
      %v1415 = vpop.permute.xlu0 %1414
      %1416 = vrot.lane.b32.xlu0 %v753, 32
      %v1417 = vpop.permute.xlu0 %1416
      %1418 = vrot.lane.b32.xlu0 %v755, 32
      %v1419 = vpop.permute.xlu0 %1418
      %1420 = vrot.lane.b32.xlu0 %v758, 32
      %v1421 = vpop.permute.xlu0 %1420
      %1422 = vrot.lane.b32.xlu0 %v760, 32
      %v1423 = vpop.permute.xlu0 %1422
      %1424 = vrot.lane.b32.xlu0 %v763, 32
      %v1425 = vpop.permute.xlu0 %1424
      %1426 = vrot.lane.b32.xlu0 %v765, 32
      %v1427 = vpop.permute.xlu0 %1426
      %1428 = vrot.lane.b32.xlu0 %v768, 32
      %v1429 = vpop.permute.xlu0 %1428
      %1430 = vrot.lane.b32.xlu0 %v770, 32
      %v1431 = vpop.permute.xlu0 %1430
      %1432 = vrot.lane.b32.xlu0 %v773, 32
      %v1433 = vpop.permute.xlu0 %1432
      %1434 = vrot.lane.b32.xlu0 %v775, 32
      %v1435 = vpop.permute.xlu0 %1434
      %1436 = vrot.lane.b32.xlu0 %v778, 32
      %v1437 = vpop.permute.xlu0 %1436
      %1438 = vrot.lane.b32.xlu0 %v780, 32
      %v1439 = vpop.permute.xlu0 %1438
      %1440 = vrot.lane.b32.xlu0 %v783, 32
      %v1441 = vpop.permute.xlu0 %1440
      %1442 = vrot.lane.b32.xlu0 %v785, 32
      %v1443 = vpop.permute.xlu0 %1442
      %1444 = vrot.lane.b32.xlu0 %v1084, 32
      %v1445 = vpop.permute.xlu0 %1444
      %1446 = vrot.lane.b32.xlu0 %v1086, 32
      %v1447 = vpop.permute.xlu0 %1446
      %1448 = vrot.lane.b32.xlu0 %v1385, 32
      %v1449 = vpop.permute.xlu0 %1448
      %1450 = vrot.lane.b32.xlu0 %v1387, 32
      %v1451 = vpop.permute.xlu0 %1450
      %v1484 = vsel %vm347, %v426, %v610
      %v1485 = vsel %vm347, %v427, %v612
      %v1486 = vsel %vm347, %v429, %v614
      %v1487 = vsel %vm347, %v430, %v616
      %v1488 = vsel %vm347, %v432, %v618
      %v1489 = vsel %vm347, %v433, %v620
      %v1490 = vsel %vm347, %v435, %v622
      %v1491 = vsel %vm347, %v436, %v624
      %v1492 = vsel %vm347, %v438, %v626
      %v1493 = vsel %vm347, %v439, %v628
      %v1494 = vsel %vm347, %v441, %v630
      %v1495 = vsel %vm347, %v442, %v632
      %v1496 = vsel %vm347, %v444, %v634
      %v1497 = vsel %vm347, %v445, %v636
      %v1498 = vsel %vm347, %v447, %v638
      %v1499 = vsel %vm347, %v448, %v640
      %v1500 = vsel %vm347, %v450, %v642
      %v1501 = vsel %vm347, %v451, %v644
      %v1502 = vsel %vm347, %v453, %v646
      %v1503 = vsel %vm347, %v454, %v648
      %v1504 = vsel %vm347, %v456, %v650
      %v1505 = vsel %vm347, %v457, %v652
      %v1506 = vsel %vm347, %v459, %v654
      %v1507 = vsel %vm347, %v460, %v656
      %v1508 = vsel %vm347, %v462, %v658
      %v1509 = vsel %vm347, %v463, %v660
      %v1510 = vsel %vm347, %v465, %v662
      %v1511 = vsel %vm347, %v466, %v664
      %v1512 = vsel %vm347, %v468, %v666
      %v1513 = vsel %vm347, %v469, %v668
      %v1514 = vsel %vm347, %v471, %v670
      %v1515 = vsel %vm347, %v472, %v672
      %vm1516 = vcmask 64512
      %v1517 = vsel %vm1516, %v1484, %v787
      %v1518 = vsel %vm1516, %v1485, %v789
      %v1519 = vsel %vm1516, %v1486, %v791
      %v1520 = vsel %vm1516, %v1487, %v793
      %v1521 = vsel %vm1516, %v1488, %v795
      %v1522 = vsel %vm1516, %v1489, %v797
      %v1523 = vsel %vm1516, %v1490, %v799
      %v1524 = vsel %vm1516, %v1491, %v801
      %v1525 = vsel %vm1516, %v1492, %v803
      %v1526 = vsel %vm1516, %v1493, %v805
      %v1527 = vsel %vm1516, %v1494, %v807
      %v1528 = vsel %vm1516, %v1495, %v809
      %v1529 = vsel %vm1516, %v1496, %v811
      %v1530 = vsel %vm1516, %v1497, %v813
      %v1531 = vsel %vm1516, %v1498, %v815
      %v1532 = vsel %vm1516, %v1499, %v817
      %v1533 = vsel %vm1516, %v1500, %v819
      %v1534 = vsel %vm1516, %v1501, %v821
      %v1535 = vsel %vm1516, %v1502, %v823
      %v1536 = vsel %vm1516, %v1503, %v825
      %v1537 = vsel %vm1516, %v1504, %v827
      %v1538 = vsel %vm1516, %v1505, %v829
      %v1539 = vsel %vm1516, %v1506, %v831
      %v1540 = vsel %vm1516, %v1507, %v833
      %v1541 = vsel %vm1516, %v1508, %v835
      %v1542 = vsel %vm1516, %v1509, %v837
      %v1543 = vsel %vm1516, %v1510, %v839
      %v1544 = vsel %vm1516, %v1511, %v841
      %v1545 = vsel %vm1516, %v1512, %v843
      %v1546 = vsel %vm1516, %v1513, %v845
      %v1547 = vsel %vm1516, %v1514, %v847
      %v1548 = vsel %vm1516, %v1515, %v849
      %vm1549 = vcmask 97280
      %v1550 = vsel %vm1549, %v1517, %v885
      %v1551 = vsel %vm1549, %v1518, %v887
      %v1552 = vsel %vm1549, %v1519, %v889
      %v1553 = vsel %vm1549, %v1520, %v891
      %v1554 = vsel %vm1549, %v1521, %v893
      %v1555 = vsel %vm1549, %v1522, %v895
      %v1556 = vsel %vm1549, %v1523, %v897
      %v1557 = vsel %vm1549, %v1524, %v899
      %v1558 = vsel %vm1549, %v1525, %v901
      %v1559 = vsel %vm1549, %v1526, %v903
      %v1560 = vsel %vm1549, %v1527, %v905
      %v1561 = vsel %vm1549, %v1528, %v907
      %v1562 = vsel %vm1549, %v1529, %v909
      %v1563 = vsel %vm1549, %v1530, %v911
      %v1564 = vsel %vm1549, %v1531, %v913
      %v1565 = vsel %vm1549, %v1532, %v915
      %v1566 = vsel %vm1549, %v1533, %v917
      %v1567 = vsel %vm1549, %v1534, %v919
      %v1568 = vsel %vm1549, %v1535, %v921
      %v1569 = vsel %vm1549, %v1536, %v923
      %v1570 = vsel %vm1549, %v1537, %v925
      %v1571 = vsel %vm1549, %v1538, %v927
      %v1572 = vsel %vm1549, %v1539, %v929
      %v1573 = vsel %vm1549, %v1540, %v931
      %v1574 = vsel %vm1549, %v1541, %v933
      %v1575 = vsel %vm1549, %v1542, %v935
      %v1576 = vsel %vm1549, %v1543, %v937
      %v1577 = vsel %vm1549, %v1544, %v939
      %v1578 = vsel %vm1549, %v1545, %v941
      %v1579 = vsel %vm1549, %v1546, %v943
      %v1580 = vsel %vm1549, %v1547, %v945
      %v1581 = vsel %vm1549, %v1548, %v947
      %vm1582 = vcmask 130048
      %v1583 = vsel %vm1582, %v1550, %v987
      %v1584 = vsel %vm1582, %v1551, %v989
      %v1585 = vsel %vm1582, %v1552, %v991
      %v1586 = vsel %vm1582, %v1553, %v993
      %v1587 = vsel %vm1582, %v1554, %v995
      %v1588 = vsel %vm1582, %v1555, %v997
      %v1589 = vsel %vm1582, %v1556, %v999
      %v1590 = vsel %vm1582, %v1557, %v1001
      %v1591 = vsel %vm1582, %v1558, %v1003
      %v1592 = vsel %vm1582, %v1559, %v1005
      %v1593 = vsel %vm1582, %v1560, %v1007
      %v1594 = vsel %vm1582, %v1561, %v1009
      %v1595 = vsel %vm1582, %v1562, %v1011
      %v1596 = vsel %vm1582, %v1563, %v1013
      %v1597 = vsel %vm1582, %v1564, %v1015
      %v1598 = vsel %vm1582, %v1565, %v1017
      %v1599 = vsel %vm1582, %v1566, %v1019
      %v1600 = vsel %vm1582, %v1567, %v1021
      %v1601 = vsel %vm1582, %v1568, %v1023
      %v1602 = vsel %vm1582, %v1569, %v1025
      %v1603 = vsel %vm1582, %v1570, %v1027
      %v1604 = vsel %vm1582, %v1571, %v1029
      %v1605 = vsel %vm1582, %v1572, %v1031
      %v1606 = vsel %vm1582, %v1573, %v1033
      %v1607 = vsel %vm1582, %v1574, %v1035
      %v1608 = vsel %vm1582, %v1575, %v1037
      %v1609 = vsel %vm1582, %v1576, %v1039
      %v1610 = vsel %vm1582, %v1577, %v1041
      %v1611 = vsel %vm1582, %v1578, %v1043
      %v1612 = vsel %vm1582, %v1579, %v1045
      %v1613 = vsel %vm1582, %v1580, %v1047
      %v1614 = vsel %vm1582, %v1581, %v1049
      %vm1615 = vcmask 162816
      %v1616 = vsel %vm1615, %v1583, %v1088
      %v1617 = vsel %vm1615, %v1584, %v1090
      %v1618 = vsel %vm1615, %v1585, %v1092
      %v1619 = vsel %vm1615, %v1586, %v1094
      %v1620 = vsel %vm1615, %v1587, %v1096
      %v1621 = vsel %vm1615, %v1588, %v1098
      %v1622 = vsel %vm1615, %v1589, %v1100
      %v1623 = vsel %vm1615, %v1590, %v1102
      %v1624 = vsel %vm1615, %v1591, %v1104
      %v1625 = vsel %vm1615, %v1592, %v1106
      %v1626 = vsel %vm1615, %v1593, %v1108
      %v1627 = vsel %vm1615, %v1594, %v1110
      %v1628 = vsel %vm1615, %v1595, %v1112
      %v1629 = vsel %vm1615, %v1596, %v1114
      %v1630 = vsel %vm1615, %v1597, %v1116
      %v1631 = vsel %vm1615, %v1598, %v1118
      %v1632 = vsel %vm1615, %v1599, %v1120
      %v1633 = vsel %vm1615, %v1600, %v1122
      %v1634 = vsel %vm1615, %v1601, %v1124
      %v1635 = vsel %vm1615, %v1602, %v1126
      %v1636 = vsel %vm1615, %v1603, %v1128
      %v1637 = vsel %vm1615, %v1604, %v1130
      %v1638 = vsel %vm1615, %v1605, %v1132
      %v1639 = vsel %vm1615, %v1606, %v1134
      %v1640 = vsel %vm1615, %v1607, %v1136
      %v1641 = vsel %vm1615, %v1608, %v1138
      %v1642 = vsel %vm1615, %v1609, %v1140
      %v1643 = vsel %vm1615, %v1610, %v1142
      %v1644 = vsel %vm1615, %v1611, %v1144
      %v1645 = vsel %vm1615, %v1612, %v1146
      %v1646 = vsel %vm1615, %v1613, %v1148
      %v1647 = vsel %vm1615, %v1614, %v1150
      %vm1648 = vcmask 195584
      %v1649 = vsel %vm1648, %v1616, %v1186
      %v1650 = vsel %vm1648, %v1617, %v1188
      %v1651 = vsel %vm1648, %v1618, %v1190
      %v1652 = vsel %vm1648, %v1619, %v1192
      %v1653 = vsel %vm1648, %v1620, %v1194
      %v1654 = vsel %vm1648, %v1621, %v1196
      %v1655 = vsel %vm1648, %v1622, %v1198
      %v1656 = vsel %vm1648, %v1623, %v1200
      %v1657 = vsel %vm1648, %v1624, %v1202
      %v1658 = vsel %vm1648, %v1625, %v1204
      %v1659 = vsel %vm1648, %v1626, %v1206
      %v1660 = vsel %vm1648, %v1627, %v1208
      %v1661 = vsel %vm1648, %v1628, %v1210
      %v1662 = vsel %vm1648, %v1629, %v1212
      %v1663 = vsel %vm1648, %v1630, %v1214
      %v1664 = vsel %vm1648, %v1631, %v1216
      %v1665 = vsel %vm1648, %v1632, %v1218
      %v1666 = vsel %vm1648, %v1633, %v1220
      %v1667 = vsel %vm1648, %v1634, %v1222
      %v1668 = vsel %vm1648, %v1635, %v1224
      %v1669 = vsel %vm1648, %v1636, %v1226
      %v1670 = vsel %vm1648, %v1637, %v1228
      %v1671 = vsel %vm1648, %v1638, %v1230
      %v1672 = vsel %vm1648, %v1639, %v1232
      %v1673 = vsel %vm1648, %v1640, %v1234
      %v1674 = vsel %vm1648, %v1641, %v1236
      %v1675 = vsel %vm1648, %v1642, %v1238
      %v1676 = vsel %vm1648, %v1643, %v1240
      %v1677 = vsel %vm1648, %v1644, %v1242
      %v1678 = vsel %vm1648, %v1645, %v1244
      %v1679 = vsel %vm1648, %v1646, %v1246
      %v1680 = vsel %vm1648, %v1647, %v1248
      %vm1681 = vcmask 228352
      %v1682 = vsel %vm1681, %v1649, %v1288
      %v1683 = vsel %vm1681, %v1650, %v1290
      %v1684 = vsel %vm1681, %v1651, %v1292
      %v1685 = vsel %vm1681, %v1652, %v1294
      %v1686 = vsel %vm1681, %v1653, %v1296
      %v1687 = vsel %vm1681, %v1654, %v1298
      %v1688 = vsel %vm1681, %v1655, %v1300
      %v1689 = vsel %vm1681, %v1656, %v1302
      %v1690 = vsel %vm1681, %v1657, %v1304
      %v1691 = vsel %vm1681, %v1658, %v1306
      %v1692 = vsel %vm1681, %v1659, %v1308
      %v1693 = vsel %vm1681, %v1660, %v1310
      %v1694 = vsel %vm1681, %v1661, %v1312
      %v1695 = vsel %vm1681, %v1662, %v1314
      %v1696 = vsel %vm1681, %v1663, %v1316
      %v1697 = vsel %vm1681, %v1664, %v1318
      %v1698 = vsel %vm1681, %v1665, %v1320
      %v1699 = vsel %vm1681, %v1666, %v1322
      %v1700 = vsel %vm1681, %v1667, %v1324
      %v1701 = vsel %vm1681, %v1668, %v1326
      %v1702 = vsel %vm1681, %v1669, %v1328
      %v1703 = vsel %vm1681, %v1670, %v1330
      %v1704 = vsel %vm1681, %v1671, %v1332
      %v1705 = vsel %vm1681, %v1672, %v1334
      %v1706 = vsel %vm1681, %v1673, %v1336
      %v1707 = vsel %vm1681, %v1674, %v1338
      %v1708 = vsel %vm1681, %v1675, %v1340
      %v1709 = vsel %vm1681, %v1676, %v1342
      %v1710 = vsel %vm1681, %v1677, %v1344
      %v1711 = vsel %vm1681, %v1678, %v1346
      %v1712 = vsel %vm1681, %v1679, %v1348
      %v1713 = vsel %vm1681, %v1680, %v1350
      %vm1714 = vcmask 261120
      %v1715 = vsel %vm1714, %v1682, %v1389
      %v1716 = vsel %vm1714, %v1683, %v1391
      %v1717 = vsel %vm1714, %v1684, %v1393
      %v1718 = vsel %vm1714, %v1685, %v1395
      %v1719 = vsel %vm1714, %v1686, %v1397
      %v1720 = vsel %vm1714, %v1687, %v1399
      %v1721 = vsel %vm1714, %v1688, %v1401
      %v1722 = vsel %vm1714, %v1689, %v1403
      %v1723 = vsel %vm1714, %v1690, %v1405
      %v1724 = vsel %vm1714, %v1691, %v1407
      %v1725 = vsel %vm1714, %v1692, %v1409
      %v1726 = vsel %vm1714, %v1693, %v1411
      %v1727 = vsel %vm1714, %v1694, %v1413
      %v1728 = vsel %vm1714, %v1695, %v1415
      %v1729 = vsel %vm1714, %v1696, %v1417
      %v1730 = vsel %vm1714, %v1697, %v1419
      %v1731 = vsel %vm1714, %v1698, %v1421
      %v1732 = vsel %vm1714, %v1699, %v1423
      %v1733 = vsel %vm1714, %v1700, %v1425
      %v1734 = vsel %vm1714, %v1701, %v1427
      %v1735 = vsel %vm1714, %v1702, %v1429
      %v1736 = vsel %vm1714, %v1703, %v1431
      %v1737 = vsel %vm1714, %v1704, %v1433
      %v1738 = vsel %vm1714, %v1705, %v1435
      %v1739 = vsel %vm1714, %v1706, %v1437
      %v1740 = vsel %vm1714, %v1707, %v1439
      %v1741 = vsel %vm1714, %v1708, %v1441
      %v1742 = vsel %vm1714, %v1709, %v1443
      %v1743 = vsel %vm1714, %v1710, %v1445
      %v1744 = vsel %vm1714, %v1711, %v1447
      %v1745 = vsel %vm1714, %v1712, %v1449
      %v1746 = vsel %vm1714, %v1713, %v1451
      %v1747 = vld [vmem:[%s1] sm:$0xff]
      %v1748 = vld [vmem:[%s1 + $0x8] sm:$0xff]
      %v1749 = vld [vmem:[%s1 + $0x10] sm:$0xff]
      %v1750 = vld [vmem:[%s1 + $0x18] sm:$0xff]
      %v1751 = vld [vmem:[%s1 + $0x20] sm:$0xf]
      %v1752 = vld [vmem:[%s2] sm:$0x1]
      %v1754 = vlaneseq
      %v1755 = vshrl.u32 %v1754, 7
      %v1756 = vsub.s32 0, %v1755
      %v1757 = vrot.slane %v1752, %v1756
      %vm1759 = vcmask 293888
      %v1761 = vsel %vm1759, %v1715, 0
      %v1764 = vsel %vm1759, %v1716, 0
      %v1767 = vsel %vm1759, %v1717, 0
      %v1770 = vsel %vm1759, %v1718, 0
      %v1773 = vsel %vm1759, %v1719, 0
      %v1776 = vsel %vm1759, %v1720, 0
      %v1779 = vsel %vm1759, %v1721, 0
      %v1782 = vsel %vm1759, %v1722, 0
      %v1785 = vsel %vm1759, %v1723, 0
      %v1788 = vsel %vm1759, %v1724, 0
      %v1791 = vsel %vm1759, %v1725, 0
      %v1794 = vsel %vm1759, %v1726, 0
      %v1797 = vsel %vm1759, %v1727, 0
      %v1800 = vsel %vm1759, %v1728, 0
      %v1803 = vsel %vm1759, %v1729, 0
      %v1806 = vsel %vm1759, %v1730, 0
      %v1809 = vsel %vm1759, %v1731, 0
      %v1812 = vsel %vm1759, %v1732, 0
      %v1815 = vsel %vm1759, %v1733, 0
      %v1818 = vsel %vm1759, %v1734, 0
      %v1821 = vsel %vm1759, %v1735, 0
      %v1824 = vsel %vm1759, %v1736, 0
      %v1827 = vsel %vm1759, %v1737, 0
      %v1830 = vsel %vm1759, %v1738, 0
      %v1833 = vsel %vm1759, %v1739, 0
      %v1836 = vsel %vm1759, %v1740, 0
      %v1839 = vsel %vm1759, %v1741, 0
      %v1842 = vsel %vm1759, %v1742, 0
      %v1845 = vsel %vm1759, %v1743, 0
      %v1848 = vsel %vm1759, %v1744, 0
      %v1851 = vsel %vm1759, %v1745, 0
      %v1854 = vsel %vm1759, %v1746, 0
      %vm1856 = vcmask 1043456
      %v1858 = vsel %vm1856, %v1751, 0
      %1860 = vmatprep.subr.mxu0 0.0
      %1861 = vmatpush1.msra.mxu0 %v1747
      %1862 = vmatprep.subr.mxu0 0.0
      %1863 = vmatpush1.msra.mxu0 %v1748
      %1864 = vmatprep.subr.mxu0 0.0
      %1865 = vmatpush1.msra.mxu0 %v1749
      %1866 = vmatprep.subr.mxu0 0.0
      %1867 = vmatpush1.msra.mxu0 %v1750
      %1868 = vmatprep.subr.mxu0 0.0
      %1869 = vmatpush1.msra.mxu0 %v1858
      %1870 = vmatprep.subr.mxu0 0.0
      %1871 = vmatpush1.msra.mxu0 0.0
      %1872 = vmatprep.subr.mxu0 0.0
      %1873 = vmatpush1.msra.mxu0 0.0
      %1874 = vmatprep.subr.mxu0 0.0
      %1875 = vmatpush1.msra.mxu0 0.0
      %1876 = vmatprep.subr.mxu0 0.0
      %1877 = vmatpush1.msra.mxu0 0.0
      %1878 = vmatprep.subr.mxu0 0.0
      %1879 = vmatpush1.msra.mxu0 0.0
      %1880 = vmatprep.subr.mxu0 0.0
      %1881 = vmatpush1.msra.mxu0 0.0
      %1882 = vmatprep.subr.mxu0 0.0
      %1883 = vmatpush1.msra.mxu0 0.0
      %1884 = vmatprep.subr.mxu0 0.0
      %1885 = vmatpush1.msra.mxu0 0.0
      %1886 = vmatprep.subr.mxu0 0.0
      %1887 = vmatpush1.msra.mxu0 0.0
      %1888 = vmatprep.subr.mxu0 0.0
      %1889 = vmatpush1.msra.mxu0 0.0
      %1890 = vmatprep.subr.mxu0 0.0
      %1891 = vmatpush1.msra.mxu0 0.0
      %1892 = vmatprep.subr.mxu0 0.0
      %1893 = vmatpush1.msra.mxu0 0.0
      %1894 = vmatprep.subr.mxu0 0.0
      %1895 = vmatpush1.msra.mxu0 0.0
      %1896 = vmatprep.subr.mxu0 0.0
      %1897 = vmatpush1.msra.mxu0 0.0
      %1898 = vmatprep.subr.mxu0 0.0
      %1899 = vmatpush1.msra.mxu0 0.0
      %1900 = vmatprep.subr.mxu0 0.0
      %1901 = vmatpush1.msra.mxu0 0.0
      %1902 = vmatprep.subr.mxu0 0.0
      %1903 = vmatpush1.msra.mxu0 0.0
      %1904 = vmatprep.subr.mxu0 0.0
      %1905 = vmatpush1.msra.mxu0 0.0
      %1906 = vmatprep.subr.mxu0 0.0
      %1907 = vmatpush1.msra.mxu0 0.0
      %1908 = vmatprep.subr.mxu0 0.0
      %1909 = vmatpush1.msra.mxu0 0.0
      %1910 = vmatprep.subr.mxu0 0.0
      %1911 = vmatpush1.msra.mxu0 0.0
      %1912 = vmatprep.subr.mxu0 0.0
      %1913 = vmatpush1.msra.mxu0 0.0
      %1914 = vmatprep.subr.mxu0 0.0
      %1915 = vmatpush1.msra.mxu0 0.0
      %1916 = vmatprep.subr.mxu0 0.0
      %1917 = vmatpush1.msra.mxu0 0.0
      %1918 = vmatprep.subr.mxu0 0.0
      %1919 = vmatpush1.msra.mxu0 0.0
      %1920 = vmatprep.subr.mxu0 0.0
      %1921 = vmatpush1.msra.mxu0 0.0
      %1922 = vmatprep.subr.mxu0 0.0
      %1923 = vmatpush1.msra.mxu0 0.0
      %1924 = vmatprep.mubr.f32.mxu0 0.0
      %1925 = vmatmul.mubr.f32.gmra.mrb[0].mxu0 %v1761
      %v1926 = vpop.f32.mrb[0].mxu0
      %v1927 = vadd.f32 %v1757, %v1926
      %v1928 = vpop.f32.mrb[0].mxu0
      %1929 = vmatprep.mubr.f32.mxu0 0.0
      %1930 = vmatmul.mubr.f32.gmra.mrb[0].mxu0 %v1764
      %v1931 = vpop.f32.mrb[0].mxu0
      %v1932 = vadd.f32 %v1757, %v1931
      %v1933 = vpop.f32.mrb[0].mxu0
      %1934 = vmatprep.mubr.f32.mxu0 0.0
      %1935 = vmatmul.mubr.f32.gmra.mrb[0].mxu0 %v1767
      %v1936 = vpop.f32.mrb[0].mxu0
      %v1937 = vadd.f32 %v1757, %v1936
      %v1938 = vpop.f32.mrb[0].mxu0
      %1939 = vmatprep.mubr.f32.mxu0 0.0
      %1940 = vmatmul.mubr.f32.gmra.mrb[0].mxu0 %v1770
      %v1941 = vpop.f32.mrb[0].mxu0
      %v1942 = vadd.f32 %v1757, %v1941
      %v1943 = vpop.f32.mrb[0].mxu0
      %1944 = vmatprep.mubr.f32.mxu0 0.0
      %1945 = vmatmul.mubr.f32.gmra.mrb[0].mxu0 %v1773
      %v1946 = vpop.f32.mrb[0].mxu0
      %v1947 = vadd.f32 %v1757, %v1946
      %v1948 = vpop.f32.mrb[0].mxu0
      %1949 = vmatprep.mubr.f32.mxu0 0.0
      %1950 = vmatmul.mubr.f32.gmra.mrb[0].mxu0 %v1776
      %v1951 = vpop.f32.mrb[0].mxu0
      %v1952 = vadd.f32 %v1757, %v1951
      %v1953 = vpop.f32.mrb[0].mxu0
      %1954 = vmatprep.mubr.f32.mxu0 0.0
      %1955 = vmatmul.mubr.f32.gmra.mrb[0].mxu0 %v1779
      %v1956 = vpop.f32.mrb[0].mxu0
      %v1957 = vadd.f32 %v1757, %v1956
      %v1958 = vpop.f32.mrb[0].mxu0
      %1959 = vmatprep.mubr.f32.mxu0 0.0
      %1960 = vmatmul.mubr.f32.gmra.mrb[0].mxu0 %v1782
      %v1961 = vpop.f32.mrb[0].mxu0
      %v1962 = vadd.f32 %v1757, %v1961
      %v1963 = vpop.f32.mrb[0].mxu0
      %1964 = vmatprep.mubr.f32.mxu0 0.0
      %1965 = vmatmul.mubr.f32.gmra.mrb[0].mxu0 %v1785
      %v1966 = vpop.f32.mrb[0].mxu0
      %v1967 = vadd.f32 %v1757, %v1966
      %v1968 = vpop.f32.mrb[0].mxu0
      %1969 = vmatprep.mubr.f32.mxu0 0.0
      %1970 = vmatmul.mubr.f32.gmra.mrb[0].mxu0 %v1788
      %v1971 = vpop.f32.mrb[0].mxu0
      %v1972 = vadd.f32 %v1757, %v1971
      %v1973 = vpop.f32.mrb[0].mxu0
      %1974 = vmatprep.mubr.f32.mxu0 0.0
      %1975 = vmatmul.mubr.f32.gmra.mrb[0].mxu0 %v1791
      %v1976 = vpop.f32.mrb[0].mxu0
      %v1977 = vadd.f32 %v1757, %v1976
      %v1978 = vpop.f32.mrb[0].mxu0
      %1979 = vmatprep.mubr.f32.mxu0 0.0
      %1980 = vmatmul.mubr.f32.gmra.mrb[0].mxu0 %v1794
      %v1981 = vpop.f32.mrb[0].mxu0
      %v1982 = vadd.f32 %v1757, %v1981
      %v1983 = vpop.f32.mrb[0].mxu0
      %1984 = vmatprep.mubr.f32.mxu0 0.0
      %1985 = vmatmul.mubr.f32.gmra.mrb[0].mxu0 %v1797
      %v1986 = vpop.f32.mrb[0].mxu0
      %v1987 = vadd.f32 %v1757, %v1986
      %v1988 = vpop.f32.mrb[0].mxu0
      %1989 = vmatprep.mubr.f32.mxu0 0.0
      %1990 = vmatmul.mubr.f32.gmra.mrb[0].mxu0 %v1800
      %v1991 = vpop.f32.mrb[0].mxu0
      %v1992 = vadd.f32 %v1757, %v1991
      %v1993 = vpop.f32.mrb[0].mxu0
      %1994 = vmatprep.mubr.f32.mxu0 0.0
      %1995 = vmatmul.mubr.f32.gmra.mrb[0].mxu0 %v1803
      %v1996 = vpop.f32.mrb[0].mxu0
      %v1997 = vadd.f32 %v1757, %v1996
      %v1998 = vpop.f32.mrb[0].mxu0
      %1999 = vmatprep.mubr.f32.mxu0 0.0
      %2000 = vmatmul.mubr.f32.gmra.mrb[0].mxu0 %v1806
      %v2001 = vpop.f32.mrb[0].mxu0
      %v2002 = vadd.f32 %v1757, %v2001
      %v2003 = vpop.f32.mrb[0].mxu0
      %2004 = vmatprep.mubr.f32.mxu0 0.0
      %2005 = vmatmul.mubr.f32.gmra.mrb[0].mxu0 %v1809
      %v2006 = vpop.f32.mrb[0].mxu0
      %v2007 = vadd.f32 %v1757, %v2006
      %v2008 = vpop.f32.mrb[0].mxu0
      %2009 = vmatprep.mubr.f32.mxu0 0.0
      %2010 = vmatmul.mubr.f32.gmra.mrb[0].mxu0 %v1812
      %v2011 = vpop.f32.mrb[0].mxu0
      %v2012 = vadd.f32 %v1757, %v2011
      %v2013 = vpop.f32.mrb[0].mxu0
      %2014 = vmatprep.mubr.f32.mxu0 0.0
      %2015 = vmatmul.mubr.f32.gmra.mrb[0].mxu0 %v1815
      %v2016 = vpop.f32.mrb[0].mxu0
      %v2017 = vadd.f32 %v1757, %v2016
      %v2018 = vpop.f32.mrb[0].mxu0
      %2019 = vmatprep.mubr.f32.mxu0 0.0
      %2020 = vmatmul.mubr.f32.gmra.mrb[0].mxu0 %v1818
      %v2021 = vpop.f32.mrb[0].mxu0
      %v2022 = vadd.f32 %v1757, %v2021
      %v2023 = vpop.f32.mrb[0].mxu0
      %2024 = vmatprep.mubr.f32.mxu0 0.0
      %2025 = vmatmul.mubr.f32.gmra.mrb[0].mxu0 %v1821
      %v2026 = vpop.f32.mrb[0].mxu0
      %v2027 = vadd.f32 %v1757, %v2026
      %v2028 = vpop.f32.mrb[0].mxu0
      %2029 = vmatprep.mubr.f32.mxu0 0.0
      %2030 = vmatmul.mubr.f32.gmra.mrb[0].mxu0 %v1824
      %v2031 = vpop.f32.mrb[0].mxu0
      %v2032 = vadd.f32 %v1757, %v2031
      %v2033 = vpop.f32.mrb[0].mxu0
      %2034 = vmatprep.mubr.f32.mxu0 0.0
      %2035 = vmatmul.mubr.f32.gmra.mrb[0].mxu0 %v1827
      %v2036 = vpop.f32.mrb[0].mxu0
      %v2037 = vadd.f32 %v1757, %v2036
      %v2038 = vpop.f32.mrb[0].mxu0
      %2039 = vmatprep.mubr.f32.mxu0 0.0
      %2040 = vmatmul.mubr.f32.gmra.mrb[0].mxu0 %v1830
      %v2041 = vpop.f32.mrb[0].mxu0
      %v2042 = vadd.f32 %v1757, %v2041
      %v2043 = vpop.f32.mrb[0].mxu0
      %2044 = vmatprep.mubr.f32.mxu0 0.0
      %2045 = vmatmul.mubr.f32.gmra.mrb[0].mxu0 %v1833
      %v2046 = vpop.f32.mrb[0].mxu0
      %v2047 = vadd.f32 %v1757, %v2046
      %v2048 = vpop.f32.mrb[0].mxu0
      %2049 = vmatprep.mubr.f32.mxu0 0.0
      %2050 = vmatmul.mubr.f32.gmra.mrb[0].mxu0 %v1836
      %v2051 = vpop.f32.mrb[0].mxu0
      %v2052 = vadd.f32 %v1757, %v2051
      %v2053 = vpop.f32.mrb[0].mxu0
      %2054 = vmatprep.mubr.f32.mxu0 0.0
      %2055 = vmatmul.mubr.f32.gmra.mrb[0].mxu0 %v1839
      %v2056 = vpop.f32.mrb[0].mxu0
      %v2057 = vadd.f32 %v1757, %v2056
      %v2058 = vpop.f32.mrb[0].mxu0
      %2059 = vmatprep.mubr.f32.mxu0 0.0
      %2060 = vmatmul.mubr.f32.gmra.mrb[0].mxu0 %v1842
      %v2061 = vpop.f32.mrb[0].mxu0
      %v2062 = vadd.f32 %v1757, %v2061
      %v2063 = vpop.f32.mrb[0].mxu0
      %2064 = vmatprep.mubr.f32.mxu0 0.0
      %2065 = vmatmul.mubr.f32.gmra.mrb[0].mxu0 %v1845
      %v2066 = vpop.f32.mrb[0].mxu0
      %v2067 = vadd.f32 %v1757, %v2066
      %v2068 = vpop.f32.mrb[0].mxu0
      %2069 = vmatprep.mubr.f32.mxu0 0.0
      %2070 = vmatmul.mubr.f32.gmra.mrb[0].mxu0 %v1848
      %v2071 = vpop.f32.mrb[0].mxu0
      %v2072 = vadd.f32 %v1757, %v2071
      %v2073 = vpop.f32.mrb[0].mxu0
      %2074 = vmatprep.mubr.f32.mxu0 0.0
      %2075 = vmatmul.mubr.f32.gmra.mrb[0].mxu0 %v1851
      %v2076 = vpop.f32.mrb[0].mxu0
      %v2077 = vadd.f32 %v1757, %v2076
      %v2078 = vpop.f32.mrb[0].mxu0
      %2079 = vmatprep.mubr.f32.mxu0 0.0
      %2080 = vmatmul.mubr.f32.gmra.mrb[0].mxu0 %v1854
      %v2081 = vpop.f32.mrb[0].mxu0
      %v2082 = vadd.f32 %v1757, %v2081
      %v2083 = vpop.f32.mrb[0].mxu0
      %2084 = vdwg.mxu0
      %vm2085 = vcmp.gt.f32.partialorder %v1927, 0.0
      %vm2086 = vcmp.gt.f32.partialorder %v1932, 0.0
      %vm2087 = vcmp.gt.f32.partialorder %v1937, 0.0
      %vm2088 = vcmp.gt.f32.partialorder %v1942, 0.0
      %vm2089 = vcmp.gt.f32.partialorder %v1947, 0.0
      %vm2090 = vcmp.gt.f32.partialorder %v1952, 0.0
      %vm2091 = vcmp.gt.f32.partialorder %v1957, 0.0
      %vm2092 = vcmp.gt.f32.partialorder %v1962, 0.0
      %vm2093 = vcmp.gt.f32.partialorder %v1967, 0.0
      %vm2094 = vcmp.gt.f32.partialorder %v1972, 0.0
      %vm2095 = vcmp.gt.f32.partialorder %v1977, 0.0
      %vm2096 = vcmp.gt.f32.partialorder %v1982, 0.0
      %vm2097 = vcmp.gt.f32.partialorder %v1987, 0.0
      %vm2098 = vcmp.gt.f32.partialorder %v1992, 0.0
      %vm2099 = vcmp.gt.f32.partialorder %v1997, 0.0
      %vm2100 = vcmp.gt.f32.partialorder %v2002, 0.0
      %vm2101 = vcmp.gt.f32.partialorder %v2007, 0.0
      %vm2102 = vcmp.gt.f32.partialorder %v2012, 0.0
      %vm2103 = vcmp.gt.f32.partialorder %v2017, 0.0
      %vm2104 = vcmp.gt.f32.partialorder %v2022, 0.0
      %vm2105 = vcmp.gt.f32.partialorder %v2027, 0.0
      %vm2106 = vcmp.gt.f32.partialorder %v2032, 0.0
      %vm2107 = vcmp.gt.f32.partialorder %v2037, 0.0
      %vm2108 = vcmp.gt.f32.partialorder %v2042, 0.0
      %vm2109 = vcmp.gt.f32.partialorder %v2047, 0.0
      %vm2110 = vcmp.gt.f32.partialorder %v2052, 0.0
      %vm2111 = vcmp.gt.f32.partialorder %v2057, 0.0
      %vm2112 = vcmp.gt.f32.partialorder %v2062, 0.0
      %vm2113 = vcmp.gt.f32.partialorder %v2067, 0.0
      %vm2114 = vcmp.gt.f32.partialorder %v2072, 0.0
      %vm2115 = vcmp.gt.f32.partialorder %v2077, 0.0
      %vm2116 = vcmp.gt.f32.partialorder %v2082, 0.0
      %v2117 = vmul.f32 %v1927, 0.2
      %v2118 = vmul.f32 %v1932, 0.2
      %v2119 = vmul.f32 %v1937, 0.2
      %v2120 = vmul.f32 %v1942, 0.2
      %v2121 = vmul.f32 %v1947, 0.2
      %v2122 = vmul.f32 %v1952, 0.2
      %v2123 = vmul.f32 %v1957, 0.2
      %v2124 = vmul.f32 %v1962, 0.2
      %v2125 = vmul.f32 %v1967, 0.2
      %v2126 = vmul.f32 %v1972, 0.2
      %v2127 = vmul.f32 %v1977, 0.2
      %v2128 = vmul.f32 %v1982, 0.2
      %v2129 = vmul.f32 %v1987, 0.2
      %v2130 = vmul.f32 %v1992, 0.2
      %v2131 = vmul.f32 %v1997, 0.2
      %v2132 = vmul.f32 %v2002, 0.2
      %v2133 = vmul.f32 %v2007, 0.2
      %v2134 = vmul.f32 %v2012, 0.2
      %v2135 = vmul.f32 %v2017, 0.2
      %v2136 = vmul.f32 %v2022, 0.2
      %v2137 = vmul.f32 %v2027, 0.2
      %v2138 = vmul.f32 %v2032, 0.2
      %v2139 = vmul.f32 %v2037, 0.2
      %v2140 = vmul.f32 %v2042, 0.2
      %v2141 = vmul.f32 %v2047, 0.2
      %v2142 = vmul.f32 %v2052, 0.2
      %v2143 = vmul.f32 %v2057, 0.2
      %v2144 = vmul.f32 %v2062, 0.2
      %v2145 = vmul.f32 %v2067, 0.2
      %v2146 = vmul.f32 %v2072, 0.2
      %v2147 = vmul.f32 %v2077, 0.2
      %v2148 = vmul.f32 %v2082, 0.2
      %v2149 = vsel %vm2085, %v1927, %v2117
      %v2150 = vsel %vm2086, %v1932, %v2118
      %v2151 = vsel %vm2087, %v1937, %v2119
      %v2152 = vsel %vm2088, %v1942, %v2120
      %v2153 = vsel %vm2089, %v1947, %v2121
      %v2154 = vsel %vm2090, %v1952, %v2122
      %v2155 = vsel %vm2091, %v1957, %v2123
      %v2156 = vsel %vm2092, %v1962, %v2124
      %v2157 = vsel %vm2093, %v1967, %v2125
      %v2158 = vsel %vm2094, %v1972, %v2126
      %v2159 = vsel %vm2095, %v1977, %v2127
      %v2160 = vsel %vm2096, %v1982, %v2128
      %v2161 = vsel %vm2097, %v1987, %v2129
      %v2162 = vsel %vm2098, %v1992, %v2130
      %v2163 = vsel %vm2099, %v1997, %v2131
      %v2164 = vsel %vm2100, %v2002, %v2132
      %v2165 = vsel %vm2101, %v2007, %v2133
      %v2166 = vsel %vm2102, %v2012, %v2134
      %v2167 = vsel %vm2103, %v2017, %v2135
      %v2168 = vsel %vm2104, %v2022, %v2136
      %v2169 = vsel %vm2105, %v2027, %v2137
      %v2170 = vsel %vm2106, %v2032, %v2138
      %v2171 = vsel %vm2107, %v2037, %v2139
      %v2172 = vsel %vm2108, %v2042, %v2140
      %v2173 = vsel %vm2109, %v2047, %v2141
      %v2174 = vsel %vm2110, %v2052, %v2142
      %v2175 = vsel %vm2111, %v2057, %v2143
      %v2176 = vsel %vm2112, %v2062, %v2144
      %v2177 = vsel %vm2113, %v2067, %v2145
      %v2178 = vsel %vm2114, %v2072, %v2146
      %v2179 = vsel %vm2115, %v2077, %v2147
      %v2180 = vsel %vm2116, %v2082, %v2148
      %v2181 = vld [vmem:[%s3] sm:$0xf]
      %v2182 = vld [vmem:[%s4] sm:$0x1]
      %v2184 = vlaneseq
      %v2185 = vshrl.u32 %v2184, 7
      %v2186 = vsub.s32 0, %v2185
      %v2187 = vrot.slane %v2182, %v2186
      %v2190 = vsel %vm347, %v2149, 0
      %v2193 = vsel %vm347, %v2150, 0
      %v2196 = vsel %vm347, %v2151, 0
      %v2199 = vsel %vm347, %v2152, 0
      %v2202 = vsel %vm347, %v2153, 0
      %v2205 = vsel %vm347, %v2154, 0
      %v2208 = vsel %vm347, %v2155, 0
      %v2211 = vsel %vm347, %v2156, 0
      %v2214 = vsel %vm347, %v2157, 0
      %v2217 = vsel %vm347, %v2158, 0
      %v2220 = vsel %vm347, %v2159, 0
      %v2223 = vsel %vm347, %v2160, 0
      %v2226 = vsel %vm347, %v2161, 0
      %v2229 = vsel %vm347, %v2162, 0
      %v2232 = vsel %vm347, %v2163, 0
      %v2235 = vsel %vm347, %v2164, 0
      %v2238 = vsel %vm347, %v2165, 0
      %v2241 = vsel %vm347, %v2166, 0
      %v2244 = vsel %vm347, %v2167, 0
      %v2247 = vsel %vm347, %v2168, 0
      %v2250 = vsel %vm347, %v2169, 0
      %v2253 = vsel %vm347, %v2170, 0
      %v2256 = vsel %vm347, %v2171, 0
      %v2259 = vsel %vm347, %v2172, 0
      %v2262 = vsel %vm347, %v2173, 0
      %v2265 = vsel %vm347, %v2174, 0
      %v2268 = vsel %vm347, %v2175, 0
      %v2271 = vsel %vm347, %v2176, 0
      %v2274 = vsel %vm347, %v2177, 0
      %v2277 = vsel %vm347, %v2178, 0
      %v2280 = vsel %vm347, %v2179, 0
      %v2283 = vsel %vm347, %v2180, 0
      %v2286 = vsel %vm1856, %v2181, 0
      %2288 = vmatprep.subr.mxu0 0.0
      %2289 = vmatpush1.msra.mxu0 %v2286
      %2290 = vmatprep.subr.mxu0 0.0
      %2291 = vmatpush1.msra.mxu0 0.0
      %2292 = vmatprep.subr.mxu0 0.0
      %2293 = vmatpush1.msra.mxu0 0.0
      %2294 = vmatprep.subr.mxu0 0.0
      %2295 = vmatpush1.msra.mxu0 0.0
      %2296 = vmatprep.subr.mxu0 0.0
      %2297 = vmatpush1.msra.mxu0 0.0
      %2298 = vmatprep.subr.mxu0 0.0
      %2299 = vmatpush1.msra.mxu0 0.0
      %2300 = vmatprep.subr.mxu0 0.0
      %2301 = vmatpush1.msra.mxu0 0.0
      %2302 = vmatprep.subr.mxu0 0.0
      %2303 = vmatpush1.msra.mxu0 0.0
      %2304 = vmatprep.subr.mxu0 0.0
      %2305 = vmatpush1.msra.mxu0 0.0
      %2306 = vmatprep.subr.mxu0 0.0
      %2307 = vmatpush1.msra.mxu0 0.0
      %2308 = vmatprep.subr.mxu0 0.0
      %2309 = vmatpush1.msra.mxu0 0.0
      %2310 = vmatprep.subr.mxu0 0.0
      %2311 = vmatpush1.msra.mxu0 0.0
      %2312 = vmatprep.subr.mxu0 0.0
      %2313 = vmatpush1.msra.mxu0 0.0
      %2314 = vmatprep.subr.mxu0 0.0
      %2315 = vmatpush1.msra.mxu0 0.0
      %2316 = vmatprep.subr.mxu0 0.0
      %2317 = vmatpush1.msra.mxu0 0.0
      %2318 = vmatprep.subr.mxu0 0.0
      %2319 = vmatpush1.msra.mxu0 0.0
      %2320 = vmatprep.subr.mxu0 0.0
      %2321 = vmatpush1.msra.mxu0 0.0
      %2322 = vmatprep.subr.mxu0 0.0
      %2323 = vmatpush1.msra.mxu0 0.0
      %2324 = vmatprep.subr.mxu0 0.0
      %2325 = vmatpush1.msra.mxu0 0.0
      %2326 = vmatprep.subr.mxu0 0.0
      %2327 = vmatpush1.msra.mxu0 0.0
      %2328 = vmatprep.subr.mxu0 0.0
      %2329 = vmatpush1.msra.mxu0 0.0
      %2330 = vmatprep.subr.mxu0 0.0
      %2331 = vmatpush1.msra.mxu0 0.0
      %2332 = vmatprep.subr.mxu0 0.0
      %2333 = vmatpush1.msra.mxu0 0.0
      %2334 = vmatprep.subr.mxu0 0.0
      %2335 = vmatpush1.msra.mxu0 0.0
      %2336 = vmatprep.subr.mxu0 0.0
      %2337 = vmatpush1.msra.mxu0 0.0
      %2338 = vmatprep.subr.mxu0 0.0
      %2339 = vmatpush1.msra.mxu0 0.0
      %2340 = vmatprep.subr.mxu0 0.0
      %2341 = vmatpush1.msra.mxu0 0.0
      %2342 = vmatprep.subr.mxu0 0.0
      %2343 = vmatpush1.msra.mxu0 0.0
      %2344 = vmatprep.subr.mxu0 0.0
      %2345 = vmatpush1.msra.mxu0 0.0
      %2346 = vmatprep.subr.mxu0 0.0
      %2347 = vmatpush1.msra.mxu0 0.0
      %2348 = vmatprep.subr.mxu0 0.0
      %2349 = vmatpush1.msra.mxu0 0.0
      %2350 = vmatprep.subr.mxu0 0.0
      %2351 = vmatpush1.msra.mxu0 0.0
      %2352 = vmatprep.mubr.f32.mxu0 0.0
      %2353 = vmatmul.mubr.f32.gmra.mrb[0].mxu0 %v2190
      %v2354 = vpop.f32.mrb[0].mxu0
      %v2355 = vadd.f32 %v2187, %v2354
      %v2356 = vpop.f32.mrb[0].mxu0
      %2357 = vmatprep.mubr.f32.mxu0 0.0
      %2358 = vmatmul.mubr.f32.gmra.mrb[0].mxu0 %v2193
      %v2359 = vpop.f32.mrb[0].mxu0
      %v2360 = vadd.f32 %v2187, %v2359
      %v2361 = vpop.f32.mrb[0].mxu0
      %2362 = vmatprep.mubr.f32.mxu0 0.0
      %2363 = vmatmul.mubr.f32.gmra.mrb[0].mxu0 %v2196
      %v2364 = vpop.f32.mrb[0].mxu0
      %v2365 = vadd.f32 %v2187, %v2364
      %v2366 = vpop.f32.mrb[0].mxu0
      %2367 = vmatprep.mubr.f32.mxu0 0.0
      %2368 = vmatmul.mubr.f32.gmra.mrb[0].mxu0 %v2199
      %v2369 = vpop.f32.mrb[0].mxu0
      %v2370 = vadd.f32 %v2187, %v2369
      %v2371 = vpop.f32.mrb[0].mxu0
      %2372 = vmatprep.mubr.f32.mxu0 0.0
      %2373 = vmatmul.mubr.f32.gmra.mrb[0].mxu0 %v2202
      %v2374 = vpop.f32.mrb[0].mxu0
      %v2375 = vadd.f32 %v2187, %v2374
      %v2376 = vpop.f32.mrb[0].mxu0
      %2377 = vmatprep.mubr.f32.mxu0 0.0
      %2378 = vmatmul.mubr.f32.gmra.mrb[0].mxu0 %v2205
      %v2379 = vpop.f32.mrb[0].mxu0
      %v2380 = vadd.f32 %v2187, %v2379
      %v2381 = vpop.f32.mrb[0].mxu0
      %2382 = vmatprep.mubr.f32.mxu0 0.0
      %2383 = vmatmul.mubr.f32.gmra.mrb[0].mxu0 %v2208
      %v2384 = vpop.f32.mrb[0].mxu0
      %v2385 = vadd.f32 %v2187, %v2384
      %v2386 = vpop.f32.mrb[0].mxu0
      %2387 = vmatprep.mubr.f32.mxu0 0.0
      %2388 = vmatmul.mubr.f32.gmra.mrb[0].mxu0 %v2211
      %v2389 = vpop.f32.mrb[0].mxu0
      %v2390 = vadd.f32 %v2187, %v2389
      %v2391 = vpop.f32.mrb[0].mxu0
      %2392 = vmatprep.mubr.f32.mxu0 0.0
      %2393 = vmatmul.mubr.f32.gmra.mrb[0].mxu0 %v2214
      %v2394 = vpop.f32.mrb[0].mxu0
      %v2395 = vadd.f32 %v2187, %v2394
      %v2396 = vpop.f32.mrb[0].mxu0
      %2397 = vmatprep.mubr.f32.mxu0 0.0
      %2398 = vmatmul.mubr.f32.gmra.mrb[0].mxu0 %v2217
      %v2399 = vpop.f32.mrb[0].mxu0
      %v2400 = vadd.f32 %v2187, %v2399
      %v2401 = vpop.f32.mrb[0].mxu0
      %2402 = vmatprep.mubr.f32.mxu0 0.0
      %2403 = vmatmul.mubr.f32.gmra.mrb[0].mxu0 %v2220
      %v2404 = vpop.f32.mrb[0].mxu0
      %v2405 = vadd.f32 %v2187, %v2404
      %v2406 = vpop.f32.mrb[0].mxu0
      %2407 = vmatprep.mubr.f32.mxu0 0.0
      %2408 = vmatmul.mubr.f32.gmra.mrb[0].mxu0 %v2223
      %v2409 = vpop.f32.mrb[0].mxu0
      %v2410 = vadd.f32 %v2187, %v2409
      %v2411 = vpop.f32.mrb[0].mxu0
      %2412 = vmatprep.mubr.f32.mxu0 0.0
      %2413 = vmatmul.mubr.f32.gmra.mrb[0].mxu0 %v2226
      %v2414 = vpop.f32.mrb[0].mxu0
      %v2415 = vadd.f32 %v2187, %v2414
      %v2416 = vpop.f32.mrb[0].mxu0
      %2417 = vmatprep.mubr.f32.mxu0 0.0
      %2418 = vmatmul.mubr.f32.gmra.mrb[0].mxu0 %v2229
      %v2419 = vpop.f32.mrb[0].mxu0
      %v2420 = vadd.f32 %v2187, %v2419
      %v2421 = vpop.f32.mrb[0].mxu0
      %2422 = vmatprep.mubr.f32.mxu0 0.0
      %2423 = vmatmul.mubr.f32.gmra.mrb[0].mxu0 %v2232
      %v2424 = vpop.f32.mrb[0].mxu0
      %v2425 = vadd.f32 %v2187, %v2424
      %v2426 = vpop.f32.mrb[0].mxu0
      %2427 = vmatprep.mubr.f32.mxu0 0.0
      %2428 = vmatmul.mubr.f32.gmra.mrb[0].mxu0 %v2235
      %v2429 = vpop.f32.mrb[0].mxu0
      %v2430 = vadd.f32 %v2187, %v2429
      %v2431 = vpop.f32.mrb[0].mxu0
      %2432 = vmatprep.mubr.f32.mxu0 0.0
      %2433 = vmatmul.mubr.f32.gmra.mrb[0].mxu0 %v2238
      %v2434 = vpop.f32.mrb[0].mxu0
      %v2435 = vadd.f32 %v2187, %v2434
      %v2436 = vpop.f32.mrb[0].mxu0
      %2437 = vmatprep.mubr.f32.mxu0 0.0
      %2438 = vmatmul.mubr.f32.gmra.mrb[0].mxu0 %v2241
      %v2439 = vpop.f32.mrb[0].mxu0
      %v2440 = vadd.f32 %v2187, %v2439
      %v2441 = vpop.f32.mrb[0].mxu0
      %2442 = vmatprep.mubr.f32.mxu0 0.0
      %2443 = vmatmul.mubr.f32.gmra.mrb[0].mxu0 %v2244
      %v2444 = vpop.f32.mrb[0].mxu0
      %v2445 = vadd.f32 %v2187, %v2444
      %v2446 = vpop.f32.mrb[0].mxu0
      %2447 = vmatprep.mubr.f32.mxu0 0.0
      %2448 = vmatmul.mubr.f32.gmra.mrb[0].mxu0 %v2247
      %v2449 = vpop.f32.mrb[0].mxu0
      %v2450 = vadd.f32 %v2187, %v2449
      %v2451 = vpop.f32.mrb[0].mxu0
      %2452 = vmatprep.mubr.f32.mxu0 0.0
      %2453 = vmatmul.mubr.f32.gmra.mrb[0].mxu0 %v2250
      %v2454 = vpop.f32.mrb[0].mxu0
      %v2455 = vadd.f32 %v2187, %v2454
      %v2456 = vpop.f32.mrb[0].mxu0
      %2457 = vmatprep.mubr.f32.mxu0 0.0
      %2458 = vmatmul.mubr.f32.gmra.mrb[0].mxu0 %v2253
      %v2459 = vpop.f32.mrb[0].mxu0
      %v2460 = vadd.f32 %v2187, %v2459
      %v2461 = vpop.f32.mrb[0].mxu0
      %2462 = vmatprep.mubr.f32.mxu0 0.0
      %2463 = vmatmul.mubr.f32.gmra.mrb[0].mxu0 %v2256
      %v2464 = vpop.f32.mrb[0].mxu0
      %v2465 = vadd.f32 %v2187, %v2464
      %v2466 = vpop.f32.mrb[0].mxu0
      %2467 = vmatprep.mubr.f32.mxu0 0.0
      %2468 = vmatmul.mubr.f32.gmra.mrb[0].mxu0 %v2259
      %v2469 = vpop.f32.mrb[0].mxu0
      %v2470 = vadd.f32 %v2187, %v2469
      %v2471 = vpop.f32.mrb[0].mxu0
      %2472 = vmatprep.mubr.f32.mxu0 0.0
      %2473 = vmatmul.mubr.f32.gmra.mrb[0].mxu0 %v2262
      %v2474 = vpop.f32.mrb[0].mxu0
      %v2475 = vadd.f32 %v2187, %v2474
      %v2476 = vpop.f32.mrb[0].mxu0
      %2477 = vmatprep.mubr.f32.mxu0 0.0
      %2478 = vmatmul.mubr.f32.gmra.mrb[0].mxu0 %v2265
      %v2479 = vpop.f32.mrb[0].mxu0
      %v2480 = vadd.f32 %v2187, %v2479
      %v2481 = vpop.f32.mrb[0].mxu0
      %2482 = vmatprep.mubr.f32.mxu0 0.0
      %2483 = vmatmul.mubr.f32.gmra.mrb[0].mxu0 %v2268
      %v2484 = vpop.f32.mrb[0].mxu0
      %v2485 = vadd.f32 %v2187, %v2484
      %v2486 = vpop.f32.mrb[0].mxu0
      %2487 = vmatprep.mubr.f32.mxu0 0.0
      %2488 = vmatmul.mubr.f32.gmra.mrb[0].mxu0 %v2271
      %v2489 = vpop.f32.mrb[0].mxu0
      %v2490 = vadd.f32 %v2187, %v2489
      %v2491 = vpop.f32.mrb[0].mxu0
      %2492 = vmatprep.mubr.f32.mxu0 0.0
      %2493 = vmatmul.mubr.f32.gmra.mrb[0].mxu0 %v2274
      %v2494 = vpop.f32.mrb[0].mxu0
      %v2495 = vadd.f32 %v2187, %v2494
      %v2496 = vpop.f32.mrb[0].mxu0
      %2497 = vmatprep.mubr.f32.mxu0 0.0
      %2498 = vmatmul.mubr.f32.gmra.mrb[0].mxu0 %v2277
      %v2499 = vpop.f32.mrb[0].mxu0
      %v2500 = vadd.f32 %v2187, %v2499
      %v2501 = vpop.f32.mrb[0].mxu0
      %2502 = vmatprep.mubr.f32.mxu0 0.0
      %2503 = vmatmul.mubr.f32.gmra.mrb[0].mxu0 %v2280
      %v2504 = vpop.f32.mrb[0].mxu0
      %v2505 = vadd.f32 %v2187, %v2504
      %v2506 = vpop.f32.mrb[0].mxu0
      %2507 = vmatprep.mubr.f32.mxu0 0.0
      %2508 = vmatmul.mubr.f32.gmra.mrb[0].mxu0 %v2283
      %v2509 = vpop.f32.mrb[0].mxu0
      %v2510 = vadd.f32 %v2187, %v2509
      %v2511 = vpop.f32.mrb[0].mxu0
      %2512 = vdwg.mxu0
      %vm2513 = vcmp.gt.f32.partialorder %v2355, 0.0
      %vm2514 = vcmp.gt.f32.partialorder %v2360, 0.0
      %vm2515 = vcmp.gt.f32.partialorder %v2365, 0.0
      %vm2516 = vcmp.gt.f32.partialorder %v2370, 0.0
      %vm2517 = vcmp.gt.f32.partialorder %v2375, 0.0
      %vm2518 = vcmp.gt.f32.partialorder %v2380, 0.0
      %vm2519 = vcmp.gt.f32.partialorder %v2385, 0.0
      %vm2520 = vcmp.gt.f32.partialorder %v2390, 0.0
      %vm2521 = vcmp.gt.f32.partialorder %v2395, 0.0
      %vm2522 = vcmp.gt.f32.partialorder %v2400, 0.0
      %vm2523 = vcmp.gt.f32.partialorder %v2405, 0.0
      %vm2524 = vcmp.gt.f32.partialorder %v2410, 0.0
      %vm2525 = vcmp.gt.f32.partialorder %v2415, 0.0
      %vm2526 = vcmp.gt.f32.partialorder %v2420, 0.0
      %vm2527 = vcmp.gt.f32.partialorder %v2425, 0.0
      %vm2528 = vcmp.gt.f32.partialorder %v2430, 0.0
      %vm2529 = vcmp.gt.f32.partialorder %v2435, 0.0
      %vm2530 = vcmp.gt.f32.partialorder %v2440, 0.0
      %vm2531 = vcmp.gt.f32.partialorder %v2445, 0.0
      %vm2532 = vcmp.gt.f32.partialorder %v2450, 0.0
      %vm2533 = vcmp.gt.f32.partialorder %v2455, 0.0
      %vm2534 = vcmp.gt.f32.partialorder %v2460, 0.0
      %vm2535 = vcmp.gt.f32.partialorder %v2465, 0.0
      %vm2536 = vcmp.gt.f32.partialorder %v2470, 0.0
      %vm2537 = vcmp.gt.f32.partialorder %v2475, 0.0
      %vm2538 = vcmp.gt.f32.partialorder %v2480, 0.0
      %vm2539 = vcmp.gt.f32.partialorder %v2485, 0.0
      %vm2540 = vcmp.gt.f32.partialorder %v2490, 0.0
      %vm2541 = vcmp.gt.f32.partialorder %v2495, 0.0
      %vm2542 = vcmp.gt.f32.partialorder %v2500, 0.0
      %vm2543 = vcmp.gt.f32.partialorder %v2505, 0.0
      %vm2544 = vcmp.gt.f32.partialorder %v2510, 0.0
      %v2545 = vmul.f32 %v2355, 0.2
      %v2546 = vmul.f32 %v2360, 0.2
      %v2547 = vmul.f32 %v2365, 0.2
      %v2548 = vmul.f32 %v2370, 0.2
      %v2549 = vmul.f32 %v2375, 0.2
      %v2550 = vmul.f32 %v2380, 0.2
      %v2551 = vmul.f32 %v2385, 0.2
      %v2552 = vmul.f32 %v2390, 0.2
      %v2553 = vmul.f32 %v2395, 0.2
      %v2554 = vmul.f32 %v2400, 0.2
      %v2555 = vmul.f32 %v2405, 0.2
      %v2556 = vmul.f32 %v2410, 0.2
      %v2557 = vmul.f32 %v2415, 0.2
      %v2558 = vmul.f32 %v2420, 0.2
      %v2559 = vmul.f32 %v2425, 0.2
      %v2560 = vmul.f32 %v2430, 0.2
      %v2561 = vmul.f32 %v2435, 0.2
      %v2562 = vmul.f32 %v2440, 0.2
      %v2563 = vmul.f32 %v2445, 0.2
      %v2564 = vmul.f32 %v2450, 0.2
      %v2565 = vmul.f32 %v2455, 0.2
      %v2566 = vmul.f32 %v2460, 0.2
      %v2567 = vmul.f32 %v2465, 0.2
      %v2568 = vmul.f32 %v2470, 0.2
      %v2569 = vmul.f32 %v2475, 0.2
      %v2570 = vmul.f32 %v2480, 0.2
      %v2571 = vmul.f32 %v2485, 0.2
      %v2572 = vmul.f32 %v2490, 0.2
      %v2573 = vmul.f32 %v2495, 0.2
      %v2574 = vmul.f32 %v2500, 0.2
      %v2575 = vmul.f32 %v2505, 0.2
      %v2576 = vmul.f32 %v2510, 0.2
      %v2577 = vsel %vm2513, %v2355, %v2545
      %v2578 = vsel %vm2514, %v2360, %v2546
      %v2579 = vsel %vm2515, %v2365, %v2547
      %v2580 = vsel %vm2516, %v2370, %v2548
      %v2581 = vsel %vm2517, %v2375, %v2549
      %v2582 = vsel %vm2518, %v2380, %v2550
      %v2583 = vsel %vm2519, %v2385, %v2551
      %v2584 = vsel %vm2520, %v2390, %v2552
      %v2585 = vsel %vm2521, %v2395, %v2553
      %v2586 = vsel %vm2522, %v2400, %v2554
      %v2587 = vsel %vm2523, %v2405, %v2555
      %v2588 = vsel %vm2524, %v2410, %v2556
      %v2589 = vsel %vm2525, %v2415, %v2557
      %v2590 = vsel %vm2526, %v2420, %v2558
      %v2591 = vsel %vm2527, %v2425, %v2559
      %v2592 = vsel %vm2528, %v2430, %v2560
      %v2593 = vsel %vm2529, %v2435, %v2561
      %v2594 = vsel %vm2530, %v2440, %v2562
      %v2595 = vsel %vm2531, %v2445, %v2563
      %v2596 = vsel %vm2532, %v2450, %v2564
      %v2597 = vsel %vm2533, %v2455, %v2565
      %v2598 = vsel %vm2534, %v2460, %v2566
      %v2599 = vsel %vm2535, %v2465, %v2567
      %v2600 = vsel %vm2536, %v2470, %v2568
      %v2601 = vsel %vm2537, %v2475, %v2569
      %v2602 = vsel %vm2538, %v2480, %v2570
      %v2603 = vsel %vm2539, %v2485, %v2571
      %v2604 = vsel %vm2540, %v2490, %v2572
      %v2605 = vsel %vm2541, %v2495, %v2573
      %v2606 = vsel %vm2542, %v2500, %v2574
      %v2607 = vsel %vm2543, %v2505, %v2575
      %v2608 = vsel %vm2544, %v2510, %v2576
      %2609 = vst.msk [vmem:[#allocation3] sm:$0xff] %vm347, 0.0
      %2610 = vst.msk [vmem:[#allocation3 + $0x8] sm:$0xff] %vm347, 0.0
      %2611 = vst.msk [vmem:[#allocation3 + $0x10] sm:$0x3] %vm350, 0.0
      %s2612 = scalar_lea.vmem [#allocation3], 408
      %2613 = vst.msk [vmem:[%s2612] sm:$0xff] %vm347, 0.0
      %2614 = vst.msk [vmem:[%s2612 + $0x8] sm:$0xff] %vm347, 0.0
      %2615 = vst.msk [vmem:[%s2612 + $0x10] sm:$0x3] %vm350, 0.0
      %2616 = vst.msk [vmem:[#allocation3] sm:$0x1] %vm356, 0.0
      %2617 = vst.msk [vmem:[#allocation3 + $0x18] sm:$0x1] %vm356, 0.0
      %2618 = vst.msk [vmem:[#allocation3 + $0x30] sm:$0x1] %vm356, 0.0
      %2619 = vst.msk [vmem:[#allocation3 + $0x48] sm:$0x1] %vm356, 0.0
      %2620 = vst.msk [vmem:[#allocation3 + $0x60] sm:$0x1] %vm356, 0.0
      %2621 = vst.msk [vmem:[#allocation3 + $0x78] sm:$0x1] %vm356, 0.0
      %2622 = vst.msk [vmem:[#allocation3 + $0x90] sm:$0x1] %vm356, 0.0
      %2623 = vst.msk [vmem:[#allocation3 + $0xa8] sm:$0x1] %vm356, 0.0
      %2624 = vst.msk [vmem:[#allocation3 + $0xc0] sm:$0x1] %vm356, 0.0
      %2625 = vst.msk [vmem:[#allocation3 + $0xd8] sm:$0x1] %vm356, 0.0
      %2626 = vst.msk [vmem:[#allocation3 + $0xf0] sm:$0x1] %vm356, 0.0
      %2627 = vst.msk [vmem:[#allocation3 + $0x108] sm:$0x1] %vm356, 0.0
      %2628 = vst.msk [vmem:[#allocation3 + $0x120] sm:$0x1] %vm356, 0.0
      %2629 = vst.msk [vmem:[#allocation3 + $0x138] sm:$0x1] %vm356, 0.0
      %2630 = vst.msk [vmem:[#allocation3 + $0x150] sm:$0x1] %vm356, 0.0
      %2631 = vst.msk [vmem:[#allocation3 + $0x168] sm:$0x1] %vm356, 0.0
      %2632 = vst.msk [vmem:[#allocation3 + $0x180] sm:$0x1] %vm356, 0.0
      %2633 = vst.msk [vmem:[#allocation3 + $0x198] sm:$0x1] %vm356, 0.0
      %2634 = vst.msk [vmem:[#allocation3 + $0x11] sm:$0x1] %vm356, 0.0
      %2635 = vst.msk [vmem:[#allocation3 + $0x29] sm:$0x1] %vm356, 0.0
      %2636 = vst.msk [vmem:[#allocation3 + $0x41] sm:$0x1] %vm356, 0.0
      %2637 = vst.msk [vmem:[#allocation3 + $0x59] sm:$0x1] %vm356, 0.0
      %2638 = vst.msk [vmem:[#allocation3 + $0x71] sm:$0x1] %vm356, 0.0
      %2639 = vst.msk [vmem:[#allocation3 + $0x89] sm:$0x1] %vm356, 0.0
      %2640 = vst.msk [vmem:[#allocation3 + $0xa1] sm:$0x1] %vm356, 0.0
      %2641 = vst.msk [vmem:[#allocation3 + $0xb9] sm:$0x1] %vm356, 0.0
      %2642 = vst.msk [vmem:[#allocation3 + $0xd1] sm:$0x1] %vm356, 0.0
      %2643 = vst.msk [vmem:[#allocation3 + $0xe9] sm:$0x1] %vm356, 0.0
      %2644 = vst.msk [vmem:[#allocation3 + $0x101] sm:$0x1] %vm356, 0.0
      %2645 = vst.msk [vmem:[#allocation3 + $0x119] sm:$0x1] %vm356, 0.0
      %2646 = vst.msk [vmem:[#allocation3 + $0x131] sm:$0x1] %vm356, 0.0
      %2647 = vst.msk [vmem:[#allocation3 + $0x149] sm:$0x1] %vm356, 0.0
      %2648 = vst.msk [vmem:[#allocation3 + $0x161] sm:$0x1] %vm356, 0.0
      %2649 = vst.msk [vmem:[#allocation3 + $0x179] sm:$0x1] %vm356, 0.0
      %2650 = vst.msk [vmem:[#allocation3 + $0x191] sm:$0x1] %vm356, 0.0
      %2651 = vst.msk [vmem:[#allocation3 + $0x1a9] sm:$0x1] %vm356, 0.0
      %s2652 = scalar_lea.vmem [#allocation3], 24
      %2653 = vst.msk [vmem:[%s2652 + $0x1] sm:$0xff] %vm347, %v2577
      %2654 = vst.msk [vmem:[%s2652 + $0x9] sm:$0xff] %vm347, %v2578
      %2655 = vst.msk [vmem:[%s2652 + $0x19] sm:$0xff] %vm347, %v2579
      %2656 = vst.msk [vmem:[%s2652 + $0x21] sm:$0xff] %vm347, %v2580
      %2657 = vst.msk [vmem:[%s2652 + $0x31] sm:$0xff] %vm347, %v2581
      %2658 = vst.msk [vmem:[%s2652 + $0x39] sm:$0xff] %vm347, %v2582
      %2659 = vst.msk [vmem:[%s2652 + $0x49] sm:$0xff] %vm347, %v2583
      %2660 = vst.msk [vmem:[%s2652 + $0x51] sm:$0xff] %vm347, %v2584
      %2661 = vst.msk [vmem:[%s2652 + $0x61] sm:$0xff] %vm347, %v2585
      %2662 = vst.msk [vmem:[%s2652 + $0x69] sm:$0xff] %vm347, %v2586
      %2663 = vst.msk [vmem:[%s2652 + $0x79] sm:$0xff] %vm347, %v2587
      %2664 = vst.msk [vmem:[%s2652 + $0x81] sm:$0xff] %vm347, %v2588
      %2665 = vst.msk [vmem:[%s2652 + $0x91] sm:$0xff] %vm347, %v2589
      %2666 = vst.msk [vmem:[%s2652 + $0x99] sm:$0xff] %vm347, %v2590
      %2667 = vst.msk [vmem:[%s2652 + $0xa9] sm:$0xff] %vm347, %v2591
      %2668 = vst.msk [vmem:[%s2652 + $0xb1] sm:$0xff] %vm347, %v2592
      %2669 = vst.msk [vmem:[%s2652 + $0xc1] sm:$0xff] %vm347, %v2593
      %2670 = vst.msk [vmem:[%s2652 + $0xc9] sm:$0xff] %vm347, %v2594
      %2671 = vst.msk [vmem:[%s2652 + $0xd9] sm:$0xff] %vm347, %v2595
      %2672 = vst.msk [vmem:[%s2652 + $0xe1] sm:$0xff] %vm347, %v2596
      %2673 = vst.msk [vmem:[%s2652 + $0xf1] sm:$0xff] %vm347, %v2597
      %2674 = vst.msk [vmem:[%s2652 + $0xf9] sm:$0xff] %vm347, %v2598
      %2675 = vst.msk [vmem:[%s2652 + $0x109] sm:$0xff] %vm347, %v2599
      %2676 = vst.msk [vmem:[%s2652 + $0x111] sm:$0xff] %vm347, %v2600
      %2677 = vst.msk [vmem:[%s2652 + $0x121] sm:$0xff] %vm347, %v2601
      %2678 = vst.msk [vmem:[%s2652 + $0x129] sm:$0xff] %vm347, %v2602
      %2679 = vst.msk [vmem:[%s2652 + $0x139] sm:$0xff] %vm347, %v2603
      %2680 = vst.msk [vmem:[%s2652 + $0x141] sm:$0xff] %vm347, %v2604
      %2681 = vst.msk [vmem:[%s2652 + $0x151] sm:$0xff] %vm347, %v2605
      %2682 = vst.msk [vmem:[%s2652 + $0x159] sm:$0xff] %vm347, %v2606
      %2683 = vst.msk [vmem:[%s2652 + $0x169] sm:$0xff] %vm347, %v2607
      %2684 = vst.msk [vmem:[%s2652 + $0x171] sm:$0xff] %vm347, %v2608
      %v2685 = vld [vmem:[#allocation3] sm:$0xff]
      %v2686 = vld [vmem:[#allocation3 + $0x8] sm:$0xff]
      %v2687 = vld [vmem:[#allocation3 + $0x10] sm:$0x3]
      %v2688 = vld [vmem:[#allocation3 + $0x18] sm:$0xff]
      %v2689 = vld [vmem:[#allocation3 + $0x20] sm:$0xff]
      %v2690 = vld [vmem:[#allocation3 + $0x28] sm:$0x3]
      %v2691 = vld [vmem:[#allocation3 + $0x30] sm:$0xff]
      %v2692 = vld [vmem:[#allocation3 + $0x38] sm:$0xff]
      %v2693 = vld [vmem:[#allocation3 + $0x40] sm:$0x3]
      %v2694 = vld [vmem:[#allocation3 + $0x48] sm:$0xff]
      %v2695 = vld [vmem:[#allocation3 + $0x50] sm:$0xff]
      %v2696 = vld [vmem:[#allocation3 + $0x58] sm:$0x3]
      %v2697 = vld [vmem:[#allocation3 + $0x60] sm:$0xff]
      %v2698 = vld [vmem:[#allocation3 + $0x68] sm:$0xff]
      %v2699 = vld [vmem:[#allocation3 + $0x70] sm:$0x3]
      %v2700 = vld [vmem:[#allocation3 + $0x78] sm:$0xff]
      %v2701 = vld [vmem:[#allocation3 + $0x80] sm:$0xff]
      %v2702 = vld [vmem:[#allocation3 + $0x88] sm:$0x3]
      %v2703 = vld [vmem:[#allocation3 + $0x90] sm:$0xff]
      %v2704 = vld [vmem:[#allocation3 + $0x98] sm:$0xff]
      %v2705 = vld [vmem:[#allocation3 + $0xa0] sm:$0x3]
      %v2706 = vld [vmem:[#allocation3 + $0xa8] sm:$0xff]
      %v2707 = vld [vmem:[#allocation3 + $0xb0] sm:$0xff]
      %v2708 = vld [vmem:[#allocation3 + $0xb8] sm:$0x3]
      %v2709 = vld [vmem:[#allocation3 + $0xc0] sm:$0xff]
      %v2710 = vld [vmem:[#allocation3 + $0xc8] sm:$0xff]
      %v2711 = vld [vmem:[#allocation3 + $0xd0] sm:$0x3]
      %v2712 = vld [vmem:[#allocation3 + $0xd8] sm:$0xff]
      %v2713 = vld [vmem:[#allocation3 + $0xe0] sm:$0xff]
      %v2714 = vld [vmem:[#allocation3 + $0xe8] sm:$0x3]
      %v2715 = vld [vmem:[#allocation3 + $0xf0] sm:$0xff]
      %v2716 = vld [vmem:[#allocation3 + $0xf8] sm:$0xff]
      %v2717 = vld [vmem:[#allocation3 + $0x100] sm:$0x3]
      %v2718 = vld [vmem:[#allocation3 + $0x108] sm:$0xff]
      %v2719 = vld [vmem:[#allocation3 + $0x110] sm:$0xff]
      %v2720 = vld [vmem:[#allocation3 + $0x118] sm:$0x3]
      %v2721 = vld [vmem:[#allocation3 + $0x120] sm:$0xff]
      %v2722 = vld [vmem:[#allocation3 + $0x128] sm:$0xff]
      %v2723 = vld [vmem:[#allocation3 + $0x130] sm:$0x3]
      %v2724 = vld [vmem:[#allocation3 + $0x138] sm:$0xff]
      %v2725 = vld [vmem:[#allocation3 + $0x140] sm:$0xff]
      %v2726 = vld [vmem:[#allocation3 + $0x148] sm:$0x3]
      %v2727 = vld [vmem:[#allocation3 + $0x150] sm:$0xff]
      %v2728 = vld [vmem:[#allocation3 + $0x158] sm:$0xff]
      %v2729 = vld [vmem:[#allocation3 + $0x160] sm:$0x3]
      %v2730 = vld [vmem:[#allocation3 + $0x168] sm:$0xff]
      %v2731 = vld [vmem:[#allocation3 + $0x170] sm:$0xff]
      %v2732 = vld [vmem:[#allocation3 + $0x178] sm:$0x3]
      %v2733 = vld [vmem:[#allocation3 + $0x180] sm:$0xff]
      %v2734 = vld [vmem:[#allocation3 + $0x188] sm:$0xff]
      %v2735 = vld [vmem:[#allocation3 + $0x190] sm:$0x3]
      %v2736 = vld [vmem:[#allocation3 + $0x198] sm:$0xff]
      %v2737 = vld [vmem:[#allocation3 + $0x1a0] sm:$0xff]
      %v2738 = vld [vmem:[#allocation3 + $0x1a8] sm:$0x3]
      %v2787 = vrot.slane %v2685, 1
      %v2788 = vrot.slane %v2686, 1
      %v2789 = vsel %vm528, %v2787, %v2788
      %v2790 = vrot.slane %v2687, 1
      %v2791 = vsel %vm528, %v2788, %v2790
      %v2792 = vrot.slane %v2688, 1
      %v2793 = vrot.slane %v2689, 1
      %v2794 = vsel %vm528, %v2792, %v2793
      %v2795 = vrot.slane %v2690, 1
      %v2796 = vsel %vm528, %v2793, %v2795
      %v2797 = vrot.slane %v2691, 1
      %v2798 = vrot.slane %v2692, 1
      %v2799 = vsel %vm528, %v2797, %v2798
      %v2800 = vrot.slane %v2693, 1
      %v2801 = vsel %vm528, %v2798, %v2800
      %v2802 = vrot.slane %v2694, 1
      %v2803 = vrot.slane %v2695, 1
      %v2804 = vsel %vm528, %v2802, %v2803
      %v2805 = vrot.slane %v2696, 1
      %v2806 = vsel %vm528, %v2803, %v2805
      %v2807 = vrot.slane %v2697, 1
      %v2808 = vrot.slane %v2698, 1
      %v2809 = vsel %vm528, %v2807, %v2808
      %v2810 = vrot.slane %v2699, 1
      %v2811 = vsel %vm528, %v2808, %v2810
      %v2812 = vrot.slane %v2700, 1
      %v2813 = vrot.slane %v2701, 1
      %v2814 = vsel %vm528, %v2812, %v2813
      %v2815 = vrot.slane %v2702, 1
      %v2816 = vsel %vm528, %v2813, %v2815
      %v2817 = vrot.slane %v2703, 1
      %v2818 = vrot.slane %v2704, 1
      %v2819 = vsel %vm528, %v2817, %v2818
      %v2820 = vrot.slane %v2705, 1
      %v2821 = vsel %vm528, %v2818, %v2820
      %v2822 = vrot.slane %v2706, 1
      %v2823 = vrot.slane %v2707, 1
      %v2824 = vsel %vm528, %v2822, %v2823
      %v2825 = vrot.slane %v2708, 1
      %v2826 = vsel %vm528, %v2823, %v2825
      %v2827 = vrot.slane %v2709, 1
      %v2828 = vrot.slane %v2710, 1
      %v2829 = vsel %vm528, %v2827, %v2828
      %v2830 = vrot.slane %v2711, 1
      %v2831 = vsel %vm528, %v2828, %v2830
      %v2832 = vrot.slane %v2712, 1
      %v2833 = vrot.slane %v2713, 1
      %v2834 = vsel %vm528, %v2832, %v2833
      %v2835 = vrot.slane %v2714, 1
      %v2836 = vsel %vm528, %v2833, %v2835
      %v2837 = vrot.slane %v2715, 1
      %v2838 = vrot.slane %v2716, 1
      %v2839 = vsel %vm528, %v2837, %v2838
      %v2840 = vrot.slane %v2717, 1
      %v2841 = vsel %vm528, %v2838, %v2840
      %v2842 = vrot.slane %v2718, 1
      %v2843 = vrot.slane %v2719, 1
      %v2844 = vsel %vm528, %v2842, %v2843
      %v2845 = vrot.slane %v2720, 1
      %v2846 = vsel %vm528, %v2843, %v2845
      %v2847 = vrot.slane %v2721, 1
      %v2848 = vrot.slane %v2722, 1
      %v2849 = vsel %vm528, %v2847, %v2848
      %v2850 = vrot.slane %v2723, 1
      %v2851 = vsel %vm528, %v2848, %v2850
      %v2852 = vrot.slane %v2724, 1
      %v2853 = vrot.slane %v2725, 1
      %v2854 = vsel %vm528, %v2852, %v2853
      %v2855 = vrot.slane %v2726, 1
      %v2856 = vsel %vm528, %v2853, %v2855
      %v2857 = vrot.slane %v2727, 1
      %v2858 = vrot.slane %v2728, 1
      %v2859 = vsel %vm528, %v2857, %v2858
      %v2860 = vrot.slane %v2729, 1
      %v2861 = vsel %vm528, %v2858, %v2860
      %v2862 = vrot.slane %v2730, 1
      %v2863 = vrot.slane %v2731, 1
      %v2864 = vsel %vm528, %v2862, %v2863
      %v2865 = vrot.slane %v2732, 1
      %v2866 = vsel %vm528, %v2863, %v2865
      %2867 = vrot.lane.b32.xlu0 %v2789, 4
      %v2868 = vpop.permute.xlu0 %2867
      %2869 = vrot.lane.b32.xlu0 %v2791, 4
      %v2870 = vpop.permute.xlu0 %2869
      %2871 = vrot.lane.b32.xlu0 %v2794, 4
      %v2872 = vpop.permute.xlu0 %2871
      %2873 = vrot.lane.b32.xlu0 %v2796, 4
      %v2874 = vpop.permute.xlu0 %2873
      %2875 = vrot.lane.b32.xlu0 %v2799, 4
      %v2876 = vpop.permute.xlu0 %2875
      %2877 = vrot.lane.b32.xlu0 %v2801, 4
      %v2878 = vpop.permute.xlu0 %2877
      %2879 = vrot.lane.b32.xlu0 %v2804, 4
      %v2880 = vpop.permute.xlu0 %2879
      %2881 = vrot.lane.b32.xlu0 %v2806, 4
      %v2882 = vpop.permute.xlu0 %2881
      %2883 = vrot.lane.b32.xlu0 %v2809, 4
      %v2884 = vpop.permute.xlu0 %2883
      %2885 = vrot.lane.b32.xlu0 %v2811, 4
      %v2886 = vpop.permute.xlu0 %2885
      %2887 = vrot.lane.b32.xlu0 %v2814, 4
      %v2888 = vpop.permute.xlu0 %2887
      %2889 = vrot.lane.b32.xlu0 %v2816, 4
      %v2890 = vpop.permute.xlu0 %2889
      %2891 = vrot.lane.b32.xlu0 %v2819, 4
      %v2892 = vpop.permute.xlu0 %2891
      %2893 = vrot.lane.b32.xlu0 %v2821, 4
      %v2894 = vpop.permute.xlu0 %2893
      %2895 = vrot.lane.b32.xlu0 %v2824, 4
      %v2896 = vpop.permute.xlu0 %2895
      %2897 = vrot.lane.b32.xlu0 %v2826, 4
      %v2898 = vpop.permute.xlu0 %2897
      %2899 = vrot.lane.b32.xlu0 %v2829, 4
      %v2900 = vpop.permute.xlu0 %2899
      %2901 = vrot.lane.b32.xlu0 %v2831, 4
      %v2902 = vpop.permute.xlu0 %2901
      %2903 = vrot.lane.b32.xlu0 %v2834, 4
      %v2904 = vpop.permute.xlu0 %2903
      %2905 = vrot.lane.b32.xlu0 %v2836, 4
      %v2906 = vpop.permute.xlu0 %2905
      %2907 = vrot.lane.b32.xlu0 %v2839, 4
      %v2908 = vpop.permute.xlu0 %2907
      %2909 = vrot.lane.b32.xlu0 %v2841, 4
      %v2910 = vpop.permute.xlu0 %2909
      %2911 = vrot.lane.b32.xlu0 %v2844, 4
      %v2912 = vpop.permute.xlu0 %2911
      %2913 = vrot.lane.b32.xlu0 %v2846, 4
      %v2914 = vpop.permute.xlu0 %2913
      %2915 = vrot.lane.b32.xlu0 %v2849, 4
      %v2916 = vpop.permute.xlu0 %2915
      %2917 = vrot.lane.b32.xlu0 %v2851, 4
      %v2918 = vpop.permute.xlu0 %2917
      %2919 = vrot.lane.b32.xlu0 %v2854, 4
      %v2920 = vpop.permute.xlu0 %2919
      %2921 = vrot.lane.b32.xlu0 %v2856, 4
      %v2922 = vpop.permute.xlu0 %2921
      %2923 = vrot.lane.b32.xlu0 %v2859, 4
      %v2924 = vpop.permute.xlu0 %2923
      %2925 = vrot.lane.b32.xlu0 %v2861, 4
      %v2926 = vpop.permute.xlu0 %2925
      %2927 = vrot.lane.b32.xlu0 %v2864, 4
      %v2928 = vpop.permute.xlu0 %2927
      %2929 = vrot.lane.b32.xlu0 %v2866, 4
      %v2930 = vpop.permute.xlu0 %2929
      %v2963 = vrot.slane %v2685, 2
      %v2964 = vrot.slane %v2686, 2
      %v2965 = vsel %vm705, %v2963, %v2964
      %v2966 = vrot.slane %v2687, 2
      %v2967 = vsel %vm705, %v2964, %v2966
      %v2968 = vrot.slane %v2688, 2
      %v2969 = vrot.slane %v2689, 2
      %v2970 = vsel %vm705, %v2968, %v2969
      %v2971 = vrot.slane %v2690, 2
      %v2972 = vsel %vm705, %v2969, %v2971
      %v2973 = vrot.slane %v2691, 2
      %v2974 = vrot.slane %v2692, 2
      %v2975 = vsel %vm705, %v2973, %v2974
      %v2976 = vrot.slane %v2693, 2
      %v2977 = vsel %vm705, %v2974, %v2976
      %v2978 = vrot.slane %v2694, 2
      %v2979 = vrot.slane %v2695, 2
      %v2980 = vsel %vm705, %v2978, %v2979
      %v2981 = vrot.slane %v2696, 2
      %v2982 = vsel %vm705, %v2979, %v2981
      %v2983 = vrot.slane %v2697, 2
      %v2984 = vrot.slane %v2698, 2
      %v2985 = vsel %vm705, %v2983, %v2984
      %v2986 = vrot.slane %v2699, 2
      %v2987 = vsel %vm705, %v2984, %v2986
      %v2988 = vrot.slane %v2700, 2
      %v2989 = vrot.slane %v2701, 2
      %v2990 = vsel %vm705, %v2988, %v2989
      %v2991 = vrot.slane %v2702, 2
      %v2992 = vsel %vm705, %v2989, %v2991
      %v2993 = vrot.slane %v2703, 2
      %v2994 = vrot.slane %v2704, 2
      %v2995 = vsel %vm705, %v2993, %v2994
      %v2996 = vrot.slane %v2705, 2
      %v2997 = vsel %vm705, %v2994, %v2996
      %v2998 = vrot.slane %v2706, 2
      %v2999 = vrot.slane %v2707, 2
      %v3000 = vsel %vm705, %v2998, %v2999
      %v3001 = vrot.slane %v2708, 2
      %v3002 = vsel %vm705, %v2999, %v3001
      %v3003 = vrot.slane %v2709, 2
      %v3004 = vrot.slane %v2710, 2
      %v3005 = vsel %vm705, %v3003, %v3004
      %v3006 = vrot.slane %v2711, 2
      %v3007 = vsel %vm705, %v3004, %v3006
      %v3008 = vrot.slane %v2712, 2
      %v3009 = vrot.slane %v2713, 2
      %v3010 = vsel %vm705, %v3008, %v3009
      %v3011 = vrot.slane %v2714, 2
      %v3012 = vsel %vm705, %v3009, %v3011
      %v3013 = vrot.slane %v2715, 2
      %v3014 = vrot.slane %v2716, 2
      %v3015 = vsel %vm705, %v3013, %v3014
      %v3016 = vrot.slane %v2717, 2
      %v3017 = vsel %vm705, %v3014, %v3016
      %v3018 = vrot.slane %v2718, 2
      %v3019 = vrot.slane %v2719, 2
      %v3020 = vsel %vm705, %v3018, %v3019
      %v3021 = vrot.slane %v2720, 2
      %v3022 = vsel %vm705, %v3019, %v3021
      %v3023 = vrot.slane %v2721, 2
      %v3024 = vrot.slane %v2722, 2
      %v3025 = vsel %vm705, %v3023, %v3024
      %v3026 = vrot.slane %v2723, 2
      %v3027 = vsel %vm705, %v3024, %v3026
      %v3028 = vrot.slane %v2724, 2
      %v3029 = vrot.slane %v2725, 2
      %v3030 = vsel %vm705, %v3028, %v3029
      %v3031 = vrot.slane %v2726, 2
      %v3032 = vsel %vm705, %v3029, %v3031
      %v3033 = vrot.slane %v2727, 2
      %v3034 = vrot.slane %v2728, 2
      %v3035 = vsel %vm705, %v3033, %v3034
      %v3036 = vrot.slane %v2729, 2
      %v3037 = vsel %vm705, %v3034, %v3036
      %v3038 = vrot.slane %v2730, 2
      %v3039 = vrot.slane %v2731, 2
      %v3040 = vsel %vm705, %v3038, %v3039
      %v3041 = vrot.slane %v2732, 2
      %v3042 = vsel %vm705, %v3039, %v3041
      %3043 = vrot.lane.b32.xlu0 %v2965, 8
      %v3044 = vpop.permute.xlu0 %3043
      %3045 = vrot.lane.b32.xlu0 %v2967, 8
      %v3046 = vpop.permute.xlu0 %3045
      %3047 = vrot.lane.b32.xlu0 %v2970, 8
      %v3048 = vpop.permute.xlu0 %3047
      %3049 = vrot.lane.b32.xlu0 %v2972, 8
      %v3050 = vpop.permute.xlu0 %3049
      %3051 = vrot.lane.b32.xlu0 %v2975, 8
      %v3052 = vpop.permute.xlu0 %3051
      %3053 = vrot.lane.b32.xlu0 %v2977, 8
      %v3054 = vpop.permute.xlu0 %3053
      %3055 = vrot.lane.b32.xlu0 %v2980, 8
      %v3056 = vpop.permute.xlu0 %3055
      %3057 = vrot.lane.b32.xlu0 %v2982, 8
      %v3058 = vpop.permute.xlu0 %3057
      %3059 = vrot.lane.b32.xlu0 %v2985, 8
      %v3060 = vpop.permute.xlu0 %3059
      %3061 = vrot.lane.b32.xlu0 %v2987, 8
      %v3062 = vpop.permute.xlu0 %3061
      %3063 = vrot.lane.b32.xlu0 %v2990, 8
      %v3064 = vpop.permute.xlu0 %3063
      %3065 = vrot.lane.b32.xlu0 %v2992, 8
      %v3066 = vpop.permute.xlu0 %3065
      %3067 = vrot.lane.b32.xlu0 %v2995, 8
      %v3068 = vpop.permute.xlu0 %3067
      %3069 = vrot.lane.b32.xlu0 %v2997, 8
      %v3070 = vpop.permute.xlu0 %3069
      %3071 = vrot.lane.b32.xlu0 %v3000, 8
      %v3072 = vpop.permute.xlu0 %3071
      %3073 = vrot.lane.b32.xlu0 %v3002, 8
      %v3074 = vpop.permute.xlu0 %3073
      %3075 = vrot.lane.b32.xlu0 %v3005, 8
      %v3076 = vpop.permute.xlu0 %3075
      %3077 = vrot.lane.b32.xlu0 %v3007, 8
      %v3078 = vpop.permute.xlu0 %3077
      %3079 = vrot.lane.b32.xlu0 %v3010, 8
      %v3080 = vpop.permute.xlu0 %3079
      %3081 = vrot.lane.b32.xlu0 %v3012, 8
      %v3082 = vpop.permute.xlu0 %3081
      %3083 = vrot.lane.b32.xlu0 %v3015, 8
      %v3084 = vpop.permute.xlu0 %3083
      %3085 = vrot.lane.b32.xlu0 %v3017, 8
      %v3086 = vpop.permute.xlu0 %3085
      %3087 = vrot.lane.b32.xlu0 %v3020, 8
      %v3088 = vpop.permute.xlu0 %3087
      %3089 = vrot.lane.b32.xlu0 %v3022, 8
      %v3090 = vpop.permute.xlu0 %3089
      %3091 = vrot.lane.b32.xlu0 %v3025, 8
      %v3092 = vpop.permute.xlu0 %3091
      %3093 = vrot.lane.b32.xlu0 %v3027, 8
      %v3094 = vpop.permute.xlu0 %3093
      %3095 = vrot.lane.b32.xlu0 %v3030, 8
      %v3096 = vpop.permute.xlu0 %3095
      %3097 = vrot.lane.b32.xlu0 %v3032, 8
      %v3098 = vpop.permute.xlu0 %3097
      %3099 = vrot.lane.b32.xlu0 %v3035, 8
      %v3100 = vpop.permute.xlu0 %3099
      %3101 = vrot.lane.b32.xlu0 %v3037, 8
      %v3102 = vpop.permute.xlu0 %3101
      %3103 = vrot.lane.b32.xlu0 %v3040, 8
      %v3104 = vpop.permute.xlu0 %3103
      %3105 = vrot.lane.b32.xlu0 %v3042, 8
      %v3106 = vpop.permute.xlu0 %3105
      %3141 = vrot.lane.b32.xlu0 %v2688, 12
      %v3142 = vpop.permute.xlu0 %3141
      %3143 = vrot.lane.b32.xlu0 %v2689, 12
      %v3144 = vpop.permute.xlu0 %3143
      %3145 = vrot.lane.b32.xlu0 %v2691, 12
      %v3146 = vpop.permute.xlu0 %3145
      %3147 = vrot.lane.b32.xlu0 %v2692, 12
      %v3148 = vpop.permute.xlu0 %3147
      %3149 = vrot.lane.b32.xlu0 %v2694, 12
      %v3150 = vpop.permute.xlu0 %3149
      %3151 = vrot.lane.b32.xlu0 %v2695, 12
      %v3152 = vpop.permute.xlu0 %3151
      %3153 = vrot.lane.b32.xlu0 %v2697, 12
      %v3154 = vpop.permute.xlu0 %3153
      %3155 = vrot.lane.b32.xlu0 %v2698, 12
      %v3156 = vpop.permute.xlu0 %3155
      %3157 = vrot.lane.b32.xlu0 %v2700, 12
      %v3158 = vpop.permute.xlu0 %3157
      %3159 = vrot.lane.b32.xlu0 %v2701, 12
      %v3160 = vpop.permute.xlu0 %3159
      %3161 = vrot.lane.b32.xlu0 %v2703, 12
      %v3162 = vpop.permute.xlu0 %3161
      %3163 = vrot.lane.b32.xlu0 %v2704, 12
      %v3164 = vpop.permute.xlu0 %3163
      %3165 = vrot.lane.b32.xlu0 %v2706, 12
      %v3166 = vpop.permute.xlu0 %3165
      %3167 = vrot.lane.b32.xlu0 %v2707, 12
      %v3168 = vpop.permute.xlu0 %3167
      %3169 = vrot.lane.b32.xlu0 %v2709, 12
      %v3170 = vpop.permute.xlu0 %3169
      %3171 = vrot.lane.b32.xlu0 %v2710, 12
      %v3172 = vpop.permute.xlu0 %3171
      %3173 = vrot.lane.b32.xlu0 %v2712, 12
      %v3174 = vpop.permute.xlu0 %3173
      %3175 = vrot.lane.b32.xlu0 %v2713, 12
      %v3176 = vpop.permute.xlu0 %3175
      %3177 = vrot.lane.b32.xlu0 %v2715, 12
      %v3178 = vpop.permute.xlu0 %3177
      %3179 = vrot.lane.b32.xlu0 %v2716, 12
      %v3180 = vpop.permute.xlu0 %3179
      %3181 = vrot.lane.b32.xlu0 %v2718, 12
      %v3182 = vpop.permute.xlu0 %3181
      %3183 = vrot.lane.b32.xlu0 %v2719, 12
      %v3184 = vpop.permute.xlu0 %3183
      %3185 = vrot.lane.b32.xlu0 %v2721, 12
      %v3186 = vpop.permute.xlu0 %3185
      %3187 = vrot.lane.b32.xlu0 %v2722, 12
      %v3188 = vpop.permute.xlu0 %3187
      %3189 = vrot.lane.b32.xlu0 %v2724, 12
      %v3190 = vpop.permute.xlu0 %3189
      %3191 = vrot.lane.b32.xlu0 %v2725, 12
      %v3192 = vpop.permute.xlu0 %3191
      %3193 = vrot.lane.b32.xlu0 %v2727, 12
      %v3194 = vpop.permute.xlu0 %3193
      %3195 = vrot.lane.b32.xlu0 %v2728, 12
      %v3196 = vpop.permute.xlu0 %3195
      %3197 = vrot.lane.b32.xlu0 %v2730, 12
      %v3198 = vpop.permute.xlu0 %3197
      %3199 = vrot.lane.b32.xlu0 %v2731, 12
      %v3200 = vpop.permute.xlu0 %3199
      %3201 = vrot.lane.b32.xlu0 %v2733, 12
      %v3202 = vpop.permute.xlu0 %3201
      %3203 = vrot.lane.b32.xlu0 %v2734, 12
      %v3204 = vpop.permute.xlu0 %3203
      %v3238 = vrot.slane %v2733, 1
      %v3239 = vrot.slane %v2734, 1
      %v3240 = vsel %vm528, %v3238, %v3239
      %v3241 = vrot.slane %v2735, 1
      %v3242 = vsel %vm528, %v3239, %v3241
      %3243 = vrot.lane.b32.xlu0 %v2794, 16
      %v3244 = vpop.permute.xlu0 %3243
      %3245 = vrot.lane.b32.xlu0 %v2796, 16
      %v3246 = vpop.permute.xlu0 %3245
      %3247 = vrot.lane.b32.xlu0 %v2799, 16
      %v3248 = vpop.permute.xlu0 %3247
      %3249 = vrot.lane.b32.xlu0 %v2801, 16
      %v3250 = vpop.permute.xlu0 %3249
      %3251 = vrot.lane.b32.xlu0 %v2804, 16
      %v3252 = vpop.permute.xlu0 %3251
      %3253 = vrot.lane.b32.xlu0 %v2806, 16
      %v3254 = vpop.permute.xlu0 %3253
      %3255 = vrot.lane.b32.xlu0 %v2809, 16
      %v3256 = vpop.permute.xlu0 %3255
      %3257 = vrot.lane.b32.xlu0 %v2811, 16
      %v3258 = vpop.permute.xlu0 %3257
      %3259 = vrot.lane.b32.xlu0 %v2814, 16
      %v3260 = vpop.permute.xlu0 %3259
      %3261 = vrot.lane.b32.xlu0 %v2816, 16
      %v3262 = vpop.permute.xlu0 %3261
      %3263 = vrot.lane.b32.xlu0 %v2819, 16
      %v3264 = vpop.permute.xlu0 %3263
      %3265 = vrot.lane.b32.xlu0 %v2821, 16
      %v3266 = vpop.permute.xlu0 %3265
      %3267 = vrot.lane.b32.xlu0 %v2824, 16
      %v3268 = vpop.permute.xlu0 %3267
      %3269 = vrot.lane.b32.xlu0 %v2826, 16
      %v3270 = vpop.permute.xlu0 %3269
      %3271 = vrot.lane.b32.xlu0 %v2829, 16
      %v3272 = vpop.permute.xlu0 %3271
      %3273 = vrot.lane.b32.xlu0 %v2831, 16
      %v3274 = vpop.permute.xlu0 %3273
      %3275 = vrot.lane.b32.xlu0 %v2834, 16
      %v3276 = vpop.permute.xlu0 %3275
      %3277 = vrot.lane.b32.xlu0 %v2836, 16
      %v3278 = vpop.permute.xlu0 %3277
      %3279 = vrot.lane.b32.xlu0 %v2839, 16
      %v3280 = vpop.permute.xlu0 %3279
      %3281 = vrot.lane.b32.xlu0 %v2841, 16
      %v3282 = vpop.permute.xlu0 %3281
      %3283 = vrot.lane.b32.xlu0 %v2844, 16
      %v3284 = vpop.permute.xlu0 %3283
      %3285 = vrot.lane.b32.xlu0 %v2846, 16
      %v3286 = vpop.permute.xlu0 %3285
      %3287 = vrot.lane.b32.xlu0 %v2849, 16
      %v3288 = vpop.permute.xlu0 %3287
      %3289 = vrot.lane.b32.xlu0 %v2851, 16
      %v3290 = vpop.permute.xlu0 %3289
      %3291 = vrot.lane.b32.xlu0 %v2854, 16
      %v3292 = vpop.permute.xlu0 %3291
      %3293 = vrot.lane.b32.xlu0 %v2856, 16
      %v3294 = vpop.permute.xlu0 %3293
      %3295 = vrot.lane.b32.xlu0 %v2859, 16
      %v3296 = vpop.permute.xlu0 %3295
      %3297 = vrot.lane.b32.xlu0 %v2861, 16
      %v3298 = vpop.permute.xlu0 %3297
      %3299 = vrot.lane.b32.xlu0 %v2864, 16
      %v3300 = vpop.permute.xlu0 %3299
      %3301 = vrot.lane.b32.xlu0 %v2866, 16
      %v3302 = vpop.permute.xlu0 %3301
      %3303 = vrot.lane.b32.xlu0 %v3240, 16
      %v3304 = vpop.permute.xlu0 %3303
      %3305 = vrot.lane.b32.xlu0 %v3242, 16
      %v3306 = vpop.permute.xlu0 %3305
      %v3339 = vrot.slane %v2733, 2
      %v3340 = vrot.slane %v2734, 2
      %v3341 = vsel %vm705, %v3339, %v3340
      %v3342 = vrot.slane %v2735, 2
      %v3343 = vsel %vm705, %v3340, %v3342
      %3344 = vrot.lane.b32.xlu0 %v2970, 20
      %v3345 = vpop.permute.xlu0 %3344
      %3346 = vrot.lane.b32.xlu0 %v2972, 20
      %v3347 = vpop.permute.xlu0 %3346
      %3348 = vrot.lane.b32.xlu0 %v2975, 20
      %v3349 = vpop.permute.xlu0 %3348
      %3350 = vrot.lane.b32.xlu0 %v2977, 20
      %v3351 = vpop.permute.xlu0 %3350
      %3352 = vrot.lane.b32.xlu0 %v2980, 20
      %v3353 = vpop.permute.xlu0 %3352
      %3354 = vrot.lane.b32.xlu0 %v2982, 20
      %v3355 = vpop.permute.xlu0 %3354
      %3356 = vrot.lane.b32.xlu0 %v2985, 20
      %v3357 = vpop.permute.xlu0 %3356
      %3358 = vrot.lane.b32.xlu0 %v2987, 20
      %v3359 = vpop.permute.xlu0 %3358
      %3360 = vrot.lane.b32.xlu0 %v2990, 20
      %v3361 = vpop.permute.xlu0 %3360
      %3362 = vrot.lane.b32.xlu0 %v2992, 20
      %v3363 = vpop.permute.xlu0 %3362
      %3364 = vrot.lane.b32.xlu0 %v2995, 20
      %v3365 = vpop.permute.xlu0 %3364
      %3366 = vrot.lane.b32.xlu0 %v2997, 20
      %v3367 = vpop.permute.xlu0 %3366
      %3368 = vrot.lane.b32.xlu0 %v3000, 20
      %v3369 = vpop.permute.xlu0 %3368
      %3370 = vrot.lane.b32.xlu0 %v3002, 20
      %v3371 = vpop.permute.xlu0 %3370
      %3372 = vrot.lane.b32.xlu0 %v3005, 20
      %v3373 = vpop.permute.xlu0 %3372
      %3374 = vrot.lane.b32.xlu0 %v3007, 20
      %v3375 = vpop.permute.xlu0 %3374
      %3376 = vrot.lane.b32.xlu0 %v3010, 20
      %v3377 = vpop.permute.xlu0 %3376
      %3378 = vrot.lane.b32.xlu0 %v3012, 20
      %v3379 = vpop.permute.xlu0 %3378
      %3380 = vrot.lane.b32.xlu0 %v3015, 20
      %v3381 = vpop.permute.xlu0 %3380
      %3382 = vrot.lane.b32.xlu0 %v3017, 20
      %v3383 = vpop.permute.xlu0 %3382
      %3384 = vrot.lane.b32.xlu0 %v3020, 20
      %v3385 = vpop.permute.xlu0 %3384
      %3386 = vrot.lane.b32.xlu0 %v3022, 20
      %v3387 = vpop.permute.xlu0 %3386
      %3388 = vrot.lane.b32.xlu0 %v3025, 20
      %v3389 = vpop.permute.xlu0 %3388
      %3390 = vrot.lane.b32.xlu0 %v3027, 20
      %v3391 = vpop.permute.xlu0 %3390
      %3392 = vrot.lane.b32.xlu0 %v3030, 20
      %v3393 = vpop.permute.xlu0 %3392
      %3394 = vrot.lane.b32.xlu0 %v3032, 20
      %v3395 = vpop.permute.xlu0 %3394
      %3396 = vrot.lane.b32.xlu0 %v3035, 20
      %v3397 = vpop.permute.xlu0 %3396
      %3398 = vrot.lane.b32.xlu0 %v3037, 20
      %v3399 = vpop.permute.xlu0 %3398
      %3400 = vrot.lane.b32.xlu0 %v3040, 20
      %v3401 = vpop.permute.xlu0 %3400
      %3402 = vrot.lane.b32.xlu0 %v3042, 20
      %v3403 = vpop.permute.xlu0 %3402
      %3404 = vrot.lane.b32.xlu0 %v3341, 20
      %v3405 = vpop.permute.xlu0 %3404
      %3406 = vrot.lane.b32.xlu0 %v3343, 20
      %v3407 = vpop.permute.xlu0 %3406
      %3442 = vrot.lane.b32.xlu0 %v2691, 24
      %v3443 = vpop.permute.xlu0 %3442
      %3444 = vrot.lane.b32.xlu0 %v2692, 24
      %v3445 = vpop.permute.xlu0 %3444
      %3446 = vrot.lane.b32.xlu0 %v2694, 24
      %v3447 = vpop.permute.xlu0 %3446
      %3448 = vrot.lane.b32.xlu0 %v2695, 24
      %v3449 = vpop.permute.xlu0 %3448
      %3450 = vrot.lane.b32.xlu0 %v2697, 24
      %v3451 = vpop.permute.xlu0 %3450
      %3452 = vrot.lane.b32.xlu0 %v2698, 24
      %v3453 = vpop.permute.xlu0 %3452
      %3454 = vrot.lane.b32.xlu0 %v2700, 24
      %v3455 = vpop.permute.xlu0 %3454
      %3456 = vrot.lane.b32.xlu0 %v2701, 24
      %v3457 = vpop.permute.xlu0 %3456
      %3458 = vrot.lane.b32.xlu0 %v2703, 24
      %v3459 = vpop.permute.xlu0 %3458
      %3460 = vrot.lane.b32.xlu0 %v2704, 24
      %v3461 = vpop.permute.xlu0 %3460
      %3462 = vrot.lane.b32.xlu0 %v2706, 24
      %v3463 = vpop.permute.xlu0 %3462
      %3464 = vrot.lane.b32.xlu0 %v2707, 24
      %v3465 = vpop.permute.xlu0 %3464
      %3466 = vrot.lane.b32.xlu0 %v2709, 24
      %v3467 = vpop.permute.xlu0 %3466
      %3468 = vrot.lane.b32.xlu0 %v2710, 24
      %v3469 = vpop.permute.xlu0 %3468
      %3470 = vrot.lane.b32.xlu0 %v2712, 24
      %v3471 = vpop.permute.xlu0 %3470
      %3472 = vrot.lane.b32.xlu0 %v2713, 24
      %v3473 = vpop.permute.xlu0 %3472
      %3474 = vrot.lane.b32.xlu0 %v2715, 24
      %v3475 = vpop.permute.xlu0 %3474
      %3476 = vrot.lane.b32.xlu0 %v2716, 24
      %v3477 = vpop.permute.xlu0 %3476
      %3478 = vrot.lane.b32.xlu0 %v2718, 24
      %v3479 = vpop.permute.xlu0 %3478
      %3480 = vrot.lane.b32.xlu0 %v2719, 24
      %v3481 = vpop.permute.xlu0 %3480
      %3482 = vrot.lane.b32.xlu0 %v2721, 24
      %v3483 = vpop.permute.xlu0 %3482
      %3484 = vrot.lane.b32.xlu0 %v2722, 24
      %v3485 = vpop.permute.xlu0 %3484
      %3486 = vrot.lane.b32.xlu0 %v2724, 24
      %v3487 = vpop.permute.xlu0 %3486
      %3488 = vrot.lane.b32.xlu0 %v2725, 24
      %v3489 = vpop.permute.xlu0 %3488
      %3490 = vrot.lane.b32.xlu0 %v2727, 24
      %v3491 = vpop.permute.xlu0 %3490
      %3492 = vrot.lane.b32.xlu0 %v2728, 24
      %v3493 = vpop.permute.xlu0 %3492
      %3494 = vrot.lane.b32.xlu0 %v2730, 24
      %v3495 = vpop.permute.xlu0 %3494
      %3496 = vrot.lane.b32.xlu0 %v2731, 24
      %v3497 = vpop.permute.xlu0 %3496
      %3498 = vrot.lane.b32.xlu0 %v2733, 24
      %v3499 = vpop.permute.xlu0 %3498
      %3500 = vrot.lane.b32.xlu0 %v2734, 24
      %v3501 = vpop.permute.xlu0 %3500
      %3502 = vrot.lane.b32.xlu0 %v2736, 24
      %v3503 = vpop.permute.xlu0 %3502
      %3504 = vrot.lane.b32.xlu0 %v2737, 24
      %v3505 = vpop.permute.xlu0 %3504
      %v3539 = vrot.slane %v2736, 1
      %v3540 = vrot.slane %v2737, 1
      %v3541 = vsel %vm528, %v3539, %v3540
      %v3542 = vrot.slane %v2738, 1
      %v3543 = vsel %vm528, %v3540, %v3542
      %3544 = vrot.lane.b32.xlu0 %v2799, 28
      %v3545 = vpop.permute.xlu0 %3544
      %3546 = vrot.lane.b32.xlu0 %v2801, 28
      %v3547 = vpop.permute.xlu0 %3546
      %3548 = vrot.lane.b32.xlu0 %v2804, 28
      %v3549 = vpop.permute.xlu0 %3548
      %3550 = vrot.lane.b32.xlu0 %v2806, 28
      %v3551 = vpop.permute.xlu0 %3550
      %3552 = vrot.lane.b32.xlu0 %v2809, 28
      %v3553 = vpop.permute.xlu0 %3552
      %3554 = vrot.lane.b32.xlu0 %v2811, 28
      %v3555 = vpop.permute.xlu0 %3554
      %3556 = vrot.lane.b32.xlu0 %v2814, 28
      %v3557 = vpop.permute.xlu0 %3556
      %3558 = vrot.lane.b32.xlu0 %v2816, 28
      %v3559 = vpop.permute.xlu0 %3558
      %3560 = vrot.lane.b32.xlu0 %v2819, 28
      %v3561 = vpop.permute.xlu0 %3560
      %3562 = vrot.lane.b32.xlu0 %v2821, 28
      %v3563 = vpop.permute.xlu0 %3562
      %3564 = vrot.lane.b32.xlu0 %v2824, 28
      %v3565 = vpop.permute.xlu0 %3564
      %3566 = vrot.lane.b32.xlu0 %v2826, 28
      %v3567 = vpop.permute.xlu0 %3566
      %3568 = vrot.lane.b32.xlu0 %v2829, 28
      %v3569 = vpop.permute.xlu0 %3568
      %3570 = vrot.lane.b32.xlu0 %v2831, 28
      %v3571 = vpop.permute.xlu0 %3570
      %3572 = vrot.lane.b32.xlu0 %v2834, 28
      %v3573 = vpop.permute.xlu0 %3572
      %3574 = vrot.lane.b32.xlu0 %v2836, 28
      %v3575 = vpop.permute.xlu0 %3574
      %3576 = vrot.lane.b32.xlu0 %v2839, 28
      %v3577 = vpop.permute.xlu0 %3576
      %3578 = vrot.lane.b32.xlu0 %v2841, 28
      %v3579 = vpop.permute.xlu0 %3578
      %3580 = vrot.lane.b32.xlu0 %v2844, 28
      %v3581 = vpop.permute.xlu0 %3580
      %3582 = vrot.lane.b32.xlu0 %v2846, 28
      %v3583 = vpop.permute.xlu0 %3582
      %3584 = vrot.lane.b32.xlu0 %v2849, 28
      %v3585 = vpop.permute.xlu0 %3584
      %3586 = vrot.lane.b32.xlu0 %v2851, 28
      %v3587 = vpop.permute.xlu0 %3586
      %3588 = vrot.lane.b32.xlu0 %v2854, 28
      %v3589 = vpop.permute.xlu0 %3588
      %3590 = vrot.lane.b32.xlu0 %v2856, 28
      %v3591 = vpop.permute.xlu0 %3590
      %3592 = vrot.lane.b32.xlu0 %v2859, 28
      %v3593 = vpop.permute.xlu0 %3592
      %3594 = vrot.lane.b32.xlu0 %v2861, 28
      %v3595 = vpop.permute.xlu0 %3594
      %3596 = vrot.lane.b32.xlu0 %v2864, 28
      %v3597 = vpop.permute.xlu0 %3596
      %3598 = vrot.lane.b32.xlu0 %v2866, 28
      %v3599 = vpop.permute.xlu0 %3598
      %3600 = vrot.lane.b32.xlu0 %v3240, 28
      %v3601 = vpop.permute.xlu0 %3600
      %3602 = vrot.lane.b32.xlu0 %v3242, 28
      %v3603 = vpop.permute.xlu0 %3602
      %3604 = vrot.lane.b32.xlu0 %v3541, 28
      %v3605 = vpop.permute.xlu0 %3604
      %3606 = vrot.lane.b32.xlu0 %v3543, 28
      %v3607 = vpop.permute.xlu0 %3606
      %v3640 = vrot.slane %v2736, 2
      %v3641 = vrot.slane %v2737, 2
      %v3642 = vsel %vm705, %v3640, %v3641
      %v3643 = vrot.slane %v2738, 2
      %v3644 = vsel %vm705, %v3641, %v3643
      %3645 = vrot.lane.b32.xlu0 %v2975, 32
      %v3646 = vpop.permute.xlu0 %3645
      %3647 = vrot.lane.b32.xlu0 %v2977, 32
      %v3648 = vpop.permute.xlu0 %3647
      %3649 = vrot.lane.b32.xlu0 %v2980, 32
      %v3650 = vpop.permute.xlu0 %3649
      %3651 = vrot.lane.b32.xlu0 %v2982, 32
      %v3652 = vpop.permute.xlu0 %3651
      %3653 = vrot.lane.b32.xlu0 %v2985, 32
      %v3654 = vpop.permute.xlu0 %3653
      %3655 = vrot.lane.b32.xlu0 %v2987, 32
      %v3656 = vpop.permute.xlu0 %3655
      %3657 = vrot.lane.b32.xlu0 %v2990, 32
      %v3658 = vpop.permute.xlu0 %3657
      %3659 = vrot.lane.b32.xlu0 %v2992, 32
      %v3660 = vpop.permute.xlu0 %3659
      %3661 = vrot.lane.b32.xlu0 %v2995, 32
      %v3662 = vpop.permute.xlu0 %3661
      %3663 = vrot.lane.b32.xlu0 %v2997, 32
      %v3664 = vpop.permute.xlu0 %3663
      %3665 = vrot.lane.b32.xlu0 %v3000, 32
      %v3666 = vpop.permute.xlu0 %3665
      %3667 = vrot.lane.b32.xlu0 %v3002, 32
      %v3668 = vpop.permute.xlu0 %3667
      %3669 = vrot.lane.b32.xlu0 %v3005, 32
      %v3670 = vpop.permute.xlu0 %3669
      %3671 = vrot.lane.b32.xlu0 %v3007, 32
      %v3672 = vpop.permute.xlu0 %3671
      %3673 = vrot.lane.b32.xlu0 %v3010, 32
      %v3674 = vpop.permute.xlu0 %3673
      %3675 = vrot.lane.b32.xlu0 %v3012, 32
      %v3676 = vpop.permute.xlu0 %3675
      %3677 = vrot.lane.b32.xlu0 %v3015, 32
      %v3678 = vpop.permute.xlu0 %3677
      %3679 = vrot.lane.b32.xlu0 %v3017, 32
      %v3680 = vpop.permute.xlu0 %3679
      %3681 = vrot.lane.b32.xlu0 %v3020, 32
      %v3682 = vpop.permute.xlu0 %3681
      %3683 = vrot.lane.b32.xlu0 %v3022, 32
      %v3684 = vpop.permute.xlu0 %3683
      %3685 = vrot.lane.b32.xlu0 %v3025, 32
      %v3686 = vpop.permute.xlu0 %3685
      %3687 = vrot.lane.b32.xlu0 %v3027, 32
      %v3688 = vpop.permute.xlu0 %3687
      %3689 = vrot.lane.b32.xlu0 %v3030, 32
      %v3690 = vpop.permute.xlu0 %3689
      %3691 = vrot.lane.b32.xlu0 %v3032, 32
      %v3692 = vpop.permute.xlu0 %3691
      %3693 = vrot.lane.b32.xlu0 %v3035, 32
      %v3694 = vpop.permute.xlu0 %3693
      %3695 = vrot.lane.b32.xlu0 %v3037, 32
      %v3696 = vpop.permute.xlu0 %3695
      %3697 = vrot.lane.b32.xlu0 %v3040, 32
      %v3698 = vpop.permute.xlu0 %3697
      %3699 = vrot.lane.b32.xlu0 %v3042, 32
      %v3700 = vpop.permute.xlu0 %3699
      %3701 = vrot.lane.b32.xlu0 %v3341, 32
      %v3702 = vpop.permute.xlu0 %3701
      %3703 = vrot.lane.b32.xlu0 %v3343, 32
      %v3704 = vpop.permute.xlu0 %3703
      %3705 = vrot.lane.b32.xlu0 %v3642, 32
      %v3706 = vpop.permute.xlu0 %3705
      %3707 = vrot.lane.b32.xlu0 %v3644, 32
      %v3708 = vpop.permute.xlu0 %3707
      %v3741 = vsel %vm347, %v2685, %v2868
      %v3742 = vsel %vm347, %v2686, %v2870
      %v3743 = vsel %vm347, %v2688, %v2872
      %v3744 = vsel %vm347, %v2689, %v2874
      %v3745 = vsel %vm347, %v2691, %v2876
      %v3746 = vsel %vm347, %v2692, %v2878
      %v3747 = vsel %vm347, %v2694, %v2880
      %v3748 = vsel %vm347, %v2695, %v2882
      %v3749 = vsel %vm347, %v2697, %v2884
      %v3750 = vsel %vm347, %v2698, %v2886
      %v3751 = vsel %vm347, %v2700, %v2888
      %v3752 = vsel %vm347, %v2701, %v2890
      %v3753 = vsel %vm347, %v2703, %v2892
      %v3754 = vsel %vm347, %v2704, %v2894
      %v3755 = vsel %vm347, %v2706, %v2896
      %v3756 = vsel %vm347, %v2707, %v2898
      %v3757 = vsel %vm347, %v2709, %v2900
      %v3758 = vsel %vm347, %v2710, %v2902
      %v3759 = vsel %vm347, %v2712, %v2904
      %v3760 = vsel %vm347, %v2713, %v2906
      %v3761 = vsel %vm347, %v2715, %v2908
      %v3762 = vsel %vm347, %v2716, %v2910
      %v3763 = vsel %vm347, %v2718, %v2912
      %v3764 = vsel %vm347, %v2719, %v2914
      %v3765 = vsel %vm347, %v2721, %v2916
      %v3766 = vsel %vm347, %v2722, %v2918
      %v3767 = vsel %vm347, %v2724, %v2920
      %v3768 = vsel %vm347, %v2725, %v2922
      %v3769 = vsel %vm347, %v2727, %v2924
      %v3770 = vsel %vm347, %v2728, %v2926
      %v3771 = vsel %vm347, %v2730, %v2928
      %v3772 = vsel %vm347, %v2731, %v2930
      %v3773 = vsel %vm1516, %v3741, %v3044
      %v3774 = vsel %vm1516, %v3742, %v3046
      %v3775 = vsel %vm1516, %v3743, %v3048
      %v3776 = vsel %vm1516, %v3744, %v3050
      %v3777 = vsel %vm1516, %v3745, %v3052
      %v3778 = vsel %vm1516, %v3746, %v3054
      %v3779 = vsel %vm1516, %v3747, %v3056
      %v3780 = vsel %vm1516, %v3748, %v3058
      %v3781 = vsel %vm1516, %v3749, %v3060
      %v3782 = vsel %vm1516, %v3750, %v3062
      %v3783 = vsel %vm1516, %v3751, %v3064
      %v3784 = vsel %vm1516, %v3752, %v3066
      %v3785 = vsel %vm1516, %v3753, %v3068
      %v3786 = vsel %vm1516, %v3754, %v3070
      %v3787 = vsel %vm1516, %v3755, %v3072
      %v3788 = vsel %vm1516, %v3756, %v3074
      %v3789 = vsel %vm1516, %v3757, %v3076
      %v3790 = vsel %vm1516, %v3758, %v3078
      %v3791 = vsel %vm1516, %v3759, %v3080
      %v3792 = vsel %vm1516, %v3760, %v3082
      %v3793 = vsel %vm1516, %v3761, %v3084
      %v3794 = vsel %vm1516, %v3762, %v3086
      %v3795 = vsel %vm1516, %v3763, %v3088
      %v3796 = vsel %vm1516, %v3764, %v3090
      %v3797 = vsel %vm1516, %v3765, %v3092
      %v3798 = vsel %vm1516, %v3766, %v3094
      %v3799 = vsel %vm1516, %v3767, %v3096
      %v3800 = vsel %vm1516, %v3768, %v3098
      %v3801 = vsel %vm1516, %v3769, %v3100
      %v3802 = vsel %vm1516, %v3770, %v3102
      %v3803 = vsel %vm1516, %v3771, %v3104
      %v3804 = vsel %vm1516, %v3772, %v3106
      %v3805 = vsel %vm1549, %v3773, %v3142
      %v3806 = vsel %vm1549, %v3774, %v3144
      %v3807 = vsel %vm1549, %v3775, %v3146
      %v3808 = vsel %vm1549, %v3776, %v3148
      %v3809 = vsel %vm1549, %v3777, %v3150
      %v3810 = vsel %vm1549, %v3778, %v3152
      %v3811 = vsel %vm1549, %v3779, %v3154
      %v3812 = vsel %vm1549, %v3780, %v3156
      %v3813 = vsel %vm1549, %v3781, %v3158
      %v3814 = vsel %vm1549, %v3782, %v3160
      %v3815 = vsel %vm1549, %v3783, %v3162
      %v3816 = vsel %vm1549, %v3784, %v3164
      %v3817 = vsel %vm1549, %v3785, %v3166
      %v3818 = vsel %vm1549, %v3786, %v3168
      %v3819 = vsel %vm1549, %v3787, %v3170
      %v3820 = vsel %vm1549, %v3788, %v3172
      %v3821 = vsel %vm1549, %v3789, %v3174
      %v3822 = vsel %vm1549, %v3790, %v3176
      %v3823 = vsel %vm1549, %v3791, %v3178
      %v3824 = vsel %vm1549, %v3792, %v3180
      %v3825 = vsel %vm1549, %v3793, %v3182
      %v3826 = vsel %vm1549, %v3794, %v3184
      %v3827 = vsel %vm1549, %v3795, %v3186
      %v3828 = vsel %vm1549, %v3796, %v3188
      %v3829 = vsel %vm1549, %v3797, %v3190
      %v3830 = vsel %vm1549, %v3798, %v3192
      %v3831 = vsel %vm1549, %v3799, %v3194
      %v3832 = vsel %vm1549, %v3800, %v3196
      %v3833 = vsel %vm1549, %v3801, %v3198
      %v3834 = vsel %vm1549, %v3802, %v3200
      %v3835 = vsel %vm1549, %v3803, %v3202
      %v3836 = vsel %vm1549, %v3804, %v3204
      %v3837 = vsel %vm1582, %v3805, %v3244
      %v3838 = vsel %vm1582, %v3806, %v3246
      %v3839 = vsel %vm1582, %v3807, %v3248
      %v3840 = vsel %vm1582, %v3808, %v3250
      %v3841 = vsel %vm1582, %v3809, %v3252
      %v3842 = vsel %vm1582, %v3810, %v3254
      %v3843 = vsel %vm1582, %v3811, %v3256
      %v3844 = vsel %vm1582, %v3812, %v3258
      %v3845 = vsel %vm1582, %v3813, %v3260
      %v3846 = vsel %vm1582, %v3814, %v3262
      %v3847 = vsel %vm1582, %v3815, %v3264
      %v3848 = vsel %vm1582, %v3816, %v3266
      %v3849 = vsel %vm1582, %v3817, %v3268
      %v3850 = vsel %vm1582, %v3818, %v3270
      %v3851 = vsel %vm1582, %v3819, %v3272
      %v3852 = vsel %vm1582, %v3820, %v3274
      %v3853 = vsel %vm1582, %v3821, %v3276
      %v3854 = vsel %vm1582, %v3822, %v3278
      %v3855 = vsel %vm1582, %v3823, %v3280
      %v3856 = vsel %vm1582, %v3824, %v3282
      %v3857 = vsel %vm1582, %v3825, %v3284
      %v3858 = vsel %vm1582, %v3826, %v3286
      %v3859 = vsel %vm1582, %v3827, %v3288
      %v3860 = vsel %vm1582, %v3828, %v3290
      %v3861 = vsel %vm1582, %v3829, %v3292
      %v3862 = vsel %vm1582, %v3830, %v3294
      %v3863 = vsel %vm1582, %v3831, %v3296
      %v3864 = vsel %vm1582, %v3832, %v3298
      %v3865 = vsel %vm1582, %v3833, %v3300
      %v3866 = vsel %vm1582, %v3834, %v3302
      %v3867 = vsel %vm1582, %v3835, %v3304
      %v3868 = vsel %vm1582, %v3836, %v3306
      %v3869 = vsel %vm1615, %v3837, %v3345
      %v3870 = vsel %vm1615, %v3838, %v3347
      %v3871 = vsel %vm1615, %v3839, %v3349
      %v3872 = vsel %vm1615, %v3840, %v3351
      %v3873 = vsel %vm1615, %v3841, %v3353
      %v3874 = vsel %vm1615, %v3842, %v3355
      %v3875 = vsel %vm1615, %v3843, %v3357
      %v3876 = vsel %vm1615, %v3844, %v3359
      %v3877 = vsel %vm1615, %v3845, %v3361
      %v3878 = vsel %vm1615, %v3846, %v3363
      %v3879 = vsel %vm1615, %v3847, %v3365
      %v3880 = vsel %vm1615, %v3848, %v3367
      %v3881 = vsel %vm1615, %v3849, %v3369
      %v3882 = vsel %vm1615, %v3850, %v3371
      %v3883 = vsel %vm1615, %v3851, %v3373
      %v3884 = vsel %vm1615, %v3852, %v3375
      %v3885 = vsel %vm1615, %v3853, %v3377
      %v3886 = vsel %vm1615, %v3854, %v3379
      %v3887 = vsel %vm1615, %v3855, %v3381
      %v3888 = vsel %vm1615, %v3856, %v3383
      %v3889 = vsel %vm1615, %v3857, %v3385
      %v3890 = vsel %vm1615, %v3858, %v3387
      %v3891 = vsel %vm1615, %v3859, %v3389
      %v3892 = vsel %vm1615, %v3860, %v3391
      %v3893 = vsel %vm1615, %v3861, %v3393
      %v3894 = vsel %vm1615, %v3862, %v3395
      %v3895 = vsel %vm1615, %v3863, %v3397
      %v3896 = vsel %vm1615, %v3864, %v3399
      %v3897 = vsel %vm1615, %v3865, %v3401
      %v3898 = vsel %vm1615, %v3866, %v3403
      %v3899 = vsel %vm1615, %v3867, %v3405
      %v3900 = vsel %vm1615, %v3868, %v3407
      %v3901 = vsel %vm1648, %v3869, %v3443
      %v3902 = vsel %vm1648, %v3870, %v3445
      %v3903 = vsel %vm1648, %v3871, %v3447
      %v3904 = vsel %vm1648, %v3872, %v3449
      %v3905 = vsel %vm1648, %v3873, %v3451
      %v3906 = vsel %vm1648, %v3874, %v3453
      %v3907 = vsel %vm1648, %v3875, %v3455
      %v3908 = vsel %vm1648, %v3876, %v3457
      %v3909 = vsel %vm1648, %v3877, %v3459
      %v3910 = vsel %vm1648, %v3878, %v3461
      %v3911 = vsel %vm1648, %v3879, %v3463
      %v3912 = vsel %vm1648, %v3880, %v3465
      %v3913 = vsel %vm1648, %v3881, %v3467
      %v3914 = vsel %vm1648, %v3882, %v3469
      %v3915 = vsel %vm1648, %v3883, %v3471
      %v3916 = vsel %vm1648, %v3884, %v3473
      %v3917 = vsel %vm1648, %v3885, %v3475
      %v3918 = vsel %vm1648, %v3886, %v3477
      %v3919 = vsel %vm1648, %v3887, %v3479
      %v3920 = vsel %vm1648, %v3888, %v3481
      %v3921 = vsel %vm1648, %v3889, %v3483
      %v3922 = vsel %vm1648, %v3890, %v3485
      %v3923 = vsel %vm1648, %v3891, %v3487
      %v3924 = vsel %vm1648, %v3892, %v3489
      %v3925 = vsel %vm1648, %v3893, %v3491
      %v3926 = vsel %vm1648, %v3894, %v3493
      %v3927 = vsel %vm1648, %v3895, %v3495
      %v3928 = vsel %vm1648, %v3896, %v3497
      %v3929 = vsel %vm1648, %v3897, %v3499
      %v3930 = vsel %vm1648, %v3898, %v3501
      %v3931 = vsel %vm1648, %v3899, %v3503
      %v3932 = vsel %vm1648, %v3900, %v3505
      %v3933 = vsel %vm1681, %v3901, %v3545
      %v3934 = vsel %vm1681, %v3902, %v3547
      %v3935 = vsel %vm1681, %v3903, %v3549
      %v3936 = vsel %vm1681, %v3904, %v3551
      %v3937 = vsel %vm1681, %v3905, %v3553
      %v3938 = vsel %vm1681, %v3906, %v3555
      %v3939 = vsel %vm1681, %v3907, %v3557
      %v3940 = vsel %vm1681, %v3908, %v3559
      %v3941 = vsel %vm1681, %v3909, %v3561
      %v3942 = vsel %vm1681, %v3910, %v3563
      %v3943 = vsel %vm1681, %v3911, %v3565
      %v3944 = vsel %vm1681, %v3912, %v3567
      %v3945 = vsel %vm1681, %v3913, %v3569
      %v3946 = vsel %vm1681, %v3914, %v3571
      %v3947 = vsel %vm1681, %v3915, %v3573
      %v3948 = vsel %vm1681, %v3916, %v3575
      %v3949 = vsel %vm1681, %v3917, %v3577
      %v3950 = vsel %vm1681, %v3918, %v3579
      %v3951 = vsel %vm1681, %v3919, %v3581
      %v3952 = vsel %vm1681, %v3920, %v3583
      %v3953 = vsel %vm1681, %v3921, %v3585
      %v3954 = vsel %vm1681, %v3922, %v3587
      %v3955 = vsel %vm1681, %v3923, %v3589
      %v3956 = vsel %vm1681, %v3924, %v3591
      %v3957 = vsel %vm1681, %v3925, %v3593
      %v3958 = vsel %vm1681, %v3926, %v3595
      %v3959 = vsel %vm1681, %v3927, %v3597
      %v3960 = vsel %vm1681, %v3928, %v3599
      %v3961 = vsel %vm1681, %v3929, %v3601
      %v3962 = vsel %vm1681, %v3930, %v3603
      %v3963 = vsel %vm1681, %v3931, %v3605
      %v3964 = vsel %vm1681, %v3932, %v3607
      %v3965 = vsel %vm1714, %v3933, %v3646
      %v3966 = vsel %vm1714, %v3934, %v3648
      %v3967 = vsel %vm1714, %v3935, %v3650
      %v3968 = vsel %vm1714, %v3936, %v3652
      %v3969 = vsel %vm1714, %v3937, %v3654
      %v3970 = vsel %vm1714, %v3938, %v3656
      %v3971 = vsel %vm1714, %v3939, %v3658
      %v3972 = vsel %vm1714, %v3940, %v3660
      %v3973 = vsel %vm1714, %v3941, %v3662
      %v3974 = vsel %vm1714, %v3942, %v3664
      %v3975 = vsel %vm1714, %v3943, %v3666
      %v3976 = vsel %vm1714, %v3944, %v3668
      %v3977 = vsel %vm1714, %v3945, %v3670
      %v3978 = vsel %vm1714, %v3946, %v3672
      %v3979 = vsel %vm1714, %v3947, %v3674
      %v3980 = vsel %vm1714, %v3948, %v3676
      %v3981 = vsel %vm1714, %v3949, %v3678
      %v3982 = vsel %vm1714, %v3950, %v3680
      %v3983 = vsel %vm1714, %v3951, %v3682
      %v3984 = vsel %vm1714, %v3952, %v3684
      %v3985 = vsel %vm1714, %v3953, %v3686
      %v3986 = vsel %vm1714, %v3954, %v3688
      %v3987 = vsel %vm1714, %v3955, %v3690
      %v3988 = vsel %vm1714, %v3956, %v3692
      %v3989 = vsel %vm1714, %v3957, %v3694
      %v3990 = vsel %vm1714, %v3958, %v3696
      %v3991 = vsel %vm1714, %v3959, %v3698
      %v3992 = vsel %vm1714, %v3960, %v3700
      %v3993 = vsel %vm1714, %v3961, %v3702
      %v3994 = vsel %vm1714, %v3962, %v3704
      %v3995 = vsel %vm1714, %v3963, %v3706
      %v3996 = vsel %vm1714, %v3964, %v3708
      %v3997 = vld [vmem:[%s5] sm:$0xff]
      %v3998 = vld [vmem:[%s5 + $0x8] sm:$0xff]
      %v3999 = vld [vmem:[%s5 + $0x10] sm:$0xff]
      %v4000 = vld [vmem:[%s5 + $0x18] sm:$0xff]
      %v4001 = vld [vmem:[%s5 + $0x20] sm:$0xf]
      %v4002 = vld [vmem:[%s6] sm:$0x1]
      %v4004 = vlaneseq
      %v4005 = vshrl.u32 %v4004, 7
      %v4006 = vsub.s32 0, %v4005
      %v4007 = vrot.slane %v4002, %v4006
      %v4010 = vsel %vm1759, %v3965, 0
      %v4013 = vsel %vm1759, %v3966, 0
      %v4016 = vsel %vm1759, %v3967, 0
      %v4019 = vsel %vm1759, %v3968, 0
      %v4022 = vsel %vm1759, %v3969, 0
      %v4025 = vsel %vm1759, %v3970, 0
      %v4028 = vsel %vm1759, %v3971, 0
      %v4031 = vsel %vm1759, %v3972, 0
      %v4034 = vsel %vm1759, %v3973, 0
      %v4037 = vsel %vm1759, %v3974, 0
      %v4040 = vsel %vm1759, %v3975, 0
      %v4043 = vsel %vm1759, %v3976, 0
      %v4046 = vsel %vm1759, %v3977, 0
      %v4049 = vsel %vm1759, %v3978, 0
      %v4052 = vsel %vm1759, %v3979, 0
      %v4055 = vsel %vm1759, %v3980, 0
      %v4058 = vsel %vm1759, %v3981, 0
      %v4061 = vsel %vm1759, %v3982, 0
      %v4064 = vsel %vm1759, %v3983, 0
      %v4067 = vsel %vm1759, %v3984, 0
      %v4070 = vsel %vm1759, %v3985, 0
      %v4073 = vsel %vm1759, %v3986, 0
      %v4076 = vsel %vm1759, %v3987, 0
      %v4079 = vsel %vm1759, %v3988, 0
      %v4082 = vsel %vm1759, %v3989, 0
      %v4085 = vsel %vm1759, %v3990, 0
      %v4088 = vsel %vm1759, %v3991, 0
      %v4091 = vsel %vm1759, %v3992, 0
      %v4094 = vsel %vm1759, %v3993, 0
      %v4097 = vsel %vm1759, %v3994, 0
      %v4100 = vsel %vm1759, %v3995, 0
      %v4103 = vsel %vm1759, %v3996, 0
      %v4106 = vsel %vm1856, %v4001, 0
      %4108 = vmatprep.subr.mxu0 0.0
      %4109 = vmatpush1.msra.mxu0 %v3997
      %4110 = vmatprep.subr.mxu0 0.0
      %4111 = vmatpush1.msra.mxu0 %v3998
      %4112 = vmatprep.subr.mxu0 0.0
      %4113 = vmatpush1.msra.mxu0 %v3999
      %4114 = vmatprep.subr.mxu0 0.0
      %4115 = vmatpush1.msra.mxu0 %v4000
      %4116 = vmatprep.subr.mxu0 0.0
      %4117 = vmatpush1.msra.mxu0 %v4106
      %4118 = vmatprep.subr.mxu0 0.0
      %4119 = vmatpush1.msra.mxu0 0.0
      %4120 = vmatprep.subr.mxu0 0.0
      %4121 = vmatpush1.msra.mxu0 0.0
      %4122 = vmatprep.subr.mxu0 0.0
      %4123 = vmatpush1.msra.mxu0 0.0
      %4124 = vmatprep.subr.mxu0 0.0
      %4125 = vmatpush1.msra.mxu0 0.0
      %4126 = vmatprep.subr.mxu0 0.0
      %4127 = vmatpush1.msra.mxu0 0.0
      %4128 = vmatprep.subr.mxu0 0.0
      %4129 = vmatpush1.msra.mxu0 0.0
      %4130 = vmatprep.subr.mxu0 0.0
      %4131 = vmatpush1.msra.mxu0 0.0
      %4132 = vmatprep.subr.mxu0 0.0
      %4133 = vmatpush1.msra.mxu0 0.0
      %4134 = vmatprep.subr.mxu0 0.0
      %4135 = vmatpush1.msra.mxu0 0.0
      %4136 = vmatprep.subr.mxu0 0.0
      %4137 = vmatpush1.msra.mxu0 0.0
      %4138 = vmatprep.subr.mxu0 0.0
      %4139 = vmatpush1.msra.mxu0 0.0
      %4140 = vmatprep.subr.mxu0 0.0
      %4141 = vmatpush1.msra.mxu0 0.0
      %4142 = vmatprep.subr.mxu0 0.0
      %4143 = vmatpush1.msra.mxu0 0.0
      %4144 = vmatprep.subr.mxu0 0.0
      %4145 = vmatpush1.msra.mxu0 0.0
      %4146 = vmatprep.subr.mxu0 0.0
      %4147 = vmatpush1.msra.mxu0 0.0
      %4148 = vmatprep.subr.mxu0 0.0
      %4149 = vmatpush1.msra.mxu0 0.0
      %4150 = vmatprep.subr.mxu0 0.0
      %4151 = vmatpush1.msra.mxu0 0.0
      %4152 = vmatprep.subr.mxu0 0.0
      %4153 = vmatpush1.msra.mxu0 0.0
      %4154 = vmatprep.subr.mxu0 0.0
      %4155 = vmatpush1.msra.mxu0 0.0
      %4156 = vmatprep.subr.mxu0 0.0
      %4157 = vmatpush1.msra.mxu0 0.0
      %4158 = vmatprep.subr.mxu0 0.0
      %4159 = vmatpush1.msra.mxu0 0.0
      %4160 = vmatprep.subr.mxu0 0.0
      %4161 = vmatpush1.msra.mxu0 0.0
      %4162 = vmatprep.subr.mxu0 0.0
      %4163 = vmatpush1.msra.mxu0 0.0
      %4164 = vmatprep.subr.mxu0 0.0
      %4165 = vmatpush1.msra.mxu0 0.0
      %4166 = vmatprep.subr.mxu0 0.0
      %4167 = vmatpush1.msra.mxu0 0.0
      %4168 = vmatprep.subr.mxu0 0.0
      %4169 = vmatpush1.msra.mxu0 0.0
      %4170 = vmatprep.subr.mxu0 0.0
      %4171 = vmatpush1.msra.mxu0 0.0
      %4172 = vmatprep.mubr.f32.mxu0 0.0
      %4173 = vmatmul.mubr.f32.gmra.mrb[0].mxu0 %v4010
      %v4174 = vpop.f32.mrb[0].mxu0
      %v4175 = vadd.f32 %v4007, %v4174
      %v4176 = vpop.f32.mrb[0].mxu0
      %4177 = vmatprep.mubr.f32.mxu0 0.0
      %4178 = vmatmul.mubr.f32.gmra.mrb[0].mxu0 %v4013
      %v4179 = vpop.f32.mrb[0].mxu0
      %v4180 = vadd.f32 %v4007, %v4179
      %v4181 = vpop.f32.mrb[0].mxu0
      %4182 = vmatprep.mubr.f32.mxu0 0.0
      %4183 = vmatmul.mubr.f32.gmra.mrb[0].mxu0 %v4016
      %v4184 = vpop.f32.mrb[0].mxu0
      %v4185 = vadd.f32 %v4007, %v4184
      %v4186 = vpop.f32.mrb[0].mxu0
      %4187 = vmatprep.mubr.f32.mxu0 0.0
      %4188 = vmatmul.mubr.f32.gmra.mrb[0].mxu0 %v4019
      %v4189 = vpop.f32.mrb[0].mxu0
      %v4190 = vadd.f32 %v4007, %v4189
      %v4191 = vpop.f32.mrb[0].mxu0
      %4192 = vmatprep.mubr.f32.mxu0 0.0
      %4193 = vmatmul.mubr.f32.gmra.mrb[0].mxu0 %v4022
      %v4194 = vpop.f32.mrb[0].mxu0
      %v4195 = vadd.f32 %v4007, %v4194
      %v4196 = vpop.f32.mrb[0].mxu0
      %4197 = vmatprep.mubr.f32.mxu0 0.0
      %4198 = vmatmul.mubr.f32.gmra.mrb[0].mxu0 %v4025
      %v4199 = vpop.f32.mrb[0].mxu0
      %v4200 = vadd.f32 %v4007, %v4199
      %v4201 = vpop.f32.mrb[0].mxu0
      %4202 = vmatprep.mubr.f32.mxu0 0.0
      %4203 = vmatmul.mubr.f32.gmra.mrb[0].mxu0 %v4028
      %v4204 = vpop.f32.mrb[0].mxu0
      %v4205 = vadd.f32 %v4007, %v4204
      %v4206 = vpop.f32.mrb[0].mxu0
      %4207 = vmatprep.mubr.f32.mxu0 0.0
      %4208 = vmatmul.mubr.f32.gmra.mrb[0].mxu0 %v4031
      %v4209 = vpop.f32.mrb[0].mxu0
      %v4210 = vadd.f32 %v4007, %v4209
      %v4211 = vpop.f32.mrb[0].mxu0
      %4212 = vmatprep.mubr.f32.mxu0 0.0
      %4213 = vmatmul.mubr.f32.gmra.mrb[0].mxu0 %v4034
      %v4214 = vpop.f32.mrb[0].mxu0
      %v4215 = vadd.f32 %v4007, %v4214
      %v4216 = vpop.f32.mrb[0].mxu0
      %4217 = vmatprep.mubr.f32.mxu0 0.0
      %4218 = vmatmul.mubr.f32.gmra.mrb[0].mxu0 %v4037
      %v4219 = vpop.f32.mrb[0].mxu0
      %v4220 = vadd.f32 %v4007, %v4219
      %v4221 = vpop.f32.mrb[0].mxu0
      %4222 = vmatprep.mubr.f32.mxu0 0.0
      %4223 = vmatmul.mubr.f32.gmra.mrb[0].mxu0 %v4040
      %v4224 = vpop.f32.mrb[0].mxu0
      %v4225 = vadd.f32 %v4007, %v4224
      %v4226 = vpop.f32.mrb[0].mxu0
      %4227 = vmatprep.mubr.f32.mxu0 0.0
      %4228 = vmatmul.mubr.f32.gmra.mrb[0].mxu0 %v4043
      %v4229 = vpop.f32.mrb[0].mxu0
      %v4230 = vadd.f32 %v4007, %v4229
      %v4231 = vpop.f32.mrb[0].mxu0
      %4232 = vmatprep.mubr.f32.mxu0 0.0
      %4233 = vmatmul.mubr.f32.gmra.mrb[0].mxu0 %v4046
      %v4234 = vpop.f32.mrb[0].mxu0
      %v4235 = vadd.f32 %v4007, %v4234
      %v4236 = vpop.f32.mrb[0].mxu0
      %4237 = vmatprep.mubr.f32.mxu0 0.0
      %4238 = vmatmul.mubr.f32.gmra.mrb[0].mxu0 %v4049
      %v4239 = vpop.f32.mrb[0].mxu0
      %v4240 = vadd.f32 %v4007, %v4239
      %v4241 = vpop.f32.mrb[0].mxu0
      %4242 = vmatprep.mubr.f32.mxu0 0.0
      %4243 = vmatmul.mubr.f32.gmra.mrb[0].mxu0 %v4052
      %v4244 = vpop.f32.mrb[0].mxu0
      %v4245 = vadd.f32 %v4007, %v4244
      %v4246 = vpop.f32.mrb[0].mxu0
      %4247 = vmatprep.mubr.f32.mxu0 0.0
      %4248 = vmatmul.mubr.f32.gmra.mrb[0].mxu0 %v4055
      %v4249 = vpop.f32.mrb[0].mxu0
      %v4250 = vadd.f32 %v4007, %v4249
      %v4251 = vpop.f32.mrb[0].mxu0
      %4252 = vmatprep.mubr.f32.mxu0 0.0
      %4253 = vmatmul.mubr.f32.gmra.mrb[0].mxu0 %v4058
      %v4254 = vpop.f32.mrb[0].mxu0
      %v4255 = vadd.f32 %v4007, %v4254
      %v4256 = vpop.f32.mrb[0].mxu0
      %4257 = vmatprep.mubr.f32.mxu0 0.0
      %4258 = vmatmul.mubr.f32.gmra.mrb[0].mxu0 %v4061
      %v4259 = vpop.f32.mrb[0].mxu0
      %v4260 = vadd.f32 %v4007, %v4259
      %v4261 = vpop.f32.mrb[0].mxu0
      %4262 = vmatprep.mubr.f32.mxu0 0.0
      %4263 = vmatmul.mubr.f32.gmra.mrb[0].mxu0 %v4064
      %v4264 = vpop.f32.mrb[0].mxu0
      %v4265 = vadd.f32 %v4007, %v4264
      %v4266 = vpop.f32.mrb[0].mxu0
      %4267 = vmatprep.mubr.f32.mxu0 0.0
      %4268 = vmatmul.mubr.f32.gmra.mrb[0].mxu0 %v4067
      %v4269 = vpop.f32.mrb[0].mxu0
      %v4270 = vadd.f32 %v4007, %v4269
      %v4271 = vpop.f32.mrb[0].mxu0
      %4272 = vmatprep.mubr.f32.mxu0 0.0
      %4273 = vmatmul.mubr.f32.gmra.mrb[0].mxu0 %v4070
      %v4274 = vpop.f32.mrb[0].mxu0
      %v4275 = vadd.f32 %v4007, %v4274
      %v4276 = vpop.f32.mrb[0].mxu0
      %4277 = vmatprep.mubr.f32.mxu0 0.0
      %4278 = vmatmul.mubr.f32.gmra.mrb[0].mxu0 %v4073
      %v4279 = vpop.f32.mrb[0].mxu0
      %v4280 = vadd.f32 %v4007, %v4279
      %v4281 = vpop.f32.mrb[0].mxu0
      %4282 = vmatprep.mubr.f32.mxu0 0.0
      %4283 = vmatmul.mubr.f32.gmra.mrb[0].mxu0 %v4076
      %v4284 = vpop.f32.mrb[0].mxu0
      %v4285 = vadd.f32 %v4007, %v4284
      %v4286 = vpop.f32.mrb[0].mxu0
      %4287 = vmatprep.mubr.f32.mxu0 0.0
      %4288 = vmatmul.mubr.f32.gmra.mrb[0].mxu0 %v4079
      %v4289 = vpop.f32.mrb[0].mxu0
      %v4290 = vadd.f32 %v4007, %v4289
      %v4291 = vpop.f32.mrb[0].mxu0
      %4292 = vmatprep.mubr.f32.mxu0 0.0
      %4293 = vmatmul.mubr.f32.gmra.mrb[0].mxu0 %v4082
      %v4294 = vpop.f32.mrb[0].mxu0
      %v4295 = vadd.f32 %v4007, %v4294
      %v4296 = vpop.f32.mrb[0].mxu0
      %4297 = vmatprep.mubr.f32.mxu0 0.0
      %4298 = vmatmul.mubr.f32.gmra.mrb[0].mxu0 %v4085
      %v4299 = vpop.f32.mrb[0].mxu0
      %v4300 = vadd.f32 %v4007, %v4299
      %v4301 = vpop.f32.mrb[0].mxu0
      %4302 = vmatprep.mubr.f32.mxu0 0.0
      %4303 = vmatmul.mubr.f32.gmra.mrb[0].mxu0 %v4088
      %v4304 = vpop.f32.mrb[0].mxu0
      %v4305 = vadd.f32 %v4007, %v4304
      %v4306 = vpop.f32.mrb[0].mxu0
      %4307 = vmatprep.mubr.f32.mxu0 0.0
      %4308 = vmatmul.mubr.f32.gmra.mrb[0].mxu0 %v4091
      %v4309 = vpop.f32.mrb[0].mxu0
      %v4310 = vadd.f32 %v4007, %v4309
      %v4311 = vpop.f32.mrb[0].mxu0
      %4312 = vmatprep.mubr.f32.mxu0 0.0
      %4313 = vmatmul.mubr.f32.gmra.mrb[0].mxu0 %v4094
      %v4314 = vpop.f32.mrb[0].mxu0
      %v4315 = vadd.f32 %v4007, %v4314
      %v4316 = vpop.f32.mrb[0].mxu0
      %4317 = vmatprep.mubr.f32.mxu0 0.0
      %4318 = vmatmul.mubr.f32.gmra.mrb[0].mxu0 %v4097
      %v4319 = vpop.f32.mrb[0].mxu0
      %v4320 = vadd.f32 %v4007, %v4319
      %v4321 = vpop.f32.mrb[0].mxu0
      %4322 = vmatprep.mubr.f32.mxu0 0.0
      %4323 = vmatmul.mubr.f32.gmra.mrb[0].mxu0 %v4100
      %v4324 = vpop.f32.mrb[0].mxu0
      %v4325 = vadd.f32 %v4007, %v4324
      %v4326 = vpop.f32.mrb[0].mxu0
      %4327 = vmatprep.mubr.f32.mxu0 0.0
      %4328 = vmatmul.mubr.f32.gmra.mrb[0].mxu0 %v4103
      %v4329 = vpop.f32.mrb[0].mxu0
      %v4330 = vadd.f32 %v4007, %v4329
      %v4331 = vpop.f32.mrb[0].mxu0
      %4332 = vdwg.mxu0
      %vm4333 = vcmp.gt.f32.partialorder %v4175, 0.0
      %vm4334 = vcmp.gt.f32.partialorder %v4180, 0.0
      %vm4335 = vcmp.gt.f32.partialorder %v4185, 0.0
      %vm4336 = vcmp.gt.f32.partialorder %v4190, 0.0
      %vm4337 = vcmp.gt.f32.partialorder %v4195, 0.0
      %vm4338 = vcmp.gt.f32.partialorder %v4200, 0.0
      %vm4339 = vcmp.gt.f32.partialorder %v4205, 0.0
      %vm4340 = vcmp.gt.f32.partialorder %v4210, 0.0
      %vm4341 = vcmp.gt.f32.partialorder %v4215, 0.0
      %vm4342 = vcmp.gt.f32.partialorder %v4220, 0.0
      %vm4343 = vcmp.gt.f32.partialorder %v4225, 0.0
      %vm4344 = vcmp.gt.f32.partialorder %v4230, 0.0
      %vm4345 = vcmp.gt.f32.partialorder %v4235, 0.0
      %vm4346 = vcmp.gt.f32.partialorder %v4240, 0.0
      %vm4347 = vcmp.gt.f32.partialorder %v4245, 0.0
      %vm4348 = vcmp.gt.f32.partialorder %v4250, 0.0
      %vm4349 = vcmp.gt.f32.partialorder %v4255, 0.0
      %vm4350 = vcmp.gt.f32.partialorder %v4260, 0.0
      %vm4351 = vcmp.gt.f32.partialorder %v4265, 0.0
      %vm4352 = vcmp.gt.f32.partialorder %v4270, 0.0
      %vm4353 = vcmp.gt.f32.partialorder %v4275, 0.0
      %vm4354 = vcmp.gt.f32.partialorder %v4280, 0.0
      %vm4355 = vcmp.gt.f32.partialorder %v4285, 0.0
      %vm4356 = vcmp.gt.f32.partialorder %v4290, 0.0
      %vm4357 = vcmp.gt.f32.partialorder %v4295, 0.0
      %vm4358 = vcmp.gt.f32.partialorder %v4300, 0.0
      %vm4359 = vcmp.gt.f32.partialorder %v4305, 0.0
      %vm4360 = vcmp.gt.f32.partialorder %v4310, 0.0
      %vm4361 = vcmp.gt.f32.partialorder %v4315, 0.0
      %vm4362 = vcmp.gt.f32.partialorder %v4320, 0.0
      %vm4363 = vcmp.gt.f32.partialorder %v4325, 0.0
      %vm4364 = vcmp.gt.f32.partialorder %v4330, 0.0
      %v4365 = vmul.f32 %v4175, 0.2
      %v4366 = vmul.f32 %v4180, 0.2
      %v4367 = vmul.f32 %v4185, 0.2
      %v4368 = vmul.f32 %v4190, 0.2
      %v4369 = vmul.f32 %v4195, 0.2
      %v4370 = vmul.f32 %v4200, 0.2
      %v4371 = vmul.f32 %v4205, 0.2
      %v4372 = vmul.f32 %v4210, 0.2
      %v4373 = vmul.f32 %v4215, 0.2
      %v4374 = vmul.f32 %v4220, 0.2
      %v4375 = vmul.f32 %v4225, 0.2
      %v4376 = vmul.f32 %v4230, 0.2
      %v4377 = vmul.f32 %v4235, 0.2
      %v4378 = vmul.f32 %v4240, 0.2
      %v4379 = vmul.f32 %v4245, 0.2
      %v4380 = vmul.f32 %v4250, 0.2
      %v4381 = vmul.f32 %v4255, 0.2
      %v4382 = vmul.f32 %v4260, 0.2
      %v4383 = vmul.f32 %v4265, 0.2
      %v4384 = vmul.f32 %v4270, 0.2
      %v4385 = vmul.f32 %v4275, 0.2
      %v4386 = vmul.f32 %v4280, 0.2
      %v4387 = vmul.f32 %v4285, 0.2
      %v4388 = vmul.f32 %v4290, 0.2
      %v4389 = vmul.f32 %v4295, 0.2
      %v4390 = vmul.f32 %v4300, 0.2
      %v4391 = vmul.f32 %v4305, 0.2
      %v4392 = vmul.f32 %v4310, 0.2
      %v4393 = vmul.f32 %v4315, 0.2
      %v4394 = vmul.f32 %v4320, 0.2
      %v4395 = vmul.f32 %v4325, 0.2
      %v4396 = vmul.f32 %v4330, 0.2
      %v4397 = vsel %vm4333, %v4175, %v4365
      %v4398 = vsel %vm4334, %v4180, %v4366
      %v4399 = vsel %vm4335, %v4185, %v4367
      %v4400 = vsel %vm4336, %v4190, %v4368
      %v4401 = vsel %vm4337, %v4195, %v4369
      %v4402 = vsel %vm4338, %v4200, %v4370
      %v4403 = vsel %vm4339, %v4205, %v4371
      %v4404 = vsel %vm4340, %v4210, %v4372
      %v4405 = vsel %vm4341, %v4215, %v4373
      %v4406 = vsel %vm4342, %v4220, %v4374
      %v4407 = vsel %vm4343, %v4225, %v4375
      %v4408 = vsel %vm4344, %v4230, %v4376
      %v4409 = vsel %vm4345, %v4235, %v4377
      %v4410 = vsel %vm4346, %v4240, %v4378
      %v4411 = vsel %vm4347, %v4245, %v4379
      %v4412 = vsel %vm4348, %v4250, %v4380
      %v4413 = vsel %vm4349, %v4255, %v4381
      %v4414 = vsel %vm4350, %v4260, %v4382
      %v4415 = vsel %vm4351, %v4265, %v4383
      %v4416 = vsel %vm4352, %v4270, %v4384
      %v4417 = vsel %vm4353, %v4275, %v4385
      %v4418 = vsel %vm4354, %v4280, %v4386
      %v4419 = vsel %vm4355, %v4285, %v4387
      %v4420 = vsel %vm4356, %v4290, %v4388
      %v4421 = vsel %vm4357, %v4295, %v4389
      %v4422 = vsel %vm4358, %v4300, %v4390
      %v4423 = vsel %vm4359, %v4305, %v4391
      %v4424 = vsel %vm4360, %v4310, %v4392
      %v4425 = vsel %vm4361, %v4315, %v4393
      %v4426 = vsel %vm4362, %v4320, %v4394
      %v4427 = vsel %vm4363, %v4325, %v4395
      %v4428 = vsel %vm4364, %v4330, %v4396
      %4429 = vxpose.xlu0.b32.start [1/16] %v4397, 128
      %4430 = vxpose.xlu0.b32.cont [2/16] %v4398, 128
      %4431 = vxpose.xlu0.b32.cont [3/16] %v4399, 128
      %4432 = vxpose.xlu0.b32.cont [4/16] %v4400, 128
      %4433 = vxpose.xlu0.b32.cont [5/16] %v4401, 128
      %4434 = vxpose.xlu0.b32.cont [6/16] %v4402, 128
      %4435 = vxpose.xlu0.b32.cont [7/16] %v4403, 128
      %4436 = vxpose.xlu0.b32.cont [8/16] %v4404, 128
      %4437 = vxpose.xlu0.b32.cont [9/16] %v4405, 128
      %4438 = vxpose.xlu0.b32.cont [10/16] %v4406, 128
      %4439 = vxpose.xlu0.b32.cont [11/16] %v4407, 128
      %4440 = vxpose.xlu0.b32.cont [12/16] %v4408, 128
      %4441 = vxpose.xlu0.b32.cont [13/16] %v4409, 128
      %4442 = vxpose.xlu0.b32.cont [14/16] %v4410, 128
      %4443 = vxpose.xlu0.b32.cont [15/16] %v4411, 128
      %4444 = vxpose.xlu0.b32.end [16/16] %v4412, 128
      %v4445 = vpop.trf.xlu0
      %v4446 = vpop.trf.xlu0
      %v4447 = vpop.trf.xlu0
      %v4448 = vpop.trf.xlu0
      %v4449 = vpop.trf.xlu0
      %v4450 = vpop.trf.xlu0
      %v4451 = vpop.trf.xlu0
      %v4452 = vpop.trf.xlu0
      %v4453 = vpop.trf.xlu0
      %v4454 = vpop.trf.xlu0
      %v4455 = vpop.trf.xlu0
      %v4456 = vpop.trf.xlu0
      %v4457 = vpop.trf.xlu0
      %v4458 = vpop.trf.xlu0
      %v4459 = vpop.trf.xlu0
      %v4460 = vpop.trf.xlu0
      %4461 = vxpose.xlu0.b32.start [1/16] %v4413, 128
      %4462 = vxpose.xlu0.b32.cont [2/16] %v4414, 128
      %4463 = vxpose.xlu0.b32.cont [3/16] %v4415, 128
      %4464 = vxpose.xlu0.b32.cont [4/16] %v4416, 128
      %4465 = vxpose.xlu0.b32.cont [5/16] %v4417, 128
      %4466 = vxpose.xlu0.b32.cont [6/16] %v4418, 128
      %4467 = vxpose.xlu0.b32.cont [7/16] %v4419, 128
      %4468 = vxpose.xlu0.b32.cont [8/16] %v4420, 128
      %4469 = vxpose.xlu0.b32.cont [9/16] %v4421, 128
      %4470 = vxpose.xlu0.b32.cont [10/16] %v4422, 128
      %4471 = vxpose.xlu0.b32.cont [11/16] %v4423, 128
      %4472 = vxpose.xlu0.b32.cont [12/16] %v4424, 128
      %4473 = vxpose.xlu0.b32.cont [13/16] %v4425, 128
      %4474 = vxpose.xlu0.b32.cont [14/16] %v4426, 128
      %4475 = vxpose.xlu0.b32.cont [15/16] %v4427, 128
      %4476 = vxpose.xlu0.b32.end [16/16] %v4428, 128
      %v4477 = vpop.trf.xlu0
      %v4478 = vpop.trf.xlu0
      %v4479 = vpop.trf.xlu0
      %v4480 = vpop.trf.xlu0
      %v4481 = vpop.trf.xlu0
      %v4482 = vpop.trf.xlu0
      %v4483 = vpop.trf.xlu0
      %v4484 = vpop.trf.xlu0
      %v4485 = vpop.trf.xlu0
      %v4486 = vpop.trf.xlu0
      %v4487 = vpop.trf.xlu0
      %v4488 = vpop.trf.xlu0
      %v4489 = vpop.trf.xlu0
      %v4490 = vpop.trf.xlu0
      %v4491 = vpop.trf.xlu0
      %v4492 = vpop.trf.xlu0
      %v4495 = vcombine.low %v4445, %v4477
      %4497 = vst [vmem:[%s278] sm:$0xff] %v4495
      %p4498 = scmp.lt.s32.totalorder %s18, 1
      %s4499 = scalar_select %p4498, %s18, 1
      %s4500 = smul.addr %s4499, 2
      %s4501 = smul.addr %s4500, 4
      %s4502 = scalar_lea.vmem %s7, %s4501
      // Predicated region
      $region49: #{recursive_block.1} parent=47 // pred_check
        %p4503 = pneg %p188
      $region50: #{recursive_block.1} parent=47 // pred_check_branch
        %4505 = sbr.rel (%p4503) target = $region52
      $region51: #{recursive_block.1} parent=47 // pred_region
        _
      $region52: #{recursive_block.1} parent=47 // pred_fallthru
        _
    $region48: #{recursive_block.1} parent=5 // pred_fallthru
      _
    %p4506 = scmp.le.s32.totalorder 2, %s13
    // Predicated region
    $region53: #{recursive_block.1} parent=5 // pred_check
      %p4507 = pneg %p4506
    $region54: #{recursive_block.1} parent=5 // pred_check_branch
      %4509 = sbr.rel (%p4507) target = $region56
    $region55: #{recursive_block.1} parent=5 // pred_region
      %s4510 = ssub.s32 %s13, 2
      // Predicated region
      $region57: #{recursive_block.1} parent=55 // pred_check
        %p4511 = pneg %p194
      $region58: #{recursive_block.1} parent=55 // pred_check_branch
        %4513 = sbr.rel (%p4511) target = $region60
      $region59: #{recursive_block.1} parent=55 // pred_region
        %p4514 = scmp.lt.s32.totalorder %s19, 1
        %s4515 = scalar_select %p4514, %s19, 1
        %s4516 = smul.addr %s4515, 2
        %s4517 = smul.addr %s4516, 4
        %s4518 = scalar_lea.vmem %s7, %s4517
      $region60: #{recursive_block.1} parent=55 // pred_fallthru
        _
    $region56: #{recursive_block.1} parent=5 // pred_fallthru
      _
  $region6: #{recursive_block.1} parent=0 // loop_footer
    %s17 = sadd.s32 1, %s13
  $region7: #{recursive_block.1} parent=0 // loop_footer_branch
    %12 = sbr.rel target = $region3
  $region8: #{recursive_block.1} parent=0 // loop_exit
    _

</llo_original>
